<compile_context>
chip_gen: v5e
topology: v5e:2x2
jax: 0.10.0
libtpu: 0.0.40
codegen_flags: <defaults>
</compile_context>

<pallas_src>
import functools
import math

import jax
import jax.numpy as jnp
from jax.experimental import pallas as pl
from jax.experimental.pallas import tpu as pltpu

_BN_EPS = 1e-5
_INV_SQRT2 = 1.0 / math.sqrt(2.0)
_VMEM_LIMIT = 64 * 1024 * 1024   # explicit scoped-VMEM budget (fits all generations)


# ----------------------------- in-kernel math -------------------------------

def _erf(x):
    # Abramowitz & Stegun 7.1.26 (|err| <= 1.5e-7). The divide is moved to the
    # EUP via pl.reciprocal(approx=True) so the VALU slot stays free.
    a1, a2, a3, a4, a5 = 0.254829592, -0.284496736, 1.421413741, -1.453152027, 1.061405429
    p = 0.3275911
    sgn = jnp.where(x >= 0.0, 1.0, -1.0)
    ax = jnp.abs(x)
    t = pl.reciprocal(1.0 + p * ax, approx=True)
    poly = ((((a5 * t + a4) * t + a3) * t + a2) * t + a1) * t
    return sgn * (1.0 - poly * jnp.exp(-ax * ax))


def _gelu(x):
    # PyTorch nn.GELU() default: 0.5 * x * (1 + erf(x / sqrt(2)))
    return 0.5 * x * (1.0 + _erf(x * _INV_SQRT2))


def _pick_tile(dim, candidates):
    # Largest hardware-friendly tile that divides `dim`; otherwise the full dim
    # (a full-dim block always satisfies the (8, 128) BlockSpec constraint).
    for c in candidates:
        if dim % c == 0:
            return c
    return dim


# --------------------- gridded matmul + GELU + BN kernel ---------------------
# Used for the patch-embed conv (as an im2col matmul).

def _matmul_gelu_bn_kernel(x_ref, w_ref, b_ref, s_ref, t_ref, o_ref, acc_ref):
    k = pl.program_id(2)

    @pl.when(k == 0)
    def _():
        acc_ref[...] = jnp.zeros_like(acc_ref)

    acc_ref[...] += jnp.dot(x_ref[...], w_ref[...],
                            preferred_element_type=jnp.float32)

    @pl.when(k == pl.num_programs(2) - 1)
    def _():
        y = _gelu(acc_ref[...] + b_ref[...])
        o_ref[...] = y * s_ref[...] + t_ref[...]


def matmul_gelu_bn(x, w, b, scale, shift):
    m, k = x.shape
    _, d = w.shape
    tm = _pick_tile(m, (512, 256, 128, 64, 32, 16, 8))
    tn = _pick_tile(d, (512, 256, 128))
    tk = _pick_tile(k, (512, 256, 128))
    grid = (m // tm, d // tn, k // tk)

    return pl.pallas_call(
        _matmul_gelu_bn_kernel,
        out_shape=jax.ShapeDtypeStruct((m, d), jnp.float32),
        grid_spec=pltpu.PrefetchScalarGridSpec(
            num_scalar_prefetch=0,
            grid=grid,
            in_specs=[
                pl.BlockSpec((tm, tk), lambda i, j, kq: (i, kq)),
                pl.BlockSpec((tk, tn), lambda i, j, kq: (kq, j)),
                pl.BlockSpec((1, tn), lambda i, j, kq: (0, j)),
                pl.BlockSpec((1, tn), lambda i, j, kq: (0, j)),
                pl.BlockSpec((1, tn), lambda i, j, kq: (0, j)),
            ],
            out_specs=pl.BlockSpec((tm, tn), lambda i, j, kq: (i, j)),
            scratch_shapes=[pltpu.VMEM((tm, tn), jnp.float32)],
        ),
        compiler_params=pltpu.CompilerParams(
            dimension_semantics=("parallel", "parallel", "arbitrary"),
            vmem_limit_bytes=_VMEM_LIMIT),
        cost_estimate=pl.CostEstimate(
            flops=2 * m * k * d,
            transcendentals=m * d,
            bytes_accessed=m * k * 2 + k * d * 2 + m * d * 4 + 3 * d * 4),
    )(x.astype(jnp.bfloat16), w.astype(jnp.bfloat16),
      b.reshape(1, d), scale.reshape(1, d), shift.reshape(1, d))


# ----------------- fused mixer-layer kernel (per batch element) --------------
# Residual(dwconv KxK -> GELU -> BN) -> 1x1 conv -> GELU -> BN, plus the global
# average pool folded into the epilogue (used from the last layer only).

def _mixer_layer_kernel(x_ref, dw_w_ref, dw_b_ref, dw_s_ref, dw_t_ref,
                        pw_w_ref, pw_b_ref, pw_s_ref, pw_t_ref,
                        o_ref, pool_ref, xpad_ref, ybuf_ref, *, H, W, K, PAD):
    # 1) Stage this image into a zero-padded VMEM scratch: halo lives in VMEM,
    #    never in HBM, and the feature map is read from HBM exactly once.
    xpad_ref[...] = jnp.zeros_like(xpad_ref)
    x0 = x_ref[0]                                          # (H, W, D) f32
    xpad_ref[PAD:PAD + H, PAD:PAD + W, :] = x0

    # 2) Depthwise KxK 'same' conv as K^2 shifted multiply-accumulates (VPU).
    w_all = dw_w_ref[...]                                  # (K*K, D)
    acc = xpad_ref[0:H, 0:W, :] * w_all[0]
    for t in range(1, K * K):
        i, j = divmod(t, K)
        acc = acc + xpad_ref[i:i + H, j:j + W, :] * w_all[t]

    # 3) GELU + folded BatchNorm + residual (all f32, elementwise).
    y = _gelu(acc + dw_b_ref[0]) * dw_s_ref[0] + dw_t_ref[0] + x0

    # 4) Flatten spatial rows into the (H*W, D) bf16 staging buffer (slice stores
    #    only, no in-register reshape) and run the 1x1 conv as one MXU matmul.
    for r in range(H):
        ybuf_ref[r * W:(r + 1) * W, :] = y[r].astype(jnp.bfloat16)
    z = jnp.dot(ybuf_ref[...], pw_w_ref[...],
                preferred_element_type=jnp.float32)        # (H*W, D) f32
    z = _gelu(z + pw_b_ref[...]) * pw_s_ref[...] + pw_t_ref[...]

    o_ref[0] = z
    # 5) AdaptiveAvgPool2d((1,1)) folded into the layer epilogue.
    pool_ref[0] = jnp.mean(z, axis=0, keepdims=True)


def mixer_layer(x, dw_w, dw_b, dw_s, dw_t, pw_w, pw_b, pw_s, pw_t):
    n, h, w_sp, d = x.shape
    kk = int(round(math.sqrt(dw_w.shape[0])))
    pad = kk // 2                                          # odd K -> 'same'
    hw = h * w_sp
    vec = lambda a: a.reshape(1, d)
    kern = functools.partial(_mixer_layer_kernel, H=h, W=w_sp, K=kk, PAD=pad)

    y, pooled = pl.pallas_call(
        kern,
        out_shape=(jax.ShapeDtypeStruct((n, hw, d), jnp.float32),
                   jax.ShapeDtypeStruct((n, 1, d), jnp.float32)),
        grid_spec=pltpu.PrefetchScalarGridSpec(
            num_scalar_prefetch=0,
            grid=(n,),
            in_specs=[
                pl.BlockSpec((1, h, w_sp, d), lambda b: (b, 0, 0, 0)),   # x
                pl.BlockSpec((kk * kk, d), lambda b: (0, 0)),            # dw weight
                pl.BlockSpec((1, d), lambda b: (0, 0)),                  # dw bias
                pl.BlockSpec((1, d), lambda b: (0, 0)),                  # dw bn scale
                pl.BlockSpec((1, d), lambda b: (0, 0)),                  # dw bn shift
                pl.BlockSpec((d, d), lambda b: (0, 0)),                  # pw weight (bf16)
                pl.BlockSpec((1, d), lambda b: (0, 0)),                  # pw bias
                pl.BlockSpec((1, d), lambda b: (0, 0)),                  # pw bn scale
                pl.BlockSpec((1, d), lambda b: (0, 0)),                  # pw bn shift
            ],
            out_specs=(
                pl.BlockSpec((1, hw, d), lambda b: (b, 0, 0)),
                pl.BlockSpec((1, 1, d), lambda b: (b, 0, 0)),
            ),
            scratch_shapes=[
                pltpu.VMEM((h + 2 * pad, w_sp + 2 * pad, d), jnp.float32),  # padded tile
                pltpu.VMEM((hw, d), jnp.bfloat16),                          # matmul staging
            ],
        ),
        compiler_params=pltpu.CompilerParams(
            dimension_semantics=("parallel",),
            vmem_limit_bytes=_VMEM_LIMIT),
        cost_estimate=pl.CostEstimate(
            flops=n * hw * d * (2 * kk * kk + 2 * d),
            transcendentals=2 * n * hw * d,
            bytes_accessed=2 * n * hw * d * 4 + d * d * 2 + kk * kk * d * 4),
    )(x, dw_w, vec(dw_b), vec(dw_s), vec(dw_t),
      pw_w.astype(jnp.bfloat16), vec(pw_b), vec(pw_s), vec(pw_t))
    return y, pooled


# ------------------------- parameters (synthetic) ----------------------------

def _bn_affine(gamma, beta, mean, var, eps=_BN_EPS):
    scale = gamma / jnp.sqrt(var + eps)
    shift = beta - mean * scale
    return scale, shift


def init_params(key, in_chans, embed_dim, patch_size, kernel_size, num_layers):
    def bn(k):
        k1, k2, k3, k4 = jax.random.split(k, 4)
        gamma = 1.0 + 0.1 * jax.random.normal(k1, (embed_dim,), jnp.float32)
        beta = 0.1 * jax.random.normal(k2, (embed_dim,), jnp.float32)
        mean = 0.1 * jax.random.normal(k3, (embed_dim,), jnp.float32)
        var = jax.random.uniform(k4, (embed_dim,), jnp.float32, 0.5, 1.5)
        return _bn_affine(gamma, beta, mean, var)

    keys = jax.random.split(key, 3 + num_layers)
    kin = in_chans * patch_size * patch_size
    params = {
        # PyTorch Conv2d weight (D, C, p, p) stored pre-reshaped as (C*p*p, D),
        # row order (c, i, j) to match the im2col column order in the forward.
        "pe_w": (jax.random.normal(keys[0], (kin, embed_dim), jnp.float32)
                 / math.sqrt(kin)),
        "pe_b": 0.02 * jax.random.normal(keys[1], (embed_dim,), jnp.float32),
    }
    params["pe_scale"], params["pe_shift"] = bn(keys[2])

    layers = []
    for l in range(num_layers):
        lk = jax.random.split(keys[3 + l], 6)
        # PyTorch depthwise weight (D, 1, K, K) stored as (K*K, D), row order (i, j).
        dw_w = (jax.random.normal(lk[0], (kernel_size * kernel_size, embed_dim),
                                  jnp.float32) / float(kernel_size))
        dw_b = 0.02 * jax.random.normal(lk[1], (embed_dim,), jnp.float32)
        dw_scale, dw_shift = bn(lk[2])
        # PyTorch 1x1 weight (Dout, Din, 1, 1) stored as (Din, Dout).
        pw_w = (jax.random.normal(lk[3], (embed_dim, embed_dim), jnp.float32)
                / math.sqrt(embed_dim))
        pw_b = 0.02 * jax.random.normal(lk[4], (embed_dim,), jnp.float32)
        pw_scale, pw_shift = bn(lk[5])
        layers.append(dict(dw_w=dw_w, dw_b=dw_b, dw_scale=dw_scale, dw_shift=dw_shift,
                           pw_w=pw_w, pw_b=pw_b, pw_scale=pw_scale, pw_shift=pw_shift))
    params["layers"] = layers
    return params


# ------------------------------- forward -------------------------------------

def convmixer_forward(x, params, *, patch_size):
    # x: (N, C, H, W) float32, NCHW like the PyTorch module (H, W divisible by p).
    n, c, h, w = x.shape
    p = patch_size
    hp, wp = h // p, w // p
    d = params["pe_w"].shape[1]

    # patch_embed: Conv2d(k=p, stride=p) == im2col + matmul, then GELU + BN.
    # TODO(synk): the im2col itself is still an XLA reshape/transpose; folding the
    # patch gather into the matmul kernel's index_map would save one input pass.
    patches = (x.reshape(n, c, hp, p, wp, p)
                .transpose(0, 2, 4, 1, 3, 5)
                .reshape(n * hp * wp, c * p * p))
    feat = matmul_gelu_bn(patches, params["pe_w"], params["pe_b"],
                          params["pe_scale"], params["pe_shift"])
    feat = feat.reshape(n, hp, wp, d)          # NHWC; contiguous reshape only

    # drop_embed: Dropout(p=0.0) -> identity.

    if not params["layers"]:
        # Degenerate num_layers=0 config: pool the patch-embed output directly.
        return jnp.mean(feat.reshape(n, hp * wp, d), axis=1)

    pooled = None
    for lp in params["layers"]:
        feat_flat, pooled = mixer_layer(feat, lp["dw_w"], lp["dw_b"],
                                        lp["dw_scale"], lp["dw_shift"],
                                        lp["pw_w"], lp["pw_b"],
                                        lp["pw_scale"], lp["pw_shift"])
        feat = feat_flat.reshape(n, hp, wp, d)  # free reshape between layers

    # AdaptiveAvgPool2d((1,1)) + Flatten == pooled output of the last layer;
    # head is Identity (num_classes=0).
    return pooled.reshape(n, d)


if __name__ == "__main__":
    key = jax.random.PRNGKey(0)
    kx, kp = jax.random.split(key)

    # Small shapes consistent with the module's forward; embed_dim kept a
    # multiple of 128 so the channel axis is lane-dense.
    N, C, H, W = 2, 3, 16, 16
    patch_size, embed_dim, num_layers, kernel_size = 4, 128, 2, 3

    x = jax.random.normal(kx, (N, C, H, W), jnp.float32)
    params = init_params(kp, C, embed_dim, patch_size, kernel_size, num_layers)

    fwd = jax.jit(functools.partial(convmixer_forward, patch_size=patch_size))
    out = fwd(x, params)
    jax.block_until_ready(out)

    assert out.shape == (N, embed_dim), out.shape
    assert out.dtype == jnp.float32
    assert bool(jnp.all(jnp.isfinite(out)))
    print("KERNEL_OK")
</pallas_src>

<mosaic_0001>
module attributes {stable_mosaic.version = 11 : i64} {
  func.func @_mixer_layer_kernel(%arg0: i32, %arg1: memref<1x4x4x128xf32, #tpu.memory_space<vmem>>, %arg2: memref<9x128xf32, #tpu.memory_space<vmem>>, %arg3: memref<1x128xf32, #tpu.memory_space<vmem>>, %arg4: memref<1x128xf32, #tpu.memory_space<vmem>>, %arg5: memref<1x128xf32, #tpu.memory_space<vmem>>, %arg6: memref<128x128xbf16, #tpu.memory_space<vmem>>, %arg7: memref<1x128xf32, #tpu.memory_space<vmem>>, %arg8: memref<1x128xf32, #tpu.memory_space<vmem>>, %arg9: memref<1x128xf32, #tpu.memory_space<vmem>>, %arg10: memref<1x16x128xf32, #tpu.memory_space<vmem>>, %arg11: memref<1x1x128xf32, #tpu.memory_space<vmem>>, %arg12: memref<6x6x128xf32, #tpu.memory_space<vmem>>, %arg13: memref<16x128xbf16, #tpu.memory_space<vmem>>) attributes {dimension_semantics = [#tpu.dimension_semantics<parallel>], iteration_bounds = array<i64: 2>, scalar_prefetch = 0 : i64, scratch_operands = 2 : i64, tpu.core_type = #tpu.core_type<tc>, window_params = [{transform_indices = @transform_0, window_bounds = array<i64: 1, 4, 4, 128>}, {pipeline_mode = #tpu.pipeline_mode<synchronous>, transform_indices = @transform_1, window_bounds = array<i64: 9, 128>}, {pipeline_mode = #tpu.pipeline_mode<synchronous>, transform_indices = @transform_2, window_bounds = array<i64: 1, 128>}, {pipeline_mode = #tpu.pipeline_mode<synchronous>, transform_indices = @transform_3, window_bounds = array<i64: 1, 128>}, {pipeline_mode = #tpu.pipeline_mode<synchronous>, transform_indices = @transform_4, window_bounds = array<i64: 1, 128>}, {pipeline_mode = #tpu.pipeline_mode<synchronous>, transform_indices = @transform_5, window_bounds = array<i64: 128, 128>}, {pipeline_mode = #tpu.pipeline_mode<synchronous>, transform_indices = @transform_6, window_bounds = array<i64: 1, 128>}, {pipeline_mode = #tpu.pipeline_mode<synchronous>, transform_indices = @transform_7, window_bounds = array<i64: 1, 128>}, {pipeline_mode = #tpu.pipeline_mode<synchronous>, transform_indices = @transform_8, window_bounds = array<i64: 1, 128>}, {transform_indices = @transform_9, window_bounds = array<i64: 1, 16, 128>}, {transform_indices = @transform_10, window_bounds = array<i64: 1, 1, 128>}]} {
    %cst = arith.constant 0.000000e+00 : f32
    %0 = vector.broadcast %cst : f32 to vector<6x6x128xf32>
    %c0 = arith.constant 0 : index
    %c0_0 = arith.constant 0 : index
    %c0_1 = arith.constant 0 : index
    %1 = vector.load %arg12[%c0, %c0_0, %c0_1] : memref<6x6x128xf32, #tpu.memory_space<vmem>>, vector<6x6x128xf32>
    tpu.vector_store %arg12[%c0, %c0_0, %c0_1], %0 {strides = array<i32>} : memref<6x6x128xf32, #tpu.memory_space<vmem>>, vector<6x6x128xf32>,
    %c0_2 = arith.constant 0 : index
    %c0_3 = arith.constant 0 : index
    %c0_4 = arith.constant 0 : index
    %c0_5 = arith.constant 0 : index
    %2 = vector.load %arg1[%c0_2, %c0_3, %c0_4, %c0_5] : memref<1x4x4x128xf32, #tpu.memory_space<vmem>>, vector<1x4x4x128xf32>
    %3 = vector.shape_cast %2 : vector<1x4x4x128xf32> to vector<4x4x128xf32>
    %c1 = arith.constant 1 : index
    %c1_6 = arith.constant 1 : index
    %c0_7 = arith.constant 0 : index
    %4 = vector.load %arg12[%c1, %c1_6, %c0_7] : memref<6x6x128xf32, #tpu.memory_space<vmem>>, vector<4x4x128xf32>
    tpu.vector_store %arg12[%c1, %c1_6, %c0_7], %3 {strides = array<i32>} : memref<6x6x128xf32, #tpu.memory_space<vmem>>, vector<4x4x128xf32>,
    %c0_8 = arith.constant 0 : index
    %c0_9 = arith.constant 0 : index
    %5 = vector.load %arg2[%c0_8, %c0_9] : memref<9x128xf32, #tpu.memory_space<vmem>>, vector<9x128xf32>
    %c0_10 = arith.constant 0 : index
    %c0_11 = arith.constant 0 : index
    %c0_12 = arith.constant 0 : index
    %6 = vector.load %arg12[%c0_10, %c0_11, %c0_12] : memref<6x6x128xf32, #tpu.memory_space<vmem>>, vector<4x4x128xf32>
    %7 = vector.extract_strided_slice %5 {offsets = [0, 0], sizes = [1, 128], strides = [1, 1]} : vector<9x128xf32> to vector<1x128xf32>
    %8 = vector.shape_cast %7 : vector<1x128xf32> to vector<128xf32>
    %9 = vector.shape_cast %8 : vector<128xf32> to vector<1x1x128xf32>
    %10 = vector.broadcast %9 : vector<1x1x128xf32> to vector<4x4x128xf32>
    %11 = arith.mulf %6, %10 : vector<4x4x128xf32>
    %c0_13 = arith.constant 0 : index
    %c1_14 = arith.constant 1 : index
    %c0_15 = arith.constant 0 : index
    %12 = vector.load %arg12[%c0_13, %c1_14, %c0_15] : memref<6x6x128xf32, #tpu.memory_space<vmem>>, vector<4x4x128xf32>
    %13 = vector.extract_strided_slice %5 {offsets = [1, 0], sizes = [1, 128], strides = [1, 1]} : vector<9x128xf32> to vector<1x128xf32>
    %14 = vector.shape_cast %13 : vector<1x128xf32> to vector<128xf32>
    %15 = vector.shape_cast %14 : vector<128xf32> to vector<1x1x128xf32>
    %16 = vector.broadcast %15 : vector<1x1x128xf32> to vector<4x4x128xf32>
    %17 = arith.mulf %12, %16 : vector<4x4x128xf32>
    %18 = arith.addf %11, %17 : vector<4x4x128xf32>
    %c0_16 = arith.constant 0 : index
    %c2 = arith.constant 2 : index
    %c0_17 = arith.constant 0 : index
    %19 = vector.load %arg12[%c0_16, %c2, %c0_17] : memref<6x6x128xf32, #tpu.memory_space<vmem>>, vector<4x4x128xf32>
    %20 = vector.extract_strided_slice %5 {offsets = [2, 0], sizes = [1, 128], strides = [1, 1]} : vector<9x128xf32> to vector<1x128xf32>
    %21 = vector.shape_cast %20 : vector<1x128xf32> to vector<128xf32>
    %22 = vector.shape_cast %21 : vector<128xf32> to vector<1x1x128xf32>
    %23 = vector.broadcast %22 : vector<1x1x128xf32> to vector<4x4x128xf32>
    %24 = arith.mulf %19, %23 : vector<4x4x128xf32>
    %25 = arith.addf %18, %24 : vector<4x4x128xf32>
    %c1_18 = arith.constant 1 : index
    %c0_19 = arith.constant 0 : index
    %c0_20 = arith.constant 0 : index
    %26 = vector.load %arg12[%c1_18, %c0_19, %c0_20] : memref<6x6x128xf32, #tpu.memory_space<vmem>>, vector<4x4x128xf32>
    %27 = vector.extract_strided_slice %5 {offsets = [3, 0], sizes = [1, 128], strides = [1, 1]} : vector<9x128xf32> to vector<1x128xf32>
    %28 = vector.shape_cast %27 : vector<1x128xf32> to vector<128xf32>
    %29 = vector.shape_cast %28 : vector<128xf32> to vector<1x1x128xf32>
    %30 = vector.broadcast %29 : vector<1x1x128xf32> to vector<4x4x128xf32>
    %31 = arith.mulf %26, %30 : vector<4x4x128xf32>
    %32 = arith.addf %25, %31 : vector<4x4x128xf32>
    %c1_21 = arith.constant 1 : index
    %c1_22 = arith.constant 1 : index
    %c0_23 = arith.constant 0 : index
    %33 = vector.load %arg12[%c1_21, %c1_22, %c0_23] : memref<6x6x128xf32, #tpu.memory_space<vmem>>, vector<4x4x128xf32>
    %34 = vector.extract_strided_slice %5 {offsets = [4, 0], sizes = [1, 128], strides = [1, 1]} : vector<9x128xf32> to vector<1x128xf32>
    %35 = vector.shape_cast %34 : vector<1x128xf32> to vector<128xf32>
    %36 = vector.shape_cast %35 : vector<128xf32> to vector<1x1x128xf32>
    %37 = vector.broadcast %36 : vector<1x1x128xf32> to vector<4x4x128xf32>
    %38 = arith.mulf %33, %37 : vector<4x4x128xf32>
    %39 = arith.addf %32, %38 : vector<4x4x128xf32>
    %c1_24 = arith.constant 1 : index
    %c2_25 = arith.constant 2 : index
    %c0_26 = arith.constant 0 : index
    %40 = vector.load %arg12[%c1_24, %c2_25, %c0_26] : memref<6x6x128xf32, #tpu.memory_space<vmem>>, vector<4x4x128xf32>
    %41 = vector.extract_strided_slice %5 {offsets = [5, 0], sizes = [1, 128], strides = [1, 1]} : vector<9x128xf32> to vector<1x128xf32>
    %42 = vector.shape_cast %41 : vector<1x128xf32> to vector<128xf32>
    %43 = vector.shape_cast %42 : vector<128xf32> to vector<1x1x128xf32>
    %44 = vector.broadcast %43 : vector<1x1x128xf32> to vector<4x4x128xf32>
    %45 = arith.mulf %40, %44 : vector<4x4x128xf32>
    %46 = arith.addf %39, %45 : vector<4x4x128xf32>
    %c2_27 = arith.constant 2 : index
    %c0_28 = arith.constant 0 : index
    %c0_29 = arith.constant 0 : index
    %47 = vector.load %arg12[%c2_27, %c0_28, %c0_29] : memref<6x6x128xf32, #tpu.memory_space<vmem>>, vector<4x4x128xf32>
    %48 = vector.extract_strided_slice %5 {offsets = [6, 0], sizes = [1, 128], strides = [1, 1]} : vector<9x128xf32> to vector<1x128xf32>
    %49 = vector.shape_cast %48 : vector<1x128xf32> to vector<128xf32>
    %50 = vector.shape_cast %49 : vector<128xf32> to vector<1x1x128xf32>
    %51 = vector.broadcast %50 : vector<1x1x128xf32> to vector<4x4x128xf32>
    %52 = arith.mulf %47, %51 : vector<4x4x128xf32>
    %53 = arith.addf %46, %52 : vector<4x4x128xf32>
    %c2_30 = arith.constant 2 : index
    %c1_31 = arith.constant 1 : index
    %c0_32 = arith.constant 0 : index
    %54 = vector.load %arg12[%c2_30, %c1_31, %c0_32] : memref<6x6x128xf32, #tpu.memory_space<vmem>>, vector<4x4x128xf32>
    %55 = vector.extract_strided_slice %5 {offsets = [7, 0], sizes = [1, 128], strides = [1, 1]} : vector<9x128xf32> to vector<1x128xf32>
    %56 = vector.shape_cast %55 : vector<1x128xf32> to vector<128xf32>
    %57 = vector.shape_cast %56 : vector<128xf32> to vector<1x1x128xf32>
    %58 = vector.broadcast %57 : vector<1x1x128xf32> to vector<4x4x128xf32>
    %59 = arith.mulf %54, %58 : vector<4x4x128xf32>
    %60 = arith.addf %53, %59 : vector<4x4x128xf32>
    %c2_33 = arith.constant 2 : index
    %c2_34 = arith.constant 2 : index
    %c0_35 = arith.constant 0 : index
    %61 = vector.load %arg12[%c2_33, %c2_34, %c0_35] : memref<6x6x128xf32, #tpu.memory_space<vmem>>, vector<4x4x128xf32>
    %62 = vector.extract_strided_slice %5 {offsets = [8, 0], sizes = [1, 128], strides = [1, 1]} : vector<9x128xf32> to vector<1x128xf32>
    %63 = vector.shape_cast %62 : vector<1x128xf32> to vector<128xf32>
    %64 = vector.shape_cast %63 : vector<128xf32> to vector<1x1x128xf32>
    %65 = vector.broadcast %64 : vector<1x1x128xf32> to vector<4x4x128xf32>
    %66 = arith.mulf %61, %65 : vector<4x4x128xf32>
    %67 = arith.addf %60, %66 : vector<4x4x128xf32>
    %c0_36 = arith.constant 0 : index
    %c0_37 = arith.constant 0 : index
    %68 = vector.load %arg3[%c0_36, %c0_37] : memref<1x128xf32, #tpu.memory_space<vmem>>, vector<1x128xf32>
    %69 = vector.shape_cast %68 : vector<1x128xf32> to vector<128xf32>
    %70 = vector.shape_cast %69 : vector<128xf32> to vector<1x1x128xf32>
    %71 = vector.broadcast %70 : vector<1x1x128xf32> to vector<4x4x128xf32>
    %72 = arith.addf %67, %71 : vector<4x4x128xf32>
    %cst_38 = arith.constant 5.000000e-01 : f32
    %73 = vector.broadcast %cst_38 : f32 to vector<4x4x128xf32>
    %74 = arith.mulf %73, %72 : vector<4x4x128xf32>
    %cst_39 = arith.constant 0.707106769 : f32
    %75 = vector.broadcast %cst_39 : f32 to vector<4x4x128xf32>
    %76 = arith.mulf %72, %75 : vector<4x4x128xf32>
    %cst_40 = arith.constant 0.000000e+00 : f32
    %77 = vector.broadcast %cst_40 : f32 to vector<4x4x128xf32>
    %78 = arith.cmpf oge, %76, %77 : vector<4x4x128xf32>
    %cst_41 = arith.constant 1.000000e+00 : f32
    %cst_42 = arith.constant -1.000000e+00 : f32
    %79 = vector.broadcast %cst_41 : f32 to vector<4x4x128xf32>
    %80 = vector.broadcast %cst_42 : f32 to vector<4x4x128xf32>
    %81 = arith.select %78, %79, %80 : vector<4x4x128xi1>, vector<4x4x128xf32>
    %82 = math.absf %76 : vector<4x4x128xf32>
    %cst_43 = arith.constant 0.327591091 : f32
    %83 = vector.broadcast %cst_43 : f32 to vector<4x4x128xf32>
    %84 = arith.mulf %83, %82 : vector<4x4x128xf32>
    %cst_44 = arith.constant 1.000000e+00 : f32
    %85 = vector.broadcast %cst_44 : f32 to vector<4x4x128xf32>
    %86 = arith.addf %85, %84 : vector<4x4x128xf32>
    %87 = tpu.reciprocal %86 {approx = true} : vector<4x4x128xf32> -> vector<4x4x128xf32>
    %cst_45 = arith.constant 1.06140542 : f32
    %88 = vector.broadcast %cst_45 : f32 to vector<4x4x128xf32>
    %89 = arith.mulf %88, %87 : vector<4x4x128xf32>
    %cst_46 = arith.constant -1.45315206 : f32
    %90 = vector.broadcast %cst_46 : f32 to vector<4x4x128xf32>
    %91 = arith.addf %89, %90 : vector<4x4x128xf32>
    %92 = arith.mulf %91, %87 : vector<4x4x128xf32>
    %cst_47 = arith.constant 1.42141378 : f32
    %93 = vector.broadcast %cst_47 : f32 to vector<4x4x128xf32>
    %94 = arith.addf %92, %93 : vector<4x4x128xf32>
    %95 = arith.mulf %94, %87 : vector<4x4x128xf32>
    %cst_48 = arith.constant -0.284496725 : f32
    %96 = vector.broadcast %cst_48 : f32 to vector<4x4x128xf32>
    %97 = arith.addf %95, %96 : vector<4x4x128xf32>
    %98 = arith.mulf %97, %87 : vector<4x4x128xf32>
    %cst_49 = arith.constant 0.254829586 : f32
    %99 = vector.broadcast %cst_49 : f32 to vector<4x4x128xf32>
    %100 = arith.addf %98, %99 : vector<4x4x128xf32>
    %101 = arith.mulf %100, %87 : vector<4x4x128xf32>
    %cst_50 = arith.constant 0.000000e+00 : f32
    %102 = vector.broadcast %cst_50 : f32 to vector<4x4x128xf32>
    %103 = arith.subf %102, %82 : vector<4x4x128xf32>
    %104 = arith.mulf %103, %82 : vector<4x4x128xf32>
    %105 = math.exp %104 : vector<4x4x128xf32>
    %106 = arith.mulf %101, %105 : vector<4x4x128xf32>
    %cst_51 = arith.constant 1.000000e+00 : f32
    %107 = vector.broadcast %cst_51 : f32 to vector<4x4x128xf32>
    %108 = arith.subf %107, %106 : vector<4x4x128xf32>
    %109 = arith.mulf %81, %108 : vector<4x4x128xf32>
    %cst_52 = arith.constant 1.000000e+00 : f32
    %110 = vector.broadcast %cst_52 : f32 to vector<4x4x128xf32>
    %111 = arith.addf %110, %109 : vector<4x4x128xf32>
    %112 = arith.mulf %74, %111 : vector<4x4x128xf32>
    %c0_53 = arith.constant 0 : index
    %c0_54 = arith.constant 0 : index
    %113 = vector.load %arg4[%c0_53, %c0_54] : memref<1x128xf32, #tpu.memory_space<vmem>>, vector<1x128xf32>
    %114 = vector.shape_cast %113 : vector<1x128xf32> to vector<128xf32>
    %115 = vector.shape_cast %114 : vector<128xf32> to vector<1x1x128xf32>
    %116 = vector.broadcast %115 : vector<1x1x128xf32> to vector<4x4x128xf32>
    %117 = arith.mulf %112, %116 : vector<4x4x128xf32>
    %c0_55 = arith.constant 0 : index
    %c0_56 = arith.constant 0 : index
    %118 = vector.load %arg5[%c0_55, %c0_56] : memref<1x128xf32, #tpu.memory_space<vmem>>, vector<1x128xf32>
    %119 = vector.shape_cast %118 : vector<1x128xf32> to vector<128xf32>
    %120 = vector.shape_cast %119 : vector<128xf32> to vector<1x1x128xf32>
    %121 = vector.broadcast %120 : vector<1x1x128xf32> to vector<4x4x128xf32>
    %122 = arith.addf %117, %121 : vector<4x4x128xf32>
    %123 = arith.addf %122, %3 : vector<4x4x128xf32>
    %124 = vector.extract_strided_slice %123 {offsets = [0, 0, 0], sizes = [1, 4, 128], strides = [1, 1, 1]} : vector<4x4x128xf32> to vector<1x4x128xf32>
    %125 = vector.shape_cast %124 : vector<1x4x128xf32> to vector<4x128xf32>
    %126 = arith.truncf %125 : vector<4x128xf32> to vector<4x128xbf16>
    %c0_57 = arith.constant 0 : index
    %c0_58 = arith.constant 0 : index
    %127 = vector.load %arg13[%c0_57, %c0_58] : memref<16x128xbf16, #tpu.memory_space<vmem>>, vector<4x128xbf16>
    tpu.vector_store %arg13[%c0_57, %c0_58], %126 {strides = array<i32>} : memref<16x128xbf16, #tpu.memory_space<vmem>>, vector<4x128xbf16>,
    %128 = vector.extract_strided_slice %123 {offsets = [1, 0, 0], sizes = [1, 4, 128], strides = [1, 1, 1]} : vector<4x4x128xf32> to vector<1x4x128xf32>
    %129 = vector.shape_cast %128 : vector<1x4x128xf32> to vector<4x128xf32>
    %130 = arith.truncf %129 : vector<4x128xf32> to vector<4x128xbf16>
    %c4 = arith.constant 4 : index
    %c0_59 = arith.constant 0 : index
    %131 = vector.load %arg13[%c4, %c0_59] : memref<16x128xbf16, #tpu.memory_space<vmem>>, vector<4x128xbf16>
    tpu.vector_store %arg13[%c4, %c0_59], %130 {strides = array<i32>} : memref<16x128xbf16, #tpu.memory_space<vmem>>, vector<4x128xbf16>,
    %132 = vector.extract_strided_slice %123 {offsets = [2, 0, 0], sizes = [1, 4, 128], strides = [1, 1, 1]} : vector<4x4x128xf32> to vector<1x4x128xf32>
    %133 = vector.shape_cast %132 : vector<1x4x128xf32> to vector<4x128xf32>
    %134 = arith.truncf %133 : vector<4x128xf32> to vector<4x128xbf16>
    %c8 = arith.constant 8 : index
    %c0_60 = arith.constant 0 : index
    %135 = vector.load %arg13[%c8, %c0_60] : memref<16x128xbf16, #tpu.memory_space<vmem>>, vector<4x128xbf16>
    tpu.vector_store %arg13[%c8, %c0_60], %134 {strides = array<i32>} : memref<16x128xbf16, #tpu.memory_space<vmem>>, vector<4x128xbf16>,
    %136 = vector.extract_strided_slice %123 {offsets = [3, 0, 0], sizes = [1, 4, 128], strides = [1, 1, 1]} : vector<4x4x128xf32> to vector<1x4x128xf32>
    %137 = vector.shape_cast %136 : vector<1x4x128xf32> to vector<4x128xf32>
    %138 = arith.truncf %137 : vector<4x128xf32> to vector<4x128xbf16>
    %c12 = arith.constant 12 : index
    %c0_61 = arith.constant 0 : index
    %139 = vector.load %arg13[%c12, %c0_61] : memref<16x128xbf16, #tpu.memory_space<vmem>>, vector<4x128xbf16>
    tpu.vector_store %arg13[%c12, %c0_61], %138 {strides = array<i32>} : memref<16x128xbf16, #tpu.memory_space<vmem>>, vector<4x128xbf16>,
    %c0_62 = arith.constant 0 : index
    %c0_63 = arith.constant 0 : index
    %140 = vector.load %arg13[%c0_62, %c0_63] : memref<16x128xbf16, #tpu.memory_space<vmem>>, vector<16x128xbf16>
    %c0_64 = arith.constant 0 : index
    %c0_65 = arith.constant 0 : index
    %141 = vector.load %arg6[%c0_64, %c0_65] : memref<128x128xbf16, #tpu.memory_space<vmem>>, vector<128x128xbf16>
    %cst_66 = arith.constant dense<0.000000e+00> : vector<16x128xf32>
    %142 = tpu.matmul %140, %141, %cst_66 {dimension_numbers = #tpu.dot_dimension_numbers<[1], [0], [0], [1], [0, 0, 1, 1], [], []>} : vector<16x128xbf16>, vector<128x128xbf16>, vector<16x128xf32> -> vector<16x128xf32>
    %c0_67 = arith.constant 0 : index
    %c0_68 = arith.constant 0 : index
    %143 = vector.load %arg7[%c0_67, %c0_68] : memref<1x128xf32, #tpu.memory_space<vmem>>, vector<1x128xf32>
    %144 = vector.broadcast %143 : vector<1x128xf32> to vector<16x128xf32>
    %145 = arith.addf %142, %144 : vector<16x128xf32>
    %cst_69 = arith.constant 5.000000e-01 : f32
    %146 = vector.broadcast %cst_69 : f32 to vector<16x128xf32>
    %147 = arith.mulf %146, %145 : vector<16x128xf32>
    %cst_70 = arith.constant 0.707106769 : f32
    %148 = vector.broadcast %cst_70 : f32 to vector<16x128xf32>
    %149 = arith.mulf %145, %148 : vector<16x128xf32>
    %cst_71 = arith.constant 0.000000e+00 : f32
    %150 = vector.broadcast %cst_71 : f32 to vector<16x128xf32>
    %151 = arith.cmpf oge, %149, %150 : vector<16x128xf32>
    %cst_72 = arith.constant 1.000000e+00 : f32
    %cst_73 = arith.constant -1.000000e+00 : f32
    %152 = vector.broadcast %cst_72 : f32 to vector<16x128xf32>
    %153 = vector.broadcast %cst_73 : f32 to vector<16x128xf32>
    %154 = arith.select %151, %152, %153 : vector<16x128xi1>, vector<16x128xf32>
    %155 = math.absf %149 : vector<16x128xf32>
    %cst_74 = arith.constant 0.327591091 : f32
    %156 = vector.broadcast %cst_74 : f32 to vector<16x128xf32>
    %157 = arith.mulf %156, %155 : vector<16x128xf32>
    %cst_75 = arith.constant 1.000000e+00 : f32
    %158 = vector.broadcast %cst_75 : f32 to vector<16x128xf32>
    %159 = arith.addf %158, %157 : vector<16x128xf32>
    %160 = tpu.reciprocal %159 {approx = true} : vector<16x128xf32> -> vector<16x128xf32>
    %cst_76 = arith.constant 1.06140542 : f32
    %161 = vector.broadcast %cst_76 : f32 to vector<16x128xf32>
    %162 = arith.mulf %161, %160 : vector<16x128xf32>
    %cst_77 = arith.constant -1.45315206 : f32
    %163 = vector.broadcast %cst_77 : f32 to vector<16x128xf32>
    %164 = arith.addf %162, %163 : vector<16x128xf32>
    %165 = arith.mulf %164, %160 : vector<16x128xf32>
    %cst_78 = arith.constant 1.42141378 : f32
    %166 = vector.broadcast %cst_78 : f32 to vector<16x128xf32>
    %167 = arith.addf %165, %166 : vector<16x128xf32>
    %168 = arith.mulf %167, %160 : vector<16x128xf32>
    %cst_79 = arith.constant -0.284496725 : f32
    %169 = vector.broadcast %cst_79 : f32 to vector<16x128xf32>
    %170 = arith.addf %168, %169 : vector<16x128xf32>
    %171 = arith.mulf %170, %160 : vector<16x128xf32>
    %cst_80 = arith.constant 0.254829586 : f32
    %172 = vector.broadcast %cst_80 : f32 to vector<16x128xf32>
    %173 = arith.addf %171, %172 : vector<16x128xf32>
    %174 = arith.mulf %173, %160 : vector<16x128xf32>
    %cst_81 = arith.constant 0.000000e+00 : f32
    %175 = vector.broadcast %cst_81 : f32 to vector<16x128xf32>
    %176 = arith.subf %175, %155 : vector<16x128xf32>
    %177 = arith.mulf %176, %155 : vector<16x128xf32>
    %178 = math.exp %177 : vector<16x128xf32>
    %179 = arith.mulf %174, %178 : vector<16x128xf32>
    %cst_82 = arith.constant 1.000000e+00 : f32
    %180 = vector.broadcast %cst_82 : f32 to vector<16x128xf32>
    %181 = arith.subf %180, %179 : vector<16x128xf32>
    %182 = arith.mulf %154, %181 : vector<16x128xf32>
    %cst_83 = arith.constant 1.000000e+00 : f32
    %183 = vector.broadcast %cst_83 : f32 to vector<16x128xf32>
    %184 = arith.addf %183, %182 : vector<16x128xf32>
    %185 = arith.mulf %147, %184 : vector<16x128xf32>
    %c0_84 = arith.constant 0 : index
    %c0_85 = arith.constant 0 : index
    %186 = vector.load %arg8[%c0_84, %c0_85] : memref<1x128xf32, #tpu.memory_space<vmem>>, vector<1x128xf32>
    %187 = vector.broadcast %186 : vector<1x128xf32> to vector<16x128xf32>
    %188 = arith.mulf %185, %187 : vector<16x128xf32>
    %c0_86 = arith.constant 0 : index
    %c0_87 = arith.constant 0 : index
    %189 = vector.load %arg9[%c0_86, %c0_87] : memref<1x128xf32, #tpu.memory_space<vmem>>, vector<1x128xf32>
    %190 = vector.broadcast %189 : vector<1x128xf32> to vector<16x128xf32>
    %191 = arith.addf %188, %190 : vector<16x128xf32>
    %c0_88 = arith.constant 0 : index
    %c0_89 = arith.constant 0 : index
    %c0_90 = arith.constant 0 : index
    %192 = vector.load %arg10[%c0_88, %c0_89, %c0_90] : memref<1x16x128xf32, #tpu.memory_space<vmem>>, vector<1x16x128xf32>
    %193 = vector.shape_cast %192 : vector<1x16x128xf32> to vector<16x128xf32>
    %194 = vector.shape_cast %191 : vector<16x128xf32> to vector<1x16x128xf32>
    tpu.vector_store %arg10[%c0_88, %c0_89, %c0_90], %194 {strides = array<i32>} : memref<1x16x128xf32, #tpu.memory_space<vmem>>, vector<1x16x128xf32>,
    %cst_91 = arith.constant dense<0.000000e+00> : vector<128xf32>
    %195 = vector.multi_reduction <add>, %191, %cst_91 [0] : vector<16x128xf32> to vector<128xf32>
    %196 = vector.shape_cast %195 : vector<128xf32> to vector<1x128xf32>
    %cst_92 = arith.constant 1.600000e+01 : f32
    %197 = vector.broadcast %cst_92 : f32 to vector<1x128xf32>
    %198 = arith.divf %196, %197 : vector<1x128xf32>
    %c0_93 = arith.constant 0 : index
    %c0_94 = arith.constant 0 : index
    %c0_95 = arith.constant 0 : index
    %199 = vector.load %arg11[%c0_93, %c0_94, %c0_95] : memref<1x1x128xf32, #tpu.memory_space<vmem>>, vector<1x1x128xf32>
    %200 = vector.shape_cast %199 : vector<1x1x128xf32> to vector<1x128xf32>
    %201 = vector.shape_cast %198 : vector<1x128xf32> to vector<1x1x128xf32>
    tpu.vector_store %arg11[%c0_93, %c0_94, %c0_95], %201 {strides = array<i32>} : memref<1x1x128xf32, #tpu.memory_space<vmem>>, vector<1x1x128xf32>,
    return
  }
  func.func @transform_0(%arg0: i32) -> (i32, i32, i32, i32) {
    %c0_i32 = arith.constant 0 : i32
    %c0_i32_0 = arith.constant 0 : i32
    %c0_i32_1 = arith.constant 0 : i32
    %c0_i32_2 = arith.constant 0 : i32
    return %arg0, %c0_i32, %c0_i32_0, %c0_i32_1 : i32, i32, i32, i32
  }
  func.func @transform_1(%arg0: i32) -> (i32, i32) {
    %c0_i32 = arith.constant 0 : i32
    %c0_i32_0 = arith.constant 0 : i32
    %c0_i32_1 = arith.constant 0 : i32
    return %c0_i32, %c0_i32_0 : i32, i32
  }
  func.func @transform_2(%arg0: i32) -> (i32, i32) {
    %c0_i32 = arith.constant 0 : i32
    %c0_i32_0 = arith.constant 0 : i32
    %c0_i32_1 = arith.constant 0 : i32
    return %c0_i32, %c0_i32_0 : i32, i32
  }
  func.func @transform_3(%arg0: i32) -> (i32, i32) {
    %c0_i32 = arith.constant 0 : i32
    %c0_i32_0 = arith.constant 0 : i32
    %c0_i32_1 = arith.constant 0 : i32
    return %c0_i32, %c0_i32_0 : i32, i32
  }
  func.func @transform_4(%arg0: i32) -> (i32, i32) {
    %c0_i32 = arith.constant 0 : i32
    %c0_i32_0 = arith.constant 0 : i32
    %c0_i32_1 = arith.constant 0 : i32
    return %c0_i32, %c0_i32_0 : i32, i32
  }
  func.func @transform_5(%arg0: i32) -> (i32, i32) {
    %c0_i32 = arith.constant 0 : i32
    %c0_i32_0 = arith.constant 0 : i32
    %c0_i32_1 = arith.constant 0 : i32
    return %c0_i32, %c0_i32_0 : i32, i32
  }
  func.func @transform_6(%arg0: i32) -> (i32, i32) {
    %c0_i32 = arith.constant 0 : i32
    %c0_i32_0 = arith.constant 0 : i32
    %c0_i32_1 = arith.constant 0 : i32
    return %c0_i32, %c0_i32_0 : i32, i32
  }
  func.func @transform_7(%arg0: i32) -> (i32, i32) {
    %c0_i32 = arith.constant 0 : i32
    %c0_i32_0 = arith.constant 0 : i32
    %c0_i32_1 = arith.constant 0 : i32
    return %c0_i32, %c0_i32_0 : i32, i32
  }
  func.func @transform_8(%arg0: i32) -> (i32, i32) {
    %c0_i32 = arith.constant 0 : i32
    %c0_i32_0 = arith.constant 0 : i32
    %c0_i32_1 = arith.constant 0 : i32
    return %c0_i32, %c0_i32_0 : i32, i32
  }
  func.func @transform_9(%arg0: i32) -> (i32, i32, i32) {
    %c0_i32 = arith.constant 0 : i32
    %c0_i32_0 = arith.constant 0 : i32
    %c0_i32_1 = arith.constant 0 : i32
    return %arg0, %c0_i32, %c0_i32_0 : i32, i32, i32
  }
  func.func @transform_10(%arg0: i32) -> (i32, i32, i32) {
    %c0_i32 = arith.constant 0 : i32
    %c0_i32_0 = arith.constant 0 : i32
    %c0_i32_1 = arith.constant 0 : i32
    return %arg0, %c0_i32, %c0_i32_0 : i32, i32, i32
  }
}

module attributes {stable_mosaic.version = 11 : i64} {
  func.func @_matmul_gelu_bn_kernel(%arg0: i32, %arg1: i32, %arg2: i32, %arg3: memref<32x48xbf16, #tpu.memory_space<vmem>>, %arg4: memref<48x128xbf16, #tpu.memory_space<vmem>>, %arg5: memref<1x128xf32, #tpu.memory_space<vmem>>, %arg6: memref<1x128xf32, #tpu.memory_space<vmem>>, %arg7: memref<1x128xf32, #tpu.memory_space<vmem>>, %arg8: memref<32x128xf32, #tpu.memory_space<vmem>>, %arg9: memref<32x128xf32, #tpu.memory_space<vmem>>) attributes {dimension_semantics = [#tpu.dimension_semantics<parallel>, #tpu.dimension_semantics<parallel>, #tpu.dimension_semantics<arbitrary>], iteration_bounds = array<i64: 1, 1, 1>, scalar_prefetch = 0 : i64, scratch_operands = 1 : i64, tpu.core_type = #tpu.core_type<tc>, window_params = [{transform_indices = @transform_0, window_bounds = array<i64: 32, 48>}, {transform_indices = @transform_1, window_bounds = array<i64: 48, 128>}, {transform_indices = @transform_2, window_bounds = array<i64: 1, 128>}, {transform_indices = @transform_3, window_bounds = array<i64: 1, 128>}, {transform_indices = @transform_4, window_bounds = array<i64: 1, 128>}, {transform_indices = @transform_5, window_bounds = array<i64: 32, 128>}]} {
    %c0_i32 = arith.constant 0 : i32
    %0 = arith.cmpi eq, %arg2, %c0_i32 : i32
    %1 = arith.extui %0 : i1 to i32
    %c0_i32_0 = arith.constant 0 : i32
    %2 = arith.cmpi ne, %1, %c0_i32_0 : i32
    scf.if %2 {
      %cst_10 = arith.constant 0.000000e+00 : f32
      %12 = vector.broadcast %cst_10 : f32 to vector<32x128xf32>
      %c0_11 = arith.constant 0 : index
      %c0_12 = arith.constant 0 : index
      %13 = vector.load %arg9[%c0_11, %c0_12] : memref<32x128xf32, #tpu.memory_space<vmem>>, vector<32x128xf32>
      tpu.vector_store %arg9[%c0_11, %c0_12], %12 {strides = array<i32>} : memref<32x128xf32, #tpu.memory_space<vmem>>, vector<32x128xf32>,
    } else {
    }
    %c0 = arith.constant 0 : index
    %c0_1 = arith.constant 0 : index
    %3 = vector.load %arg9[%c0, %c0_1] : memref<32x128xf32, #tpu.memory_space<vmem>>, vector<32x128xf32>
    %c0_2 = arith.constant 0 : index
    %c0_3 = arith.constant 0 : index
    %4 = vector.load %arg3[%c0_2, %c0_3] : memref<32x48xbf16, #tpu.memory_space<vmem>>, vector<32x48xbf16>
    %c0_4 = arith.constant 0 : index
    %c0_5 = arith.constant 0 : index
    %5 = vector.load %arg4[%c0_4, %c0_5] : memref<48x128xbf16, #tpu.memory_space<vmem>>, vector<48x128xbf16>
    %cst = arith.constant dense<0.000000e+00> : vector<32x128xf32>
    %6 = tpu.matmul %4, %5, %cst {dimension_numbers = #tpu.dot_dimension_numbers<[1], [0], [0], [1], [0, 0, 1, 1], [], []>} : vector<32x48xbf16>, vector<48x128xbf16>, vector<32x128xf32> -> vector<32x128xf32>
    %7 = arith.addf %3, %6 : vector<32x128xf32>
    %c0_6 = arith.constant 0 : index
    %c0_7 = arith.constant 0 : index
    %8 = vector.load %arg9[%c0_6, %c0_7] : memref<32x128xf32, #tpu.memory_space<vmem>>, vector<32x128xf32>
    tpu.vector_store %arg9[%c0_6, %c0_7], %7 {strides = array<i32>} : memref<32x128xf32, #tpu.memory_space<vmem>>, vector<32x128xf32>,
    %c0_i32_8 = arith.constant 0 : i32
    %9 = arith.cmpi eq, %arg2, %c0_i32_8 : i32
    %10 = arith.extui %9 : i1 to i32
    %c0_i32_9 = arith.constant 0 : i32
    %11 = arith.cmpi ne, %10, %c0_i32_9 : i32
    scf.if %11 {
      %c0_10 = arith.constant 0 : index
      %c0_11 = arith.constant 0 : index
      %12 = vector.load %arg9[%c0_10, %c0_11] : memref<32x128xf32, #tpu.memory_space<vmem>>, vector<32x128xf32>
      %c0_12 = arith.constant 0 : index
      %c0_13 = arith.constant 0 : index
      %13 = vector.load %arg5[%c0_12, %c0_13] : memref<1x128xf32, #tpu.memory_space<vmem>>, vector<1x128xf32>
      %14 = vector.broadcast %13 : vector<1x128xf32> to vector<32x128xf32>
      %15 = arith.addf %12, %14 : vector<32x128xf32>
      %cst_14 = arith.constant 5.000000e-01 : f32
      %16 = vector.broadcast %cst_14 : f32 to vector<32x128xf32>
      %17 = arith.mulf %16, %15 : vector<32x128xf32>
      %cst_15 = arith.constant 0.707106769 : f32
      %18 = vector.broadcast %cst_15 : f32 to vector<32x128xf32>
      %19 = arith.mulf %15, %18 : vector<32x128xf32>
      %cst_16 = arith.constant 0.000000e+00 : f32
      %20 = vector.broadcast %cst_16 : f32 to vector<32x128xf32>
      %21 = arith.cmpf oge, %19, %20 : vector<32x128xf32>
      %cst_17 = arith.constant 1.000000e+00 : f32
      %cst_18 = arith.constant -1.000000e+00 : f32
      %22 = vector.broadcast %cst_17 : f32 to vector<32x128xf32>
      %23 = vector.broadcast %cst_18 : f32 to vector<32x128xf32>
      %24 = arith.select %21, %22, %23 : vector<32x128xi1>, vector<32x128xf32>
      %25 = math.absf %19 : vector<32x128xf32>
      %cst_19 = arith.constant 0.327591091 : f32
      %26 = vector.broadcast %cst_19 : f32 to vector<32x128xf32>
      %27 = arith.mulf %26, %25 : vector<32x128xf32>
      %cst_20 = arith.constant 1.000000e+00 : f32
      %28 = vector.broadcast %cst_20 : f32 to vector<32x128xf32>
      %29 = arith.addf %28, %27 : vector<32x128xf32>
      %30 = tpu.reciprocal %29 {approx = true} : vector<32x128xf32> -> vector<32x128xf32>
      %cst_21 = arith.constant 1.06140542 : f32
      %31 = vector.broadcast %cst_21 : f32 to vector<32x128xf32>
      %32 = arith.mulf %31, %30 : vector<32x128xf32>
      %cst_22 = arith.constant -1.45315206 : f32
      %33 = vector.broadcast %cst_22 : f32 to vector<32x128xf32>
      %34 = arith.addf %32, %33 : vector<32x128xf32>
      %35 = arith.mulf %34, %30 : vector<32x128xf32>
      %cst_23 = arith.constant 1.42141378 : f32
      %36 = vector.broadcast %cst_23 : f32 to vector<32x128xf32>
      %37 = arith.addf %35, %36 : vector<32x128xf32>
      %38 = arith.mulf %37, %30 : vector<32x128xf32>
      %cst_24 = arith.constant -0.284496725 : f32
      %39 = vector.broadcast %cst_24 : f32 to vector<32x128xf32>
      %40 = arith.addf %38, %39 : vector<32x128xf32>
      %41 = arith.mulf %40, %30 : vector<32x128xf32>
      %cst_25 = arith.constant 0.254829586 : f32
      %42 = vector.broadcast %cst_25 : f32 to vector<32x128xf32>
      %43 = arith.addf %41, %42 : vector<32x128xf32>
      %44 = arith.mulf %43, %30 : vector<32x128xf32>
      %cst_26 = arith.constant 0.000000e+00 : f32
      %45 = vector.broadcast %cst_26 : f32 to vector<32x128xf32>
      %46 = arith.subf %45, %25 : vector<32x128xf32>
      %47 = arith.mulf %46, %25 : vector<32x128xf32>
      %48 = math.exp %47 : vector<32x128xf32>
      %49 = arith.mulf %44, %48 : vector<32x128xf32>
      %cst_27 = arith.constant 1.000000e+00 : f32
      %50 = vector.broadcast %cst_27 : f32 to vector<32x128xf32>
      %51 = arith.subf %50, %49 : vector<32x128xf32>
      %52 = arith.mulf %24, %51 : vector<32x128xf32>
      %cst_28 = arith.constant 1.000000e+00 : f32
      %53 = vector.broadcast %cst_28 : f32 to vector<32x128xf32>
      %54 = arith.addf %53, %52 : vector<32x128xf32>
      %55 = arith.mulf %17, %54 : vector<32x128xf32>
      %c0_29 = arith.constant 0 : index
      %c0_30 = arith.constant 0 : index
      %56 = vector.load %arg6[%c0_29, %c0_30] : memref<1x128xf32, #tpu.memory_space<vmem>>, vector<1x128xf32>
      %57 = vector.broadcast %56 : vector<1x128xf32> to vector<32x128xf32>
      %58 = arith.mulf %55, %57 : vector<32x128xf32>
      %c0_31 = arith.constant 0 : index
      %c0_32 = arith.constant 0 : index
      %59 = vector.load %arg7[%c0_31, %c0_32] : memref<1x128xf32, #tpu.memory_space<vmem>>, vector<1x128xf32>
      %60 = vector.broadcast %59 : vector<1x128xf32> to vector<32x128xf32>
      %61 = arith.addf %58, %60 : vector<32x128xf32>
      %c0_33 = arith.constant 0 : index
      %c0_34 = arith.constant 0 : index
      %62 = vector.load %arg8[%c0_33, %c0_34] : memref<32x128xf32, #tpu.memory_space<vmem>>, vector<32x128xf32>
      tpu.vector_store %arg8[%c0_33, %c0_34], %61 {strides = array<i32>} : memref<32x128xf32, #tpu.memory_space<vmem>>, vector<32x128xf32>,
    } else {
    }
    return
  }
  func.func @transform_0(%arg0: i32, %arg1: i32, %arg2: i32) -> (i32, i32) {
    %c0_i32 = arith.constant 0 : i32
    return %arg0, %arg2 : i32, i32
  }
  func.func @transform_1(%arg0: i32, %arg1: i32, %arg2: i32) -> (i32, i32) {
    %c0_i32 = arith.constant 0 : i32
    return %arg2, %arg1 : i32, i32
  }
  func.func @transform_2(%arg0: i32, %arg1: i32, %arg2: i32) -> (i32, i32) {
    %c0_i32 = arith.constant 0 : i32
    %c0_i32_0 = arith.constant 0 : i32
    return %c0_i32, %arg1 : i32, i32
  }
  func.func @transform_3(%arg0: i32, %arg1: i32, %arg2: i32) -> (i32, i32) {
    %c0_i32 = arith.constant 0 : i32
    %c0_i32_0 = arith.constant 0 : i32
    return %c0_i32, %arg1 : i32, i32
  }
  func.func @transform_4(%arg0: i32, %arg1: i32, %arg2: i32) -> (i32, i32) {
    %c0_i32 = arith.constant 0 : i32
    %c0_i32_0 = arith.constant 0 : i32
    return %c0_i32, %arg1 : i32, i32
  }
  func.func @transform_5(%arg0: i32, %arg1: i32, %arg2: i32) -> (i32, i32) {
    %c0_i32 = arith.constant 0 : i32
    return %arg0, %arg1 : i32, i32
  }
}

module attributes {stable_mosaic.version = 11 : i64} {
  func.func @_mixer_layer_kernel(%arg0: i32, %arg1: memref<1x4x4x128xf32, #tpu.memory_space<vmem>>, %arg2: memref<9x128xf32, #tpu.memory_space<vmem>>, %arg3: memref<1x128xf32, #tpu.memory_space<vmem>>, %arg4: memref<1x128xf32, #tpu.memory_space<vmem>>, %arg5: memref<1x128xf32, #tpu.memory_space<vmem>>, %arg6: memref<128x128xbf16, #tpu.memory_space<vmem>>, %arg7: memref<1x128xf32, #tpu.memory_space<vmem>>, %arg8: memref<1x128xf32, #tpu.memory_space<vmem>>, %arg9: memref<1x128xf32, #tpu.memory_space<vmem>>, %arg10: memref<1x16x128xf32, #tpu.memory_space<vmem>>, %arg11: memref<1x1x128xf32, #tpu.memory_space<vmem>>, %arg12: memref<6x6x128xf32, #tpu.memory_space<vmem>>, %arg13: memref<16x128xbf16, #tpu.memory_space<vmem>>) attributes {dimension_semantics = [#tpu.dimension_semantics<parallel>], iteration_bounds = array<i64: 2>, scalar_prefetch = 0 : i64, scratch_operands = 2 : i64, tpu.core_type = #tpu.core_type<tc>, window_params = [{transform_indices = @transform_0, window_bounds = array<i64: 1, 4, 4, 128>}, {pipeline_mode = #tpu.pipeline_mode<synchronous>, transform_indices = @transform_1, window_bounds = array<i64: 9, 128>}, {pipeline_mode = #tpu.pipeline_mode<synchronous>, transform_indices = @transform_2, window_bounds = array<i64: 1, 128>}, {pipeline_mode = #tpu.pipeline_mode<synchronous>, transform_indices = @transform_3, window_bounds = array<i64: 1, 128>}, {pipeline_mode = #tpu.pipeline_mode<synchronous>, transform_indices = @transform_4, window_bounds = array<i64: 1, 128>}, {pipeline_mode = #tpu.pipeline_mode<synchronous>, transform_indices = @transform_5, window_bounds = array<i64: 128, 128>}, {pipeline_mode = #tpu.pipeline_mode<synchronous>, transform_indices = @transform_6, window_bounds = array<i64: 1, 128>}, {pipeline_mode = #tpu.pipeline_mode<synchronous>, transform_indices = @transform_7, window_bounds = array<i64: 1, 128>}, {pipeline_mode = #tpu.pipeline_mode<synchronous>, transform_indices = @transform_8, window_bounds = array<i64: 1, 128>}, {transform_indices = @transform_9, window_bounds = array<i64: 1, 16, 128>}, {transform_indices = @transform_10, window_bounds = array<i64: 1, 1, 128>}]} {
    %cst = arith.constant 0.000000e+00 : f32
    %0 = vector.broadcast %cst : f32 to vector<6x6x128xf32>
    %c0 = arith.constant 0 : index
    %c0_0 = arith.constant 0 : index
    %c0_1 = arith.constant 0 : index
    %1 = vector.load %arg12[%c0, %c0_0, %c0_1] : memref<6x6x128xf32, #tpu.memory_space<vmem>>, vector<6x6x128xf32>
    tpu.vector_store %arg12[%c0, %c0_0, %c0_1], %0 {strides = array<i32>} : memref<6x6x128xf32, #tpu.memory_space<vmem>>, vector<6x6x128xf32>,
    %c0_2 = arith.constant 0 : index
    %c0_3 = arith.constant 0 : index
    %c0_4 = arith.constant 0 : index
    %c0_5 = arith.constant 0 : index
    %2 = vector.load %arg1[%c0_2, %c0_3, %c0_4, %c0_5] : memref<1x4x4x128xf32, #tpu.memory_space<vmem>>, vector<1x4x4x128xf32>
    %3 = vector.shape_cast %2 : vector<1x4x4x128xf32> to vector<4x4x128xf32>
    %c1 = arith.constant 1 : index
    %c1_6 = arith.constant 1 : index
    %c0_7 = arith.constant 0 : index
    %4 = vector.load %arg12[%c1, %c1_6, %c0_7] : memref<6x6x128xf32, #tpu.memory_space<vmem>>, vector<4x4x128xf32>
    tpu.vector_store %arg12[%c1, %c1_6, %c0_7], %3 {strides = array<i32>} : memref<6x6x128xf32, #tpu.memory_space<vmem>>, vector<4x4x128xf32>,
    %c0_8 = arith.constant 0 : index
    %c0_9 = arith.constant 0 : index
    %5 = vector.load %arg2[%c0_8, %c0_9] : memref<9x128xf32, #tpu.memory_space<vmem>>, vector<9x128xf32>
    %c0_10 = arith.constant 0 : index
    %c0_11 = arith.constant 0 : index
    %c0_12 = arith.constant 0 : index
    %6 = vector.load %arg12[%c0_10, %c0_11, %c0_12] : memref<6x6x128xf32, #tpu.memory_space<vmem>>, vector<4x4x128xf32>
    %7 = vector.extract_strided_slice %5 {offsets = [0, 0], sizes = [1, 128], strides = [1, 1]} : vector<9x128xf32> to vector<1x128xf32>
    %8 = vector.shape_cast %7 : vector<1x128xf32> to vector<128xf32>
    %9 = vector.shape_cast %8 : vector<128xf32> to vector<1x1x128xf32>
    %10 = vector.broadcast %9 : vector<1x1x128xf32> to vector<4x4x128xf32>
    %11 = arith.mulf %6, %10 : vector<4x4x128xf32>
    %c0_13 = arith.constant 0 : index
    %c1_14 = arith.constant 1 : index
    %c0_15 = arith.constant 0 : index
    %12 = vector.load %arg12[%c0_13, %c1_14, %c0_15] : memref<6x6x128xf32, #tpu.memory_space<vmem>>, vector<4x4x128xf32>
    %13 = vector.extract_strided_slice %5 {offsets = [1, 0], sizes = [1, 128], strides = [1, 1]} : vector<9x128xf32> to vector<1x128xf32>
    %14 = vector.shape_cast %13 : vector<1x128xf32> to vector<128xf32>
    %15 = vector.shape_cast %14 : vector<128xf32> to vector<1x1x128xf32>
    %16 = vector.broadcast %15 : vector<1x1x128xf32> to vector<4x4x128xf32>
    %17 = arith.mulf %12, %16 : vector<4x4x128xf32>
    %18 = arith.addf %11, %17 : vector<4x4x128xf32>
    %c0_16 = arith.constant 0 : index
    %c2 = arith.constant 2 : index
    %c0_17 = arith.constant 0 : index
    %19 = vector.load %arg12[%c0_16, %c2, %c0_17] : memref<6x6x128xf32, #tpu.memory_space<vmem>>, vector<4x4x128xf32>
    %20 = vector.extract_strided_slice %5 {offsets = [2, 0], sizes = [1, 128], strides = [1, 1]} : vector<9x128xf32> to vector<1x128xf32>
    %21 = vector.shape_cast %20 : vector<1x128xf32> to vector<128xf32>
    %22 = vector.shape_cast %21 : vector<128xf32> to vector<1x1x128xf32>
    %23 = vector.broadcast %22 : vector<1x1x128xf32> to vector<4x4x128xf32>
    %24 = arith.mulf %19, %23 : vector<4x4x128xf32>
    %25 = arith.addf %18, %24 : vector<4x4x128xf32>
    %c1_18 = arith.constant 1 : index
    %c0_19 = arith.constant 0 : index
    %c0_20 = arith.constant 0 : index
    %26 = vector.load %arg12[%c1_18, %c0_19, %c0_20] : memref<6x6x128xf32, #tpu.memory_space<vmem>>, vector<4x4x128xf32>
    %27 = vector.extract_strided_slice %5 {offsets = [3, 0], sizes = [1, 128], strides = [1, 1]} : vector<9x128xf32> to vector<1x128xf32>
    %28 = vector.shape_cast %27 : vector<1x128xf32> to vector<128xf32>
    %29 = vector.shape_cast %28 : vector<128xf32> to vector<1x1x128xf32>
    %30 = vector.broadcast %29 : vector<1x1x128xf32> to vector<4x4x128xf32>
    %31 = arith.mulf %26, %30 : vector<4x4x128xf32>
    %32 = arith.addf %25, %31 : vector<4x4x128xf32>
    %c1_21 = arith.constant 1 : index
    %c1_22 = arith.constant 1 : index
    %c0_23 = arith.constant 0 : index
    %33 = vector.load %arg12[%c1_21, %c1_22, %c0_23] : memref<6x6x128xf32, #tpu.memory_space<vmem>>, vector<4x4x128xf32>
    %34 = vector.extract_strided_slice %5 {offsets = [4, 0], sizes = [1, 128], strides = [1, 1]} : vector<9x128xf32> to vector<1x128xf32>
    %35 = vector.shape_cast %34 : vector<1x128xf32> to vector<128xf32>
    %36 = vector.shape_cast %35 : vector<128xf32> to vector<1x1x128xf32>
    %37 = vector.broadcast %36 : vector<1x1x128xf32> to vector<4x4x128xf32>
    %38 = arith.mulf %33, %37 : vector<4x4x128xf32>
    %39 = arith.addf %32, %38 : vector<4x4x128xf32>
    %c1_24 = arith.constant 1 : index
    %c2_25 = arith.constant 2 : index
    %c0_26 = arith.constant 0 : index
    %40 = vector.load %arg12[%c1_24, %c2_25, %c0_26] : memref<6x6x128xf32, #tpu.memory_space<vmem>>, vector<4x4x128xf32>
    %41 = vector.extract_strided_slice %5 {offsets = [5, 0], sizes = [1, 128], strides = [1, 1]} : vector<9x128xf32> to vector<1x128xf32>
    %42 = vector.shape_cast %41 : vector<1x128xf32> to vector<128xf32>
    %43 = vector.shape_cast %42 : vector<128xf32> to vector<1x1x128xf32>
    %44 = vector.broadcast %43 : vector<1x1x128xf32> to vector<4x4x128xf32>
    %45 = arith.mulf %40, %44 : vector<4x4x128xf32>
    %46 = arith.addf %39, %45 : vector<4x4x128xf32>
    %c2_27 = arith.constant 2 : index
    %c0_28 = arith.constant 0 : index
    %c0_29 = arith.constant 0 : index
    %47 = vector.load %arg12[%c2_27, %c0_28, %c0_29] : memref<6x6x128xf32, #tpu.memory_space<vmem>>, vector<4x4x128xf32>
    %48 = vector.extract_strided_slice %5 {offsets = [6, 0], sizes = [1, 128], strides = [1, 1]} : vector<9x128xf32> to vector<1x128xf32>
    %49 = vector.shape_cast %48 : vector<1x128xf32> to vector<128xf32>
    %50 = vector.shape_cast %49 : vector<128xf32> to vector<1x1x128xf32>
    %51 = vector.broadcast %50 : vector<1x1x128xf32> to vector<4x4x128xf32>
    %52 = arith.mulf %47, %51 : vector<4x4x128xf32>
    %53 = arith.addf %46, %52 : vector<4x4x128xf32>
    %c2_30 = arith.constant 2 : index
    %c1_31 = arith.constant 1 : index
    %c0_32 = arith.constant 0 : index
    %54 = vector.load %arg12[%c2_30, %c1_31, %c0_32] : memref<6x6x128xf32, #tpu.memory_space<vmem>>, vector<4x4x128xf32>
    %55 = vector.extract_strided_slice %5 {offsets = [7, 0], sizes = [1, 128], strides = [1, 1]} : vector<9x128xf32> to vector<1x128xf32>
    %56 = vector.shape_cast %55 : vector<1x128xf32> to vector<128xf32>
    %57 = vector.shape_cast %56 : vector<128xf32> to vector<1x1x128xf32>
    %58 = vector.broadcast %57 : vector<1x1x128xf32> to vector<4x4x128xf32>
    %59 = arith.mulf %54, %58 : vector<4x4x128xf32>
    %60 = arith.addf %53, %59 : vector<4x4x128xf32>
    %c2_33 = arith.constant 2 : index
    %c2_34 = arith.constant 2 : index
    %c0_35 = arith.constant 0 : index
    %61 = vector.load %arg12[%c2_33, %c2_34, %c0_35] : memref<6x6x128xf32, #tpu.memory_space<vmem>>, vector<4x4x128xf32>
    %62 = vector.extract_strided_slice %5 {offsets = [8, 0], sizes = [1, 128], strides = [1, 1]} : vector<9x128xf32> to vector<1x128xf32>
    %63 = vector.shape_cast %62 : vector<1x128xf32> to vector<128xf32>
    %64 = vector.shape_cast %63 : vector<128xf32> to vector<1x1x128xf32>
    %65 = vector.broadcast %64 : vector<1x1x128xf32> to vector<4x4x128xf32>
    %66 = arith.mulf %61, %65 : vector<4x4x128xf32>
    %67 = arith.addf %60, %66 : vector<4x4x128xf32>
    %c0_36 = arith.constant 0 : index
    %c0_37 = arith.constant 0 : index
    %68 = vector.load %arg3[%c0_36, %c0_37] : memref<1x128xf32, #tpu.memory_space<vmem>>, vector<1x128xf32>
    %69 = vector.shape_cast %68 : vector<1x128xf32> to vector<128xf32>
    %70 = vector.shape_cast %69 : vector<128xf32> to vector<1x1x128xf32>
    %71 = vector.broadcast %70 : vector<1x1x128xf32> to vector<4x4x128xf32>
    %72 = arith.addf %67, %71 : vector<4x4x128xf32>
    %cst_38 = arith.constant 5.000000e-01 : f32
    %73 = vector.broadcast %cst_38 : f32 to vector<4x4x128xf32>
    %74 = arith.mulf %73, %72 : vector<4x4x128xf32>
    %cst_39 = arith.constant 0.707106769 : f32
    %75 = vector.broadcast %cst_39 : f32 to vector<4x4x128xf32>
    %76 = arith.mulf %72, %75 : vector<4x4x128xf32>
    %cst_40 = arith.constant 0.000000e+00 : f32
    %77 = vector.broadcast %cst_40 : f32 to vector<4x4x128xf32>
    %78 = arith.cmpf oge, %76, %77 : vector<4x4x128xf32>
    %cst_41 = arith.constant 1.000000e+00 : f32
    %cst_42 = arith.constant -1.000000e+00 : f32
    %79 = vector.broadcast %cst_41 : f32 to vector<4x4x128xf32>
    %80 = vector.broadcast %cst_42 : f32 to vector<4x4x128xf32>
    %81 = arith.select %78, %79, %80 : vector<4x4x128xi1>, vector<4x4x128xf32>
    %82 = math.absf %76 : vector<4x4x128xf32>
    %cst_43 = arith.constant 0.327591091 : f32
    %83 = vector.broadcast %cst_43 : f32 to vector<4x4x128xf32>
    %84 = arith.mulf %83, %82 : vector<4x4x128xf32>
    %cst_44 = arith.constant 1.000000e+00 : f32
    %85 = vector.broadcast %cst_44 : f32 to vector<4x4x128xf32>
    %86 = arith.addf %85, %84 : vector<4x4x128xf32>
    %87 = tpu.reciprocal %86 {approx = true} : vector<4x4x128xf32> -> vector<4x4x128xf32>
    %cst_45 = arith.constant 1.06140542 : f32
    %88 = vector.broadcast %cst_45 : f32 to vector<4x4x128xf32>
    %89 = arith.mulf %88, %87 : vector<4x4x128xf32>
    %cst_46 = arith.constant -1.45315206 : f32
    %90 = vector.broadcast %cst_46 : f32 to vector<4x4x128xf32>
    %91 = arith.addf %89, %90 : vector<4x4x128xf32>
    %92 = arith.mulf %91, %87 : vector<4x4x128xf32>
    %cst_47 = arith.constant 1.42141378 : f32
    %93 = vector.broadcast %cst_47 : f32 to vector<4x4x128xf32>
    %94 = arith.addf %92, %93 : vector<4x4x128xf32>
    %95 = arith.mulf %94, %87 : vector<4x4x128xf32>
    %cst_48 = arith.constant -0.284496725 : f32
    %96 = vector.broadcast %cst_48 : f32 to vector<4x4x128xf32>
    %97 = arith.addf %95, %96 : vector<4x4x128xf32>
    %98 = arith.mulf %97, %87 : vector<4x4x128xf32>
    %cst_49 = arith.constant 0.254829586 : f32
    %99 = vector.broadcast %cst_49 : f32 to vector<4x4x128xf32>
    %100 = arith.addf %98, %99 : vector<4x4x128xf32>
    %101 = arith.mulf %100, %87 : vector<4x4x128xf32>
    %cst_50 = arith.constant 0.000000e+00 : f32
    %102 = vector.broadcast %cst_50 : f32 to vector<4x4x128xf32>
    %103 = arith.subf %102, %82 : vector<4x4x128xf32>
    %104 = arith.mulf %103, %82 : vector<4x4x128xf32>
    %105 = math.exp %104 : vector<4x4x128xf32>
    %106 = arith.mulf %101, %105 : vector<4x4x128xf32>
    %cst_51 = arith.constant 1.000000e+00 : f32
    %107 = vector.broadcast %cst_51 : f32 to vector<4x4x128xf32>
    %108 = arith.subf %107, %106 : vector<4x4x128xf32>
    %109 = arith.mulf %81, %108 : vector<4x4x128xf32>
    %cst_52 = arith.constant 1.000000e+00 : f32
    %110 = vector.broadcast %cst_52 : f32 to vector<4x4x128xf32>
    %111 = arith.addf %110, %109 : vector<4x4x128xf32>
    %112 = arith.mulf %74, %111 : vector<4x4x128xf32>
    %c0_53 = arith.constant 0 : index
    %c0_54 = arith.constant 0 : index
    %113 = vector.load %arg4[%c0_53, %c0_54] : memref<1x128xf32, #tpu.memory_space<vmem>>, vector<1x128xf32>
    %114 = vector.shape_cast %113 : vector<1x128xf32> to vector<128xf32>
    %115 = vector.shape_cast %114 : vector<128xf32> to vector<1x1x128xf32>
    %116 = vector.broadcast %115 : vector<1x1x128xf32> to vector<4x4x128xf32>
    %117 = arith.mulf %112, %116 : vector<4x4x128xf32>
    %c0_55 = arith.constant 0 : index
    %c0_56 = arith.constant 0 : index
    %118 = vector.load %arg5[%c0_55, %c0_56] : memref<1x128xf32, #tpu.memory_space<vmem>>, vector<1x128xf32>
    %119 = vector.shape_cast %118 : vector<1x128xf32> to vector<128xf32>
    %120 = vector.shape_cast %119 : vector<128xf32> to vector<1x1x128xf32>
    %121 = vector.broadcast %120 : vector<1x1x128xf32> to vector<4x4x128xf32>
    %122 = arith.addf %117, %121 : vector<4x4x128xf32>
    %123 = arith.addf %122, %3 : vector<4x4x128xf32>
    %124 = vector.extract_strided_slice %123 {offsets = [0, 0, 0], sizes = [1, 4, 128], strides = [1, 1, 1]} : vector<4x4x128xf32> to vector<1x4x128xf32>
    %125 = vector.shape_cast %124 : vector<1x4x128xf32> to vector<4x128xf32>
    %126 = arith.truncf %125 : vector<4x128xf32> to vector<4x128xbf16>
    %c0_57 = arith.constant 0 : index
    %c0_58 = arith.constant 0 : index
    %127 = vector.load %arg13[%c0_57, %c0_58] : memref<16x128xbf16, #tpu.memory_space<vmem>>, vector<4x128xbf16>
    tpu.vector_store %arg13[%c0_57, %c0_58], %126 {strides = array<i32>} : memref<16x128xbf16, #tpu.memory_space<vmem>>, vector<4x128xbf16>,
    %128 = vector.extract_strided_slice %123 {offsets = [1, 0, 0], sizes = [1, 4, 128], strides = [1, 1, 1]} : vector<4x4x128xf32> to vector<1x4x128xf32>
    %129 = vector.shape_cast %128 : vector<1x4x128xf32> to vector<4x128xf32>
    %130 = arith.truncf %129 : vector<4x128xf32> to vector<4x128xbf16>
    %c4 = arith.constant 4 : index
    %c0_59 = arith.constant 0 : index
    %131 = vector.load %arg13[%c4, %c0_59] : memref<16x128xbf16, #tpu.memory_space<vmem>>, vector<4x128xbf16>
    tpu.vector_store %arg13[%c4, %c0_59], %130 {strides = array<i32>} : memref<16x128xbf16, #tpu.memory_space<vmem>>, vector<4x128xbf16>,
    %132 = vector.extract_strided_slice %123 {offsets = [2, 0, 0], sizes = [1, 4, 128], strides = [1, 1, 1]} : vector<4x4x128xf32> to vector<1x4x128xf32>
    %133 = vector.shape_cast %132 : vector<1x4x128xf32> to vector<4x128xf32>
    %134 = arith.truncf %133 : vector<4x128xf32> to vector<4x128xbf16>
    %c8 = arith.constant 8 : index
    %c0_60 = arith.constant 0 : index
    %135 = vector.load %arg13[%c8, %c0_60] : memref<16x128xbf16, #tpu.memory_space<vmem>>, vector<4x128xbf16>
    tpu.vector_store %arg13[%c8, %c0_60], %134 {strides = array<i32>} : memref<16x128xbf16, #tpu.memory_space<vmem>>, vector<4x128xbf16>,
    %136 = vector.extract_strided_slice %123 {offsets = [3, 0, 0], sizes = [1, 4, 128], strides = [1, 1, 1]} : vector<4x4x128xf32> to vector<1x4x128xf32>
    %137 = vector.shape_cast %136 : vector<1x4x128xf32> to vector<4x128xf32>
    %138 = arith.truncf %137 : vector<4x128xf32> to vector<4x128xbf16>
    %c12 = arith.constant 12 : index
    %c0_61 = arith.constant 0 : index
    %139 = vector.load %arg13[%c12, %c0_61] : memref<16x128xbf16, #tpu.memory_space<vmem>>, vector<4x128xbf16>
    tpu.vector_store %arg13[%c12, %c0_61], %138 {strides = array<i32>} : memref<16x128xbf16, #tpu.memory_space<vmem>>, vector<4x128xbf16>,
    %c0_62 = arith.constant 0 : index
    %c0_63 = arith.constant 0 : index
    %140 = vector.load %arg13[%c0_62, %c0_63] : memref<16x128xbf16, #tpu.memory_space<vmem>>, vector<16x128xbf16>
    %c0_64 = arith.constant 0 : index
    %c0_65 = arith.constant 0 : index
    %141 = vector.load %arg6[%c0_64, %c0_65] : memref<128x128xbf16, #tpu.memory_space<vmem>>, vector<128x128xbf16>
    %cst_66 = arith.constant dense<0.000000e+00> : vector<16x128xf32>
    %142 = tpu.matmul %140, %141, %cst_66 {dimension_numbers = #tpu.dot_dimension_numbers<[1], [0], [0], [1], [0, 0, 1, 1], [], []>} : vector<16x128xbf16>, vector<128x128xbf16>, vector<16x128xf32> -> vector<16x128xf32>
    %c0_67 = arith.constant 0 : index
    %c0_68 = arith.constant 0 : index
    %143 = vector.load %arg7[%c0_67, %c0_68] : memref<1x128xf32, #tpu.memory_space<vmem>>, vector<1x128xf32>
    %144 = vector.broadcast %143 : vector<1x128xf32> to vector<16x128xf32>
    %145 = arith.addf %142, %144 : vector<16x128xf32>
    %cst_69 = arith.constant 5.000000e-01 : f32
    %146 = vector.broadcast %cst_69 : f32 to vector<16x128xf32>
    %147 = arith.mulf %146, %145 : vector<16x128xf32>
    %cst_70 = arith.constant 0.707106769 : f32
    %148 = vector.broadcast %cst_70 : f32 to vector<16x128xf32>
    %149 = arith.mulf %145, %148 : vector<16x128xf32>
    %cst_71 = arith.constant 0.000000e+00 : f32
    %150 = vector.broadcast %cst_71 : f32 to vector<16x128xf32>
    %151 = arith.cmpf oge, %149, %150 : vector<16x128xf32>
    %cst_72 = arith.constant 1.000000e+00 : f32
    %cst_73 = arith.constant -1.000000e+00 : f32
    %152 = vector.broadcast %cst_72 : f32 to vector<16x128xf32>
    %153 = vector.broadcast %cst_73 : f32 to vector<16x128xf32>
    %154 = arith.select %151, %152, %153 : vector<16x128xi1>, vector<16x128xf32>
    %155 = math.absf %149 : vector<16x128xf32>
    %cst_74 = arith.constant 0.327591091 : f32
    %156 = vector.broadcast %cst_74 : f32 to vector<16x128xf32>
    %157 = arith.mulf %156, %155 : vector<16x128xf32>
    %cst_75 = arith.constant 1.000000e+00 : f32
    %158 = vector.broadcast %cst_75 : f32 to vector<16x128xf32>
    %159 = arith.addf %158, %157 : vector<16x128xf32>
    %160 = tpu.reciprocal %159 {approx = true} : vector<16x128xf32> -> vector<16x128xf32>
    %cst_76 = arith.constant 1.06140542 : f32
    %161 = vector.broadcast %cst_76 : f32 to vector<16x128xf32>
    %162 = arith.mulf %161, %160 : vector<16x128xf32>
    %cst_77 = arith.constant -1.45315206 : f32
    %163 = vector.broadcast %cst_77 : f32 to vector<16x128xf32>
    %164 = arith.addf %162, %163 : vector<16x128xf32>
    %165 = arith.mulf %164, %160 : vector<16x128xf32>
    %cst_78 = arith.constant 1.42141378 : f32
    %166 = vector.broadcast %cst_78 : f32 to vector<16x128xf32>
    %167 = arith.addf %165, %166 : vector<16x128xf32>
    %168 = arith.mulf %167, %160 : vector<16x128xf32>
    %cst_79 = arith.constant -0.284496725 : f32
    %169 = vector.broadcast %cst_79 : f32 to vector<16x128xf32>
    %170 = arith.addf %168, %169 : vector<16x128xf32>
    %171 = arith.mulf %170, %160 : vector<16x128xf32>
    %cst_80 = arith.constant 0.254829586 : f32
    %172 = vector.broadcast %cst_80 : f32 to vector<16x128xf32>
    %173 = arith.addf %171, %172 : vector<16x128xf32>
    %174 = arith.mulf %173, %160 : vector<16x128xf32>
    %cst_81 = arith.constant 0.000000e+00 : f32
    %175 = vector.broadcast %cst_81 : f32 to vector<16x128xf32>
    %176 = arith.subf %175, %155 : vector<16x128xf32>
    %177 = arith.mulf %176, %155 : vector<16x128xf32>
    %178 = math.exp %177 : vector<16x128xf32>
    %179 = arith.mulf %174, %178 : vector<16x128xf32>
    %cst_82 = arith.constant 1.000000e+00 : f32
    %180 = vector.broadcast %cst_82 : f32 to vector<16x128xf32>
    %181 = arith.subf %180, %179 : vector<16x128xf32>
    %182 = arith.mulf %154, %181 : vector<16x128xf32>
    %cst_83 = arith.constant 1.000000e+00 : f32
    %183 = vector.broadcast %cst_83 : f32 to vector<16x128xf32>
    %184 = arith.addf %183, %182 : vector<16x128xf32>
    %185 = arith.mulf %147, %184 : vector<16x128xf32>
    %c0_84 = arith.constant 0 : index
    %c0_85 = arith.constant 0 : index
    %186 = vector.load %arg8[%c0_84, %c0_85] : memref<1x128xf32, #tpu.memory_space<vmem>>, vector<1x128xf32>
    %187 = vector.broadcast %186 : vector<1x128xf32> to vector<16x128xf32>
    %188 = arith.mulf %185, %187 : vector<16x128xf32>
    %c0_86 = arith.constant 0 : index
    %c0_87 = arith.constant 0 : index
    %189 = vector.load %arg9[%c0_86, %c0_87] : memref<1x128xf32, #tpu.memory_space<vmem>>, vector<1x128xf32>
    %190 = vector.broadcast %189 : vector<1x128xf32> to vector<16x128xf32>
    %191 = arith.addf %188, %190 : vector<16x128xf32>
    %c0_88 = arith.constant 0 : index
    %c0_89 = arith.constant 0 : index
    %c0_90 = arith.constant 0 : index
    %192 = vector.load %arg10[%c0_88, %c0_89, %c0_90] : memref<1x16x128xf32, #tpu.memory_space<vmem>>, vector<1x16x128xf32>
    %193 = vector.shape_cast %192 : vector<1x16x128xf32> to vector<16x128xf32>
    %194 = vector.shape_cast %191 : vector<16x128xf32> to vector<1x16x128xf32>
    tpu.vector_store %arg10[%c0_88, %c0_89, %c0_90], %194 {strides = array<i32>} : memref<1x16x128xf32, #tpu.memory_space<vmem>>, vector<1x16x128xf32>,
    %cst_91 = arith.constant dense<0.000000e+00> : vector<128xf32>
    %195 = vector.multi_reduction <add>, %191, %cst_91 [0] : vector<16x128xf32> to vector<128xf32>
    %196 = vector.shape_cast %195 : vector<128xf32> to vector<1x128xf32>
    %cst_92 = arith.constant 1.600000e+01 : f32
    %197 = vector.broadcast %cst_92 : f32 to vector<1x128xf32>
    %198 = arith.divf %196, %197 : vector<1x128xf32>
    %c0_93 = arith.constant 0 : index
    %c0_94 = arith.constant 0 : index
    %c0_95 = arith.constant 0 : index
    %199 = vector.load %arg11[%c0_93, %c0_94, %c0_95] : memref<1x1x128xf32, #tpu.memory_space<vmem>>, vector<1x1x128xf32>
    %200 = vector.shape_cast %199 : vector<1x1x128xf32> to vector<1x128xf32>
    %201 = vector.shape_cast %198 : vector<1x128xf32> to vector<1x1x128xf32>
    tpu.vector_store %arg11[%c0_93, %c0_94, %c0_95], %201 {strides = array<i32>} : memref<1x1x128xf32, #tpu.memory_space<vmem>>, vector<1x1x128xf32>,
    return
  }
  func.func @transform_0(%arg0: i32) -> (i32, i32, i32, i32) {
    %c0_i32 = arith.constant 0 : i32
    %c0_i32_0 = arith.constant 0 : i32
    %c0_i32_1 = arith.constant 0 : i32
    %c0_i32_2 = arith.constant 0 : i32
    return %arg0, %c0_i32, %c0_i32_0, %c0_i32_1 : i32, i32, i32, i32
  }
  func.func @transform_1(%arg0: i32) -> (i32, i32) {
    %c0_i32 = arith.constant 0 : i32
    %c0_i32_0 = arith.constant 0 : i32
    %c0_i32_1 = arith.constant 0 : i32
    return %c0_i32, %c0_i32_0 : i32, i32
  }
  func.func @transform_2(%arg0: i32) -> (i32, i32) {
    %c0_i32 = arith.constant 0 : i32
    %c0_i32_0 = arith.constant 0 : i32
    %c0_i32_1 = arith.constant 0 : i32
    return %c0_i32, %c0_i32_0 : i32, i32
  }
  func.func @transform_3(%arg0: i32) -> (i32, i32) {
    %c0_i32 = arith.constant 0 : i32
    %c0_i32_0 = arith.constant 0 : i32
    %c0_i32_1 = arith.constant 0 : i32
    return %c0_i32, %c0_i32_0 : i32, i32
  }
  func.func @transform_4(%arg0: i32) -> (i32, i32) {
    %c0_i32 = arith.constant 0 : i32
    %c0_i32_0 = arith.constant 0 : i32
    %c0_i32_1 = arith.constant 0 : i32
    return %c0_i32, %c0_i32_0 : i32, i32
  }
  func.func @transform_5(%arg0: i32) -> (i32, i32) {
    %c0_i32 = arith.constant 0 : i32
    %c0_i32_0 = arith.constant 0 : i32
    %c0_i32_1 = arith.constant 0 : i32
    return %c0_i32, %c0_i32_0 : i32, i32
  }
  func.func @transform_6(%arg0: i32) -> (i32, i32) {
    %c0_i32 = arith.constant 0 : i32
    %c0_i32_0 = arith.constant 0 : i32
    %c0_i32_1 = arith.constant 0 : i32
    return %c0_i32, %c0_i32_0 : i32, i32
  }
  func.func @transform_7(%arg0: i32) -> (i32, i32) {
    %c0_i32 = arith.constant 0 : i32
    %c0_i32_0 = arith.constant 0 : i32
    %c0_i32_1 = arith.constant 0 : i32
    return %c0_i32, %c0_i32_0 : i32, i32
  }
  func.func @transform_8(%arg0: i32) -> (i32, i32) {
    %c0_i32 = arith.constant 0 : i32
    %c0_i32_0 = arith.constant 0 : i32
    %c0_i32_1 = arith.constant 0 : i32
    return %c0_i32, %c0_i32_0 : i32, i32
  }
  func.func @transform_9(%arg0: i32) -> (i32, i32, i32) {
    %c0_i32 = arith.constant 0 : i32
    %c0_i32_0 = arith.constant 0 : i32
    %c0_i32_1 = arith.constant 0 : i32
    return %arg0, %c0_i32, %c0_i32_0 : i32, i32, i32
  }
  func.func @transform_10(%arg0: i32) -> (i32, i32, i32) {
    %c0_i32 = arith.constant 0 : i32
    %c0_i32_0 = arith.constant 0 : i32
    %c0_i32_1 = arith.constant 0 : i32
    return %arg0, %c0_i32, %c0_i32_0 : i32, i32, i32
  }
}

</mosaic_0001>

<llo_original>
// kernel: convmixer_forward.3
$region0: #{convmixer_forward.3}
  #allocation0 [shape = 'u32[]', space=smem, size = 0x4, offset = 0x4, fixed_abs, tag = 'smem constant byte address 0x4 - core index']
  #allocation1 [shape = 'u32[72,128]{1,0:T(1,128)}', space=vmem, size = 0x9000, scoped, tag = 'internal scratch']
  #allocation2 [shape = 'f32[32,128]{1,0:T(8,128)}', space=vmem, size = 0x4000, scoped, tag = 'scratch operand']
  %s0 = inlined_call_operand.vmem [shape: bf16[32,48], index: 0, kind: input, shape index: {}]
  %s1 = inlined_call_operand.vmem [shape: bf16[48,128], index: 1, kind: input, shape index: {}]
  %s2 = inlined_call_operand.vmem [shape: f32[1,128], index: 2, kind: input, shape index: {}]
  %s3 = inlined_call_operand.vmem [shape: f32[1,128], index: 3, kind: input, shape index: {}]
  %s4 = inlined_call_operand.vmem [shape: f32[1,128], index: 4, kind: input, shape index: {}]
  %s5 = inlined_call_operand.vmem [shape: f32[32,128], index: 5, kind: output, shape index: {}]
  %s6 = sld [smem:[#allocation0]]
  $region38: #{convmixer_forward.3} parent=0
    _
  %s8 = ssub.s32 1, %s6
  %s9 = scalar_select 0, %s8, %s6
  // Predicated region
  $region2: #{convmixer_forward.3} parent=0 // pred_check
    _
  $region3: #{convmixer_forward.3} parent=0 // pred_check_branch
    %11 = sbr.rel (0) target = $region5
  $region4: #{convmixer_forward.3} parent=0 // pred_region
    _
  $region5: #{convmixer_forward.3} parent=0 // pred_fallthru
    _
  // Predicated region
  $region6: #{convmixer_forward.3} parent=0 // pred_check
    _
  $region7: #{convmixer_forward.3} parent=0 // pred_check_branch
    %13 = sbr.rel (0) target = $region9
  $region8: #{convmixer_forward.3} parent=0 // pred_region
    _
  $region9: #{convmixer_forward.3} parent=0 // pred_fallthru
    _
  // Predicated region
  $region10: #{convmixer_forward.3} parent=0 // pred_check
    _
  $region11: #{convmixer_forward.3} parent=0 // pred_check_branch
    %15 = sbr.rel (0) target = $region13
  $region12: #{convmixer_forward.3} parent=0 // pred_region
    _
  $region13: #{convmixer_forward.3} parent=0 // pred_fallthru
    _
  // Predicated region
  $region14: #{convmixer_forward.3} parent=0 // pred_check
    _
  $region15: #{convmixer_forward.3} parent=0 // pred_check_branch
    %17 = sbr.rel (0) target = $region17
  $region16: #{convmixer_forward.3} parent=0 // pred_region
    _
  $region17: #{convmixer_forward.3} parent=0 // pred_fallthru
    _
  // Predicated region
  $region18: #{convmixer_forward.3} parent=0 // pred_check
    _
  $region19: #{convmixer_forward.3} parent=0 // pred_check_branch
    %19 = sbr.rel (0) target = $region21
  $region20: #{convmixer_forward.3} parent=0 // pred_region
    _
  $region21: #{convmixer_forward.3} parent=0 // pred_fallthru
    _
  %p21 = scmp.eq.s32.totalorder 0, 0
  // Predicated region
  $region22: #{convmixer_forward.3} parent=0 // pred_check
    %p22 = pneg %p21
  $region23: #{convmixer_forward.3} parent=0 // pred_check_branch
    %24 = sbr.rel (%p22) target = $region25
  $region24: #{convmixer_forward.3} parent=0 // pred_region
    %25 = vst [vmem:[#allocation2] sm:$0xff] 0.0
    %26 = vst [vmem:[#allocation2 + $0x8] sm:$0xff] 0.0
    %27 = vst [vmem:[#allocation2 + $0x10] sm:$0xff] 0.0
    %28 = vst [vmem:[#allocation2 + $0x18] sm:$0xff] 0.0
  $region25: #{convmixer_forward.3} parent=0 // pred_fallthru
    _
  %v29 = vld [vmem:[#allocation2] sm:$0xff]
  %v30 = vld [vmem:[#allocation2 + $0x8] sm:$0xff]
  %v31 = vld [vmem:[#allocation2 + $0x10] sm:$0xff]
  %v32 = vld [vmem:[#allocation2 + $0x18] sm:$0xff]
  %v33 = vld [vmem:[%s0] sm:$0xf]
  %v34 = vld [vmem:[%s0 + $0x4] sm:$0xf]
  %v35 = vld [vmem:[%s0 + $0x8] sm:$0xf]
  %v36 = vld [vmem:[%s0 + $0xc] sm:$0xf]
  %v37 = vld [vmem:[%s1] sm:$0xf]
  %v38 = vld [vmem:[%s1 + $0x4] sm:$0xf]
  %v39 = vld [vmem:[%s1 + $0x8] sm:$0xf]
  %v40 = vld [vmem:[%s1 + $0xc] sm:$0xf]
  %v41 = vld [vmem:[%s1 + $0x10] sm:$0xf]
  %v42 = vld [vmem:[%s1 + $0x14] sm:$0xf]
  %v47 = vunpack.c.l.b16 %v33
  %v48 = vunpack.c.l.b16 %v34
  %v49 = vunpack.c.l.b16 %v35
  %v50 = vunpack.c.l.b16 %v36
  %v51 = vpack.c.b16 %v48, %v47
  %v52 = vpack.c.b16 %v50, %v49
  %v59 = vunpack.c.l.b16 %v37
  %v60 = vunpack.c.l.b16 %v38
  %v61 = vunpack.c.l.b16 %v39
  %v62 = vunpack.c.l.b16 %v40
  %v63 = vunpack.c.l.b16 %v41
  %v64 = vunpack.c.l.b16 %v42
  %v65 = vpack.c.b16 %v60, %v59
  %v66 = vpack.c.b16 %v62, %v61
  %v67 = vpack.c.b16 %v64, %v63
  %vm71 = vcmask 392192
  %v73 = vsel %vm71, %v51, 0
  %v76 = vsel %vm71, %v52, 0
  %78 = vmatpush.bf16.msra.mxu0 0
  %79 = vmatpush.bf16.msra.mxu0 0
  %80 = vmatpush.bf16.msra.mxu0 0
  %81 = vmatpush.bf16.msra.mxu0 0
  %82 = vmatpush.bf16.msra.mxu0 0
  %83 = vmatpush.bf16.msra.mxu0 %v67
  %84 = vmatpush.bf16.msra.mxu0 %v66
  %85 = vmatpush.bf16.msra.mxu0 %v65
  %86 = vmatmul.bf16.gmra.mxu0 %v73
  %v87 = vpop.f32.mrf.mxu0
  %v88 = vadd.f32 0.0, %v87
  %v89 = vpop.f32.mrf.mxu0
  %v90 = vadd.f32 0.0, %v89
  %91 = vmatmul.bf16.gmra.mxu0 %v76
  %v92 = vpop.f32.mrf.mxu0
  %v93 = vadd.f32 0.0, %v92
  %v94 = vpop.f32.mrf.mxu0
  %v95 = vadd.f32 0.0, %v94
  %96 = vdwg.mxu0
  %v97 = vadd.f32 %v29, %v88
  %v98 = vadd.f32 %v30, %v90
  %v99 = vadd.f32 %v31, %v93
  %v100 = vadd.f32 %v32, %v95
  %101 = vst [vmem:[#allocation2] sm:$0xff] %v97
  %102 = vst [vmem:[#allocation2 + $0x8] sm:$0xff] %v98
  %103 = vst [vmem:[#allocation2 + $0x10] sm:$0xff] %v99
  %104 = vst [vmem:[#allocation2 + $0x18] sm:$0xff] %v100
  // Predicated region
  $region26: #{convmixer_forward.3} parent=0 // pred_check
    %p105 = pneg %p21
  $region27: #{convmixer_forward.3} parent=0 // pred_check_branch
    %107 = sbr.rel (%p105) target = $region29
  $region28: #{convmixer_forward.3} parent=0 // pred_region
    %v108 = vld [vmem:[#allocation2] sm:$0xff]
    %v109 = vld [vmem:[#allocation2 + $0x8] sm:$0xff]
    %v110 = vld [vmem:[#allocation2 + $0x10] sm:$0xff]
    %v111 = vld [vmem:[#allocation2 + $0x18] sm:$0xff]
    %v112 = vld [vmem:[%s2] sm:$0x1]
    %v114 = vperm.slane %v112, 0
    %v116 = vadd.f32 %v108, %v114
    %v117 = vadd.f32 %v109, %v114
    %v118 = vadd.f32 %v110, %v114
    %v119 = vadd.f32 %v111, %v114
    %v120 = vmul.f32 %v116, 0.5
    %v121 = vmul.f32 %v117, 0.5
    %v122 = vmul.f32 %v118, 0.5
    %v123 = vmul.f32 %v119, 0.5
    %v124 = vmul.f32 %v116, 0.70710677
    %v125 = vmul.f32 %v117, 0.70710677
    %v126 = vmul.f32 %v118, 0.70710677
    %v127 = vmul.f32 %v119, 0.70710677
    %vm128 = vcmp.ge.f32.partialorder %v124, 0.0
    %vm129 = vcmp.ge.f32.partialorder %v125, 0.0
    %vm130 = vcmp.ge.f32.partialorder %v126, 0.0
    %vm131 = vcmp.ge.f32.partialorder %v127, 0.0
    %v132 = vsel %vm128, 1.0, -1.0
    %v133 = vsel %vm129, 1.0, -1.0
    %v134 = vsel %vm130, 1.0, -1.0
    %v135 = vsel %vm131, 1.0, -1.0
    %v136 = vand.u32 2147483647, %v124
    %v137 = vand.u32 2147483647, %v125
    %v138 = vand.u32 2147483647, %v126
    %v139 = vand.u32 2147483647, %v127
    %v140 = vmul.f32 %v136, 0.3275911
    %v141 = vmul.f32 %v137, 0.3275911
    %v142 = vmul.f32 %v138, 0.3275911
    %v143 = vmul.f32 %v139, 0.3275911
    %v144 = vadd.f32 %v140, 1.0
    %v145 = vadd.f32 %v141, 1.0
    %v146 = vadd.f32 %v142, 1.0
    %v147 = vadd.f32 %v143, 1.0
    %v148 = vrcp.pop %v144
    %v149 = vrcp.pop %v145
    %v150 = vrcp.pop %v146
    %v151 = vrcp.pop %v147
    %v152 = vmul.f32 %v148, 1.0614054
    %v153 = vmul.f32 %v149, 1.0614054
    %v154 = vmul.f32 %v150, 1.0614054
    %v155 = vmul.f32 %v151, 1.0614054
    %v156 = vadd.f32 %v152, -1.4531521
    %v157 = vadd.f32 %v153, -1.4531521
    %v158 = vadd.f32 %v154, -1.4531521
    %v159 = vadd.f32 %v155, -1.4531521
    %v160 = vmul.f32 %v156, %v148
    %v161 = vmul.f32 %v157, %v149
    %v162 = vmul.f32 %v158, %v150
    %v163 = vmul.f32 %v159, %v151
    %v164 = vadd.f32 %v160, 1.4214138
    %v165 = vadd.f32 %v161, 1.4214138
    %v166 = vadd.f32 %v162, 1.4214138
    %v167 = vadd.f32 %v163, 1.4214138
    %v168 = vmul.f32 %v164, %v148
    %v169 = vmul.f32 %v165, %v149
    %v170 = vmul.f32 %v166, %v150
    %v171 = vmul.f32 %v167, %v151
    %v172 = vadd.f32 %v168, -0.28449672
    %v173 = vadd.f32 %v169, -0.28449672
    %v174 = vadd.f32 %v170, -0.28449672
    %v175 = vadd.f32 %v171, -0.28449672
    %v176 = vmul.f32 %v172, %v148
    %v177 = vmul.f32 %v173, %v149
    %v178 = vmul.f32 %v174, %v150
    %v179 = vmul.f32 %v175, %v151
    %v180 = vadd.f32 %v176, 0.2548296
    %v181 = vadd.f32 %v177, 0.2548296
    %v182 = vadd.f32 %v178, 0.2548296
    %v183 = vadd.f32 %v179, 0.2548296
    %v184 = vmul.f32 %v180, %v148
    %v185 = vmul.f32 %v181, %v149
    %v186 = vmul.f32 %v182, %v150
    %v187 = vmul.f32 %v183, %v151
    %v188 = vsub.f32 0.0, %v136
    %v189 = vsub.f32 0.0, %v137
    %v190 = vsub.f32 0.0, %v138
    %v191 = vsub.f32 0.0, %v139
    %v192 = vmul.f32 %v188, %v136
    %v193 = vmul.f32 %v189, %v137
    %v194 = vmul.f32 %v190, %v138
    %v195 = vmul.f32 %v191, %v139
    %v196 = vmul.f32 %v192, 1.442695
    %v197 = vpow.pop %v196
    %v198 = vmul.f32 %v193, 1.442695
    %v199 = vpow.pop %v198
    %v200 = vmul.f32 %v194, 1.442695
    %v201 = vpow.pop %v200
    %v202 = vmul.f32 %v195, 1.442695
    %v203 = vpow.pop %v202
    %v204 = vmul.f32 %v184, %v197
    %v205 = vmul.f32 %v185, %v199
    %v206 = vmul.f32 %v186, %v201
    %v207 = vmul.f32 %v187, %v203
    %v208 = vsub.f32 1.0, %v204
    %v209 = vsub.f32 1.0, %v205
    %v210 = vsub.f32 1.0, %v206
    %v211 = vsub.f32 1.0, %v207
    %v212 = vmul.f32 %v132, %v208
    %v213 = vmul.f32 %v133, %v209
    %v214 = vmul.f32 %v134, %v210
    %v215 = vmul.f32 %v135, %v211
    %v216 = vadd.f32 %v212, 1.0
    %v217 = vadd.f32 %v213, 1.0
    %v218 = vadd.f32 %v214, 1.0
    %v219 = vadd.f32 %v215, 1.0
    %v220 = vmul.f32 %v120, %v216
    %v221 = vmul.f32 %v121, %v217
    %v222 = vmul.f32 %v122, %v218
    %v223 = vmul.f32 %v123, %v219
    %v224 = vld [vmem:[%s3] sm:$0x1]
    %v226 = vperm.slane %v224, 0
    %v228 = vmul.f32 %v220, %v226
    %v229 = vmul.f32 %v221, %v226
    %v230 = vmul.f32 %v222, %v226
    %v231 = vmul.f32 %v223, %v226
    %v232 = vld [vmem:[%s4] sm:$0x1]
    %v234 = vperm.slane %v232, 0
    %v236 = vadd.f32 %v228, %v234
    %v237 = vadd.f32 %v229, %v234
    %v238 = vadd.f32 %v230, %v234
    %v239 = vadd.f32 %v231, %v234
    %240 = vst [vmem:[%s5] sm:$0xff] %v236
    %241 = vst [vmem:[%s5 + $0x8] sm:$0xff] %v237
    %242 = vst [vmem:[%s5 + $0x10] sm:$0xff] %v238
    %243 = vst [vmem:[%s5 + $0x18] sm:$0xff] %v239
  $region29: #{convmixer_forward.3} parent=0 // pred_fallthru
    _
  // Predicated region
  $region30: #{convmixer_forward.3} parent=0 // pred_check
    _
  $region31: #{convmixer_forward.3} parent=0 // pred_check_branch
    %245 = sbr.rel (0) target = $region33
  $region32: #{convmixer_forward.3} parent=0 // pred_region
    _
  $region33: #{convmixer_forward.3} parent=0 // pred_fallthru
    _
  // Predicated region
  $region34: #{convmixer_forward.3} parent=0 // pred_check
    _
  $region35: #{convmixer_forward.3} parent=0 // pred_check_branch
    %247 = sbr.rel (0) target = $region37
  $region36: #{convmixer_forward.3} parent=0 // pred_region
    _
  $region37: #{convmixer_forward.3} parent=0 // pred_fallthru
    _

// kernel: convmixer_forward.5
$region0: #{convmixer_forward.5}
  #allocation0 [shape = 'u32[]', space=smem, size = 0x4, offset = 0x4, fixed_abs, tag = 'smem constant byte address 0x4 - core index']
  #allocation1 [shape = 'u32[72,128]{1,0:T(1,128)}', space=vmem, size = 0x9000, scoped, tag = 'internal scratch']
  #allocation2 [shape = 'f32[6,6,128]{2,1,0:T(8,128)}', space=vmem, size = 0x6000, scoped, tag = 'scratch operand']
  #allocation3 [shape = 'bf16[16,128]{1,0:T(8,128)(2,1)}', space=vmem, size = 0x1000, scoped, tag = 'scratch operand']
  %s0 = inlined_call_operand.vmem [shape: f32[2,4,4,128], index: 0, kind: input, shape index: {}]
  %s1 = inlined_call_operand.vmem [shape: f32[9,128], index: 1, kind: input, shape index: {}]
  %s2 = inlined_call_operand.vmem [shape: f32[1,128], index: 2, kind: input, shape index: {}]
  %s3 = inlined_call_operand.vmem [shape: f32[1,128], index: 3, kind: input, shape index: {}]
  %s4 = inlined_call_operand.vmem [shape: f32[1,128], index: 4, kind: input, shape index: {}]
  %s5 = inlined_call_operand.vmem [shape: bf16[128,128], index: 5, kind: input, shape index: {}]
  %s6 = inlined_call_operand.vmem [shape: f32[1,128], index: 6, kind: input, shape index: {}]
  %s7 = inlined_call_operand.vmem [shape: f32[1,128], index: 7, kind: input, shape index: {}]
  %s8 = inlined_call_operand.vmem [shape: f32[1,128], index: 8, kind: input, shape index: {}]
  %s9 = inlined_call_operand.hbm [shape: f32[2,16,128], index: 9, kind: output, shape index: {0}]
  %s10 = inlined_call_operand.hbm [shape: f32[2,1,128], index: 10, kind: output, shape index: {1}]
  %11 = xla_tuple %s9, %s10
  %s12 = sld [smem:[#allocation0]]
  $region77: #{convmixer_forward.5} parent=0
    _
  %s14 = ssub.s32 1, %s12
  %s15 = scalar_select 0, %s14, %s12
  $region1: #{convmixer_forward.5} parent=0
    #allocation4 [shape = 'u8[16384]{0}', space=vmem, size = 0x4000, scoped, tag = 'output window, operand 0']
    #allocation5 [shape = 's32[2]{0}', space=sflag, size = 0x8, scoped, tag = 'scoped memory for convmixer_forward.5']
    #allocation6 [shape = 'u8[1024]{0}', space=vmem, size = 0x400, scoped, tag = 'output window, operand 1']
    #allocation7 [shape = 's32[2]{0}', space=sflag, size = 0x8, scoped, tag = 'scoped memory for convmixer_forward.5']
    %16 = vsyncpa [#allocation5], 0
    %s17 = scalar_lea.sflag [#allocation5], 1
    %18 = vsyncpa %s17, 0
    %19 = vsyncpa [#allocation7], 0
    %s20 = scalar_lea.sflag [#allocation7], 1
    %21 = vsyncpa %s20, 0
    loop: start=0, step=1, limit=4
    $region2: #{convmixer_forward.5} parent=1 // loop_pre_header
      _
    $region3: #{convmixer_forward.5} parent=1 // loop_header
      %s23 = sphi 0, %s27
      %p24 = scmp.ge.s32.totalorder %s23, 4
      %s33 = sphi 0, %s35
      %s36 = sphi 0, %s33
      %s37 = sphi 0, %s36
      %s53 = sphi 0, %s37
      %s57 = sphi 0, %s57
      %s59 = sphi 0, %s57
      %s60 = sphi 0, %s59
      %s74 = sphi 0, %s60
      %s78 = sphi 0, %s78
      %s80 = sphi 0, %s78
      %s81 = sphi 0, %s80
      %s95 = sphi 0, %s81
      %s99 = sphi 0, %s99
      %s101 = sphi 0, %s99
      %s102 = sphi 0, %s101
      %s116 = sphi 0, %s102
      %s120 = sphi 0, %s120
      %s122 = sphi 0, %s120
      %s123 = sphi 0, %s122
      %s137 = sphi 0, %s123
      %s141 = sphi 0, %s141
      %s143 = sphi 0, %s141
      %s144 = sphi 0, %s143
      %s158 = sphi 0, %s144
      %s162 = sphi 0, %s162
      %s164 = sphi 0, %s162
      %s165 = sphi 0, %s164
      %s179 = sphi 0, %s165
      %s183 = sphi 0, %s183
      %s185 = sphi 0, %s183
      %s186 = sphi 0, %s185
      %s200 = sphi 0, %s186
      %s204 = sphi 0, %s204
      %s206 = sphi 0, %s204
      %s207 = sphi 0, %s206
      %s221 = sphi 0, %s207
      %s227 = sphi 0, %s229
      %s230 = sphi 0, %s227
      %s231 = sphi 0, %s230
      %s247 = sphi 0, %s231
      %s253 = sphi 0, %s255
      %s256 = sphi 0, %s253
      %s257 = sphi 0, %s256
      %s273 = sphi 0, %s257
    $region4: #{convmixer_forward.5} parent=1 // loop_header_branch
      %26 = sbr.rel (%p24) target = $region8
    $region5: #{convmixer_forward.5} parent=1 // loop_body
      %s28 = ssub.s32 %s23, 1
      %s29 = ssub.s32 %s23, 2
      %s30 = sadd.s32 %s23, 1
      %s31 = ssub.s32 %s23, %s30
      %p32 = scmp.eq.s32.totalorder %s31, 0
      %s34 = sadd.s32 %s33, 1
      %s35 = scalar_select %p32, %s33, %s34
      %p38 = pneg %p32
      %p39 = scmp.eq.s32.totalorder %s23, 1
      %p40 = por %p38, %p39
      %p41 = scmp.ne.s32.totalorder %s33, %s36
      %p42 = scmp.eq.s32.totalorder %s23, 0
      %p43 = por %p41, %p42
      %p44 = scmp.ne.s32.totalorder %s33, %s36
      %p45 = scmp.eq.s32.totalorder %s28, 1
      %p46 = por %p44, %p45
      %p47 = scmp.ne.s32.totalorder %s36, %s37
      %p48 = scmp.eq.s32.totalorder %s28, 0
      %p49 = por %p47, %p48
      %p50 = scmp.ne.s32.totalorder %s36, %s37
      %p51 = scmp.eq.s32.totalorder %s29, 1
      %p52 = por %p50, %p51
      %p54 = scmp.ne.s32.totalorder %s37, %s53
      %p55 = scmp.eq.s32.totalorder %s29, 0
      %p56 = por %p54, %p55
      %s58 = sadd.s32 %s57, 1
      %p61 = scmp.eq.s32.totalorder %s23, 1
      %p62 = scmp.ne.s32.totalorder %s57, %s59
      %p63 = scmp.eq.s32.totalorder %s23, 0
      %p64 = por %p62, %p63
      %p65 = scmp.ne.s32.totalorder %s57, %s59
      %p66 = scmp.eq.s32.totalorder %s28, 1
      %p67 = por %p65, %p66
      %p68 = scmp.ne.s32.totalorder %s59, %s60
      %p69 = scmp.eq.s32.totalorder %s28, 0
      %p70 = por %p68, %p69
      %p71 = scmp.ne.s32.totalorder %s59, %s60
      %p72 = scmp.eq.s32.totalorder %s29, 1
      %p73 = por %p71, %p72
      %p75 = scmp.ne.s32.totalorder %s60, %s74
      %p76 = scmp.eq.s32.totalorder %s29, 0
      %p77 = por %p75, %p76
      %s79 = sadd.s32 %s78, 1
      %p82 = scmp.eq.s32.totalorder %s23, 1
      %p83 = scmp.ne.s32.totalorder %s78, %s80
      %p84 = scmp.eq.s32.totalorder %s23, 0
      %p85 = por %p83, %p84
      %p86 = scmp.ne.s32.totalorder %s78, %s80
      %p87 = scmp.eq.s32.totalorder %s28, 1
      %p88 = por %p86, %p87
      %p89 = scmp.ne.s32.totalorder %s80, %s81
      %p90 = scmp.eq.s32.totalorder %s28, 0
      %p91 = por %p89, %p90
      %p92 = scmp.ne.s32.totalorder %s80, %s81
      %p93 = scmp.eq.s32.totalorder %s29, 1
      %p94 = por %p92, %p93
      %p96 = scmp.ne.s32.totalorder %s81, %s95
      %p97 = scmp.eq.s32.totalorder %s29, 0
      %p98 = por %p96, %p97
      %s100 = sadd.s32 %s99, 1
      %p103 = scmp.eq.s32.totalorder %s23, 1
      %p104 = scmp.ne.s32.totalorder %s99, %s101
      %p105 = scmp.eq.s32.totalorder %s23, 0
      %p106 = por %p104, %p105
      %p107 = scmp.ne.s32.totalorder %s99, %s101
      %p108 = scmp.eq.s32.totalorder %s28, 1
      %p109 = por %p107, %p108
      %p110 = scmp.ne.s32.totalorder %s101, %s102
      %p111 = scmp.eq.s32.totalorder %s28, 0
      %p112 = por %p110, %p111
      %p113 = scmp.ne.s32.totalorder %s101, %s102
      %p114 = scmp.eq.s32.totalorder %s29, 1
      %p115 = por %p113, %p114
      %p117 = scmp.ne.s32.totalorder %s102, %s116
      %p118 = scmp.eq.s32.totalorder %s29, 0
      %p119 = por %p117, %p118
      %s121 = sadd.s32 %s120, 1
      %p124 = scmp.eq.s32.totalorder %s23, 1
      %p125 = scmp.ne.s32.totalorder %s120, %s122
      %p126 = scmp.eq.s32.totalorder %s23, 0
      %p127 = por %p125, %p126
      %p128 = scmp.ne.s32.totalorder %s120, %s122
      %p129 = scmp.eq.s32.totalorder %s28, 1
      %p130 = por %p128, %p129
      %p131 = scmp.ne.s32.totalorder %s122, %s123
      %p132 = scmp.eq.s32.totalorder %s28, 0
      %p133 = por %p131, %p132
      %p134 = scmp.ne.s32.totalorder %s122, %s123
      %p135 = scmp.eq.s32.totalorder %s29, 1
      %p136 = por %p134, %p135
      %p138 = scmp.ne.s32.totalorder %s123, %s137
      %p139 = scmp.eq.s32.totalorder %s29, 0
      %p140 = por %p138, %p139
      %s142 = sadd.s32 %s141, 1
      %p145 = scmp.eq.s32.totalorder %s23, 1
      %p146 = scmp.ne.s32.totalorder %s141, %s143
      %p147 = scmp.eq.s32.totalorder %s23, 0
      %p148 = por %p146, %p147
      %p149 = scmp.ne.s32.totalorder %s141, %s143
      %p150 = scmp.eq.s32.totalorder %s28, 1
      %p151 = por %p149, %p150
      %p152 = scmp.ne.s32.totalorder %s143, %s144
      %p153 = scmp.eq.s32.totalorder %s28, 0
      %p154 = por %p152, %p153
      %p155 = scmp.ne.s32.totalorder %s143, %s144
      %p156 = scmp.eq.s32.totalorder %s29, 1
      %p157 = por %p155, %p156
      %p159 = scmp.ne.s32.totalorder %s144, %s158
      %p160 = scmp.eq.s32.totalorder %s29, 0
      %p161 = por %p159, %p160
      %s163 = sadd.s32 %s162, 1
      %p166 = scmp.eq.s32.totalorder %s23, 1
      %p167 = scmp.ne.s32.totalorder %s162, %s164
      %p168 = scmp.eq.s32.totalorder %s23, 0
      %p169 = por %p167, %p168
      %p170 = scmp.ne.s32.totalorder %s162, %s164
      %p171 = scmp.eq.s32.totalorder %s28, 1
      %p172 = por %p170, %p171
      %p173 = scmp.ne.s32.totalorder %s164, %s165
      %p174 = scmp.eq.s32.totalorder %s28, 0
      %p175 = por %p173, %p174
      %p176 = scmp.ne.s32.totalorder %s164, %s165
      %p177 = scmp.eq.s32.totalorder %s29, 1
      %p178 = por %p176, %p177
      %p180 = scmp.ne.s32.totalorder %s165, %s179
      %p181 = scmp.eq.s32.totalorder %s29, 0
      %p182 = por %p180, %p181
      %s184 = sadd.s32 %s183, 1
      %p187 = scmp.eq.s32.totalorder %s23, 1
      %p188 = scmp.ne.s32.totalorder %s183, %s185
      %p189 = scmp.eq.s32.totalorder %s23, 0
      %p190 = por %p188, %p189
      %p191 = scmp.ne.s32.totalorder %s183, %s185
      %p192 = scmp.eq.s32.totalorder %s28, 1
      %p193 = por %p191, %p192
      %p194 = scmp.ne.s32.totalorder %s185, %s186
      %p195 = scmp.eq.s32.totalorder %s28, 0
      %p196 = por %p194, %p195
      %p197 = scmp.ne.s32.totalorder %s185, %s186
      %p198 = scmp.eq.s32.totalorder %s29, 1
      %p199 = por %p197, %p198
      %p201 = scmp.ne.s32.totalorder %s186, %s200
      %p202 = scmp.eq.s32.totalorder %s29, 0
      %p203 = por %p201, %p202
      %s205 = sadd.s32 %s204, 1
      %p208 = scmp.eq.s32.totalorder %s23, 1
      %p209 = scmp.ne.s32.totalorder %s204, %s206
      %p210 = scmp.eq.s32.totalorder %s23, 0
      %p211 = por %p209, %p210
      %p212 = scmp.ne.s32.totalorder %s204, %s206
      %p213 = scmp.eq.s32.totalorder %s28, 1
      %p214 = por %p212, %p213
      %p215 = scmp.ne.s32.totalorder %s206, %s207
      %p216 = scmp.eq.s32.totalorder %s28, 0
      %p217 = por %p215, %p216
      %p218 = scmp.ne.s32.totalorder %s206, %s207
      %p219 = scmp.eq.s32.totalorder %s29, 1
      %p220 = por %p218, %p219
      %p222 = scmp.ne.s32.totalorder %s207, %s221
      %p223 = scmp.eq.s32.totalorder %s29, 0
      %p224 = por %p222, %p223
      %s225 = ssub.s32 %s23, %s30
      %p226 = scmp.eq.s32.totalorder %s225, 0
      %s228 = sadd.s32 %s227, 1
      %s229 = scalar_select %p226, %s227, %s228
      %p232 = pneg %p226
      %p233 = scmp.eq.s32.totalorder %s23, 1
      %p234 = por %p232, %p233
      %p235 = scmp.ne.s32.totalorder %s227, %s230
      %p236 = scmp.eq.s32.totalorder %s23, 0
      %p237 = por %p235, %p236
      %p238 = scmp.ne.s32.totalorder %s227, %s230
      %p239 = scmp.eq.s32.totalorder %s28, 1
      %p240 = por %p238, %p239
      %p241 = scmp.ne.s32.totalorder %s230, %s231
      %p242 = scmp.eq.s32.totalorder %s28, 0
      %p243 = por %p241, %p242
      %p244 = scmp.ne.s32.totalorder %s230, %s231
      %p245 = scmp.eq.s32.totalorder %s29, 1
      %p246 = por %p244, %p245
      %p248 = scmp.ne.s32.totalorder %s231, %s247
      %p249 = scmp.eq.s32.totalorder %s29, 0
      %p250 = por %p248, %p249
      %s251 = ssub.s32 %s23, %s30
      %p252 = scmp.eq.s32.totalorder %s251, 0
      %s254 = sadd.s32 %s253, 1
      %s255 = scalar_select %p252, %s253, %s254
      %p258 = pneg %p252
      %p259 = scmp.eq.s32.totalorder %s23, 1
      %p260 = por %p258, %p259
      %p261 = scmp.ne.s32.totalorder %s253, %s256
      %p262 = scmp.eq.s32.totalorder %s23, 0
      %p263 = por %p261, %p262
      %p264 = scmp.ne.s32.totalorder %s253, %s256
      %p265 = scmp.eq.s32.totalorder %s28, 1
      %p266 = por %p264, %p265
      %p267 = scmp.ne.s32.totalorder %s256, %s257
      %p268 = scmp.eq.s32.totalorder %s28, 0
      %p269 = por %p267, %p268
      %p270 = scmp.ne.s32.totalorder %s256, %s257
      %p271 = scmp.eq.s32.totalorder %s29, 1
      %p272 = por %p270, %p271
      %p274 = scmp.ne.s32.totalorder %s257, %s273
      %p275 = scmp.eq.s32.totalorder %s29, 0
      %p276 = por %p274, %p275
      %p277 = scmp.le.s32.totalorder 1, %s23
      %p278 = scmp.lt.s32.totalorder %s23, 3
      %p279 = pnand %p277, %p278
      %p280 = pneg %p279
      // Predicated region
      $region9: #{convmixer_forward.5} parent=5 // pred_check
        _
      $region10: #{convmixer_forward.5} parent=5 // pred_check_branch
        %282 = sbr.rel (%p279) target = $region12
      $region11: #{convmixer_forward.5} parent=5 // pred_region
        %s283 = ssub.s32 %s23, 1
        // Predicated region
        $region13: #{convmixer_forward.5} parent=11 // pred_check
          %p284 = pneg %p70
        $region14: #{convmixer_forward.5} parent=11 // pred_check_branch
          %286 = sbr.rel (%p284) target = $region16
        $region15: #{convmixer_forward.5} parent=11 // pred_region
          _
        $region16: #{convmixer_forward.5} parent=11 // pred_fallthru
          _
        // Predicated region
        $region17: #{convmixer_forward.5} parent=11 // pred_check
          %p287 = pneg %p91
        $region18: #{convmixer_forward.5} parent=11 // pred_check_branch
          %289 = sbr.rel (%p287) target = $region20
        $region19: #{convmixer_forward.5} parent=11 // pred_region
          _
        $region20: #{convmixer_forward.5} parent=11 // pred_fallthru
          _
        // Predicated region
        $region21: #{convmixer_forward.5} parent=11 // pred_check
          %p290 = pneg %p112
        $region22: #{convmixer_forward.5} parent=11 // pred_check_branch
          %292 = sbr.rel (%p290) target = $region24
        $region23: #{convmixer_forward.5} parent=11 // pred_region
          _
        $region24: #{convmixer_forward.5} parent=11 // pred_fallthru
          _
        // Predicated region
        $region25: #{convmixer_forward.5} parent=11 // pred_check
          %p293 = pneg %p133
        $region26: #{convmixer_forward.5} parent=11 // pred_check_branch
          %295 = sbr.rel (%p293) target = $region28
        $region27: #{convmixer_forward.5} parent=11 // pred_region
          _
        $region28: #{convmixer_forward.5} parent=11 // pred_fallthru
          _
        // Predicated region
        $region29: #{convmixer_forward.5} parent=11 // pred_check
          %p296 = pneg %p154
        $region30: #{convmixer_forward.5} parent=11 // pred_check_branch
          %298 = sbr.rel (%p296) target = $region32
        $region31: #{convmixer_forward.5} parent=11 // pred_region
          _
        $region32: #{convmixer_forward.5} parent=11 // pred_fallthru
          _
        // Predicated region
        $region33: #{convmixer_forward.5} parent=11 // pred_check
          %p299 = pneg %p175
        $region34: #{convmixer_forward.5} parent=11 // pred_check_branch
          %301 = sbr.rel (%p299) target = $region36
        $region35: #{convmixer_forward.5} parent=11 // pred_region
          _
        $region36: #{convmixer_forward.5} parent=11 // pred_fallthru
          _
        // Predicated region
        $region37: #{convmixer_forward.5} parent=11 // pred_check
          %p302 = pneg %p196
        $region38: #{convmixer_forward.5} parent=11 // pred_check_branch
          %304 = sbr.rel (%p302) target = $region40
        $region39: #{convmixer_forward.5} parent=11 // pred_region
          _
        $region40: #{convmixer_forward.5} parent=11 // pred_fallthru
          _
        // Predicated region
        $region41: #{convmixer_forward.5} parent=11 // pred_check
          %p305 = pneg %p217
        $region42: #{convmixer_forward.5} parent=11 // pred_check_branch
          %307 = sbr.rel (%p305) target = $region44
        $region43: #{convmixer_forward.5} parent=11 // pred_region
          _
        $region44: #{convmixer_forward.5} parent=11 // pred_fallthru
          _
      $region12: #{convmixer_forward.5} parent=5 // pred_fallthru
        _
      %p308 = scmp.lt.s32.totalorder %s23, 2
      // Predicated region
      $region45: #{convmixer_forward.5} parent=5 // pred_check
        %p309 = pneg %p308
      $region46: #{convmixer_forward.5} parent=5 // pred_check_branch
        %311 = sbr.rel (%p309) target = $region48
      $region47: #{convmixer_forward.5} parent=5 // pred_region
        // Predicated region
        $region49: #{convmixer_forward.5} parent=47 // pred_check
          %p312 = pneg %p43
        $region50: #{convmixer_forward.5} parent=47 // pred_check_branch
          %314 = sbr.rel (%p312) target = $region52
        $region51: #{convmixer_forward.5} parent=47 // pred_region
          %p315 = scmp.lt.s32.totalorder %s23, 1
          %s316 = scalar_select %p315, %s23, 1
          %s317 = smul.addr %s316, 4
          %s318 = smul.addr %s317, 4
          %s319 = scalar_lea.vmem %s0, %s318
        $region52: #{convmixer_forward.5} parent=47 // pred_fallthru
          _
      $region48: #{convmixer_forward.5} parent=5 // pred_fallthru
        _
      %p320 = scmp.le.s32.totalorder 1, %s23
      %p321 = scmp.lt.s32.totalorder %s23, 3
      %p322 = pnand %p320, %p321
      %p323 = pneg %p322
      // Predicated region
      $region53: #{convmixer_forward.5} parent=5 // pred_check
        _
      $region54: #{convmixer_forward.5} parent=5 // pred_check_branch
        %325 = sbr.rel (%p322) target = $region56
      $region55: #{convmixer_forward.5} parent=5 // pred_region
        %s326 = ssub.s32 %s23, 1
        %p327 = scmp.lt.s32.totalorder %s28, 1
        %s328 = scalar_select %p327, %s28, 1
        %s329 = smul.addr %s328, 4
        %s330 = smul.addr %s329, 4
        %s331 = scalar_lea.vmem %s0, %s330
        %p332 = pneg %p49
        %p333 = pneg %p46
        %p334 = pneg %p70
        %p335 = pneg %p67
        %p336 = pneg %p91
        %p337 = pneg %p88
        %p338 = pneg %p112
        %p339 = pneg %p109
        %p340 = pneg %p133
        %p341 = pneg %p130
        %p342 = pneg %p154
        %p343 = pneg %p151
        %p344 = pneg %p175
        %p345 = pneg %p172
        %p346 = pneg %p196
        %p347 = pneg %p193
        %p348 = pneg %p217
        %p349 = pneg %p214
        %p350 = pneg %p243
        %p351 = pneg %p240
        %s352 = sand.u32 %s230, 1
        %s353 = scalar_lea.sflag [#allocation5], %s352
        %s354 = sand.u32 %s230, 1
        %s355 = smul.addr %s354, 16
        %s356 = scalar_lea.vmem [#allocation4], %s355
        %p357 = pneg %p269
        %p358 = pneg %p266
        %s359 = sand.u32 %s256, 1
        %s360 = scalar_lea.sflag [#allocation7], %s359
        %s361 = sand.u32 %s256, 1
        %s362 = scalar_lea.vmem [#allocation6], %s361
        %p363 = scmp.lt.s32.totalorder %s28, 1
        %s364 = scalar_select %p363, %s28, 1
        %s365 = smul.addr %s364, 4
        %s366 = smul.addr %s365, 4
        %s367 = scalar_lea.vmem %s0, %s366
        %368 = vst [vmem:[#allocation2] sm:$0x3f] 0.0
        %369 = vst [vmem:[#allocation2 + $0x8] sm:$0x3f] 0.0
        %370 = vst [vmem:[#allocation2 + $0x10] sm:$0x3f] 0.0
        %371 = vst [vmem:[#allocation2 + $0x18] sm:$0x3f] 0.0
        %372 = vst [vmem:[#allocation2 + $0x20] sm:$0x3f] 0.0
        %373 = vst [vmem:[#allocation2 + $0x28] sm:$0x3f] 0.0
        %v374 = vld [vmem:[%s367] sm:$0xf]
        %v375 = vld [vmem:[%s367 + $0x4] sm:$0xf]
        %v376 = vld [vmem:[%s367 + $0x8] sm:$0xf]
        %v377 = vld [vmem:[%s367 + $0xc] sm:$0xf]
        %s378 = scalar_lea.vmem [#allocation2], 8
        %379 = vst [vmem:[%s378 + $0x1] sm:$0xf] %v374
        %380 = vst [vmem:[%s378 + $0x9] sm:$0xf] %v375
        %381 = vst [vmem:[%s378 + $0x11] sm:$0xf] %v376
        %382 = vst [vmem:[%s378 + $0x19] sm:$0xf] %v377
        %v383 = vld [vmem:[%s1] sm:$0xff]
        %v384 = vld [vmem:[%s1 + $0x8] sm:$0x1]
        %v385 = vld [vmem:[#allocation2] sm:$0xf]
        %v386 = vld [vmem:[#allocation2 + $0x8] sm:$0xf]
        %v387 = vld [vmem:[#allocation2 + $0x10] sm:$0xf]
        %v388 = vld [vmem:[#allocation2 + $0x18] sm:$0xf]
        %v389 = vperm.slane %v383, 0
        %v390 = vmul.f32 %v385, %v389
        %v391 = vmul.f32 %v386, %v389
        %v392 = vmul.f32 %v387, %v389
        %v393 = vmul.f32 %v388, %v389
        %v394 = vld [vmem:[#allocation2 + $0x1] sm:$0xf]
        %v395 = vld [vmem:[#allocation2 + $0x9] sm:$0xf]
        %v396 = vld [vmem:[#allocation2 + $0x11] sm:$0xf]
        %v397 = vld [vmem:[#allocation2 + $0x19] sm:$0xf]
        %v398 = vperm.slane %v383, 1
        %v399 = vmul.f32 %v394, %v398
        %v400 = vmul.f32 %v395, %v398
        %v401 = vmul.f32 %v396, %v398
        %v402 = vmul.f32 %v397, %v398
        %v403 = vadd.f32 %v390, %v399
        %v404 = vadd.f32 %v391, %v400
        %v405 = vadd.f32 %v392, %v401
        %v406 = vadd.f32 %v393, %v402
        %v407 = vld [vmem:[#allocation2 + $0x2] sm:$0xf]
        %v408 = vld [vmem:[#allocation2 + $0xa] sm:$0xf]
        %v409 = vld [vmem:[#allocation2 + $0x12] sm:$0xf]
        %v410 = vld [vmem:[#allocation2 + $0x1a] sm:$0xf]
        %v411 = vperm.slane %v383, 2
        %v412 = vmul.f32 %v407, %v411
        %v413 = vmul.f32 %v408, %v411
        %v414 = vmul.f32 %v409, %v411
        %v415 = vmul.f32 %v410, %v411
        %v416 = vadd.f32 %v403, %v412
        %v417 = vadd.f32 %v404, %v413
        %v418 = vadd.f32 %v405, %v414
        %v419 = vadd.f32 %v406, %v415
        %v420 = vld [vmem:[%s378] sm:$0xf]
        %v421 = vld [vmem:[%s378 + $0x8] sm:$0xf]
        %v422 = vld [vmem:[%s378 + $0x10] sm:$0xf]
        %v423 = vld [vmem:[%s378 + $0x18] sm:$0xf]
        %v424 = vperm.slane %v383, 3
        %v425 = vmul.f32 %v420, %v424
        %v426 = vmul.f32 %v421, %v424
        %v427 = vmul.f32 %v422, %v424
        %v428 = vmul.f32 %v423, %v424
        %v429 = vadd.f32 %v416, %v425
        %v430 = vadd.f32 %v417, %v426
        %v431 = vadd.f32 %v418, %v427
        %v432 = vadd.f32 %v419, %v428
        %v433 = vld [vmem:[%s378 + $0x1] sm:$0xf]
        %v434 = vld [vmem:[%s378 + $0x9] sm:$0xf]
        %v435 = vld [vmem:[%s378 + $0x11] sm:$0xf]
        %v436 = vld [vmem:[%s378 + $0x19] sm:$0xf]
        %v437 = vperm.slane %v383, 4
        %v438 = vmul.f32 %v433, %v437
        %v439 = vmul.f32 %v434, %v437
        %v440 = vmul.f32 %v435, %v437
        %v441 = vmul.f32 %v436, %v437
        %v442 = vadd.f32 %v429, %v438
        %v443 = vadd.f32 %v430, %v439
        %v444 = vadd.f32 %v431, %v440
        %v445 = vadd.f32 %v432, %v441
        %v446 = vld [vmem:[%s378 + $0x2] sm:$0xf]
        %v447 = vld [vmem:[%s378 + $0xa] sm:$0xf]
        %v448 = vld [vmem:[%s378 + $0x12] sm:$0xf]
        %v449 = vld [vmem:[%s378 + $0x1a] sm:$0xf]
        %v450 = vperm.slane %v383, 5
        %v451 = vmul.f32 %v446, %v450
        %v452 = vmul.f32 %v447, %v450
        %v453 = vmul.f32 %v448, %v450
        %v454 = vmul.f32 %v449, %v450
        %v455 = vadd.f32 %v442, %v451
        %v456 = vadd.f32 %v443, %v452
        %v457 = vadd.f32 %v444, %v453
        %v458 = vadd.f32 %v445, %v454
        %s459 = scalar_lea.vmem [#allocation2], 16
        %v460 = vld [vmem:[%s459] sm:$0xf]
        %v461 = vld [vmem:[%s459 + $0x8] sm:$0xf]
        %v462 = vld [vmem:[%s459 + $0x10] sm:$0xf]
        %v463 = vld [vmem:[%s459 + $0x18] sm:$0xf]
        %v464 = vperm.slane %v383, 6
        %v465 = vmul.f32 %v460, %v464
        %v466 = vmul.f32 %v461, %v464
        %v467 = vmul.f32 %v462, %v464
        %v468 = vmul.f32 %v463, %v464
        %v469 = vadd.f32 %v455, %v465
        %v470 = vadd.f32 %v456, %v466
        %v471 = vadd.f32 %v457, %v467
        %v472 = vadd.f32 %v458, %v468
        %v473 = vld [vmem:[%s459 + $0x1] sm:$0xf]
        %v474 = vld [vmem:[%s459 + $0x9] sm:$0xf]
        %v475 = vld [vmem:[%s459 + $0x11] sm:$0xf]
        %v476 = vld [vmem:[%s459 + $0x19] sm:$0xf]
        %v477 = vperm.slane %v383, 7
        %v478 = vmul.f32 %v473, %v477
        %v479 = vmul.f32 %v474, %v477
        %v480 = vmul.f32 %v475, %v477
        %v481 = vmul.f32 %v476, %v477
        %v482 = vadd.f32 %v469, %v478
        %v483 = vadd.f32 %v470, %v479
        %v484 = vadd.f32 %v471, %v480
        %v485 = vadd.f32 %v472, %v481
        %v486 = vld [vmem:[%s459 + $0x2] sm:$0xf]
        %v487 = vld [vmem:[%s459 + $0xa] sm:$0xf]
        %v488 = vld [vmem:[%s459 + $0x12] sm:$0xf]
        %v489 = vld [vmem:[%s459 + $0x1a] sm:$0xf]
        %v490 = vperm.slane %v384, 0
        %v491 = vmul.f32 %v486, %v490
        %v492 = vmul.f32 %v487, %v490
        %v493 = vmul.f32 %v488, %v490
        %v494 = vmul.f32 %v489, %v490
        %v495 = vadd.f32 %v482, %v491
        %v496 = vadd.f32 %v483, %v492
        %v497 = vadd.f32 %v484, %v493
        %v498 = vadd.f32 %v485, %v494
        %v499 = vld [vmem:[%s2] sm:$0x1]
        %v501 = vperm.slane %v499, 0
        %v503 = vadd.f32 %v495, %v501
        %v504 = vadd.f32 %v496, %v501
        %v505 = vadd.f32 %v497, %v501
        %v506 = vadd.f32 %v498, %v501
        %v507 = vmul.f32 %v503, 0.5
        %v508 = vmul.f32 %v504, 0.5
        %v509 = vmul.f32 %v505, 0.5
        %v510 = vmul.f32 %v506, 0.5
        %v511 = vmul.f32 %v503, 0.70710677
        %v512 = vmul.f32 %v504, 0.70710677
        %v513 = vmul.f32 %v505, 0.70710677
        %v514 = vmul.f32 %v506, 0.70710677
        %vm515 = vcmp.ge.f32.partialorder %v511, 0.0
        %vm516 = vcmp.ge.f32.partialorder %v512, 0.0
        %vm517 = vcmp.ge.f32.partialorder %v513, 0.0
        %vm518 = vcmp.ge.f32.partialorder %v514, 0.0
        %v519 = vsel %vm515, 1.0, -1.0
        %v520 = vsel %vm516, 1.0, -1.0
        %v521 = vsel %vm517, 1.0, -1.0
        %v522 = vsel %vm518, 1.0, -1.0
        %v523 = vand.u32 2147483647, %v511
        %v524 = vand.u32 2147483647, %v512
        %v525 = vand.u32 2147483647, %v513
        %v526 = vand.u32 2147483647, %v514
        %v527 = vmul.f32 %v523, 0.3275911
        %v528 = vmul.f32 %v524, 0.3275911
        %v529 = vmul.f32 %v525, 0.3275911
        %v530 = vmul.f32 %v526, 0.3275911
        %v531 = vadd.f32 %v527, 1.0
        %v532 = vadd.f32 %v528, 1.0
        %v533 = vadd.f32 %v529, 1.0
        %v534 = vadd.f32 %v530, 1.0
        %v535 = vrcp.pop %v531
        %v536 = vrcp.pop %v532
        %v537 = vrcp.pop %v533
        %v538 = vrcp.pop %v534
        %v539 = vmul.f32 %v535, 1.0614054
        %v540 = vmul.f32 %v536, 1.0614054
        %v541 = vmul.f32 %v537, 1.0614054
        %v542 = vmul.f32 %v538, 1.0614054
        %v543 = vadd.f32 %v539, -1.4531521
        %v544 = vadd.f32 %v540, -1.4531521
        %v545 = vadd.f32 %v541, -1.4531521
        %v546 = vadd.f32 %v542, -1.4531521
        %v547 = vmul.f32 %v543, %v535
        %v548 = vmul.f32 %v544, %v536
        %v549 = vmul.f32 %v545, %v537
        %v550 = vmul.f32 %v546, %v538
        %v551 = vadd.f32 %v547, 1.4214138
        %v552 = vadd.f32 %v548, 1.4214138
        %v553 = vadd.f32 %v549, 1.4214138
        %v554 = vadd.f32 %v550, 1.4214138
        %v555 = vmul.f32 %v551, %v535
        %v556 = vmul.f32 %v552, %v536
        %v557 = vmul.f32 %v553, %v537
        %v558 = vmul.f32 %v554, %v538
        %v559 = vadd.f32 %v555, -0.28449672
        %v560 = vadd.f32 %v556, -0.28449672
        %v561 = vadd.f32 %v557, -0.28449672
        %v562 = vadd.f32 %v558, -0.28449672
        %v563 = vmul.f32 %v559, %v535
        %v564 = vmul.f32 %v560, %v536
        %v565 = vmul.f32 %v561, %v537
        %v566 = vmul.f32 %v562, %v538
        %v567 = vadd.f32 %v563, 0.2548296
        %v568 = vadd.f32 %v564, 0.2548296
        %v569 = vadd.f32 %v565, 0.2548296
        %v570 = vadd.f32 %v566, 0.2548296
        %v571 = vmul.f32 %v567, %v535
        %v572 = vmul.f32 %v568, %v536
        %v573 = vmul.f32 %v569, %v537
        %v574 = vmul.f32 %v570, %v538
        %v575 = vsub.f32 0.0, %v523
        %v576 = vsub.f32 0.0, %v524
        %v577 = vsub.f32 0.0, %v525
        %v578 = vsub.f32 0.0, %v526
        %v579 = vmul.f32 %v575, %v523
        %v580 = vmul.f32 %v576, %v524
        %v581 = vmul.f32 %v577, %v525
        %v582 = vmul.f32 %v578, %v526
        %v583 = vmul.f32 %v579, 1.442695
        %v584 = vpow.pop %v583
        %v585 = vmul.f32 %v580, 1.442695
        %v586 = vpow.pop %v585
        %v587 = vmul.f32 %v581, 1.442695
        %v588 = vpow.pop %v587
        %v589 = vmul.f32 %v582, 1.442695
        %v590 = vpow.pop %v589
        %v591 = vmul.f32 %v571, %v584
        %v592 = vmul.f32 %v572, %v586
        %v593 = vmul.f32 %v573, %v588
        %v594 = vmul.f32 %v574, %v590
        %v595 = vsub.f32 1.0, %v591
        %v596 = vsub.f32 1.0, %v592
        %v597 = vsub.f32 1.0, %v593
        %v598 = vsub.f32 1.0, %v594
        %v599 = vmul.f32 %v519, %v595
        %v600 = vmul.f32 %v520, %v596
        %v601 = vmul.f32 %v521, %v597
        %v602 = vmul.f32 %v522, %v598
        %v603 = vadd.f32 %v599, 1.0
        %v604 = vadd.f32 %v600, 1.0
        %v605 = vadd.f32 %v601, 1.0
        %v606 = vadd.f32 %v602, 1.0
        %v607 = vmul.f32 %v507, %v603
        %v608 = vmul.f32 %v508, %v604
        %v609 = vmul.f32 %v509, %v605
        %v610 = vmul.f32 %v510, %v606
        %v611 = vld [vmem:[%s3] sm:$0x1]
        %v613 = vperm.slane %v611, 0
        %v615 = vmul.f32 %v607, %v613
        %v616 = vmul.f32 %v608, %v613
        %v617 = vmul.f32 %v609, %v613
        %v618 = vmul.f32 %v610, %v613
        %v619 = vld [vmem:[%s4] sm:$0x1]
        %v621 = vperm.slane %v619, 0
        %v623 = vadd.f32 %v615, %v621
        %v624 = vadd.f32 %v616, %v621
        %v625 = vadd.f32 %v617, %v621
        %v626 = vadd.f32 %v618, %v621
        %v627 = vadd.f32 %v623, %v374
        %v628 = vadd.f32 %v624, %v375
        %v629 = vadd.f32 %v625, %v376
        %v630 = vadd.f32 %v626, %v377
        %v631 = vpack.c.bf16 %v627, %v627
        %632 = vst [vmem:[#allocation3] sm:$0x3] %v631
        %v633 = vpack.c.bf16 %v628, %v628
        %v635 = vrot.slane %v633, 6
        %637 = vst [vmem:[#allocation3] sm:$0xc] %v635
        %v638 = vpack.c.bf16 %v629, %v629
        %639 = vst [vmem:[#allocation3 + $0x4] sm:$0x3] %v638
        %v640 = vpack.c.bf16 %v630, %v630
        %v642 = vrot.slane %v640, 6
        %644 = vst [vmem:[#allocation3 + $0x4] sm:$0xc] %v642
        %v645 = vld [vmem:[#allocation3] sm:$0xf]
        %v646 = vld [vmem:[#allocation3 + $0x4] sm:$0xf]
        %v647 = vld [vmem:[%s5] sm:$0xf]
        %v648 = vld [vmem:[%s5 + $0x4] sm:$0xf]
        %v649 = vld [vmem:[%s5 + $0x8] sm:$0xf]
        %v650 = vld [vmem:[%s5 + $0xc] sm:$0xf]
        %v651 = vld [vmem:[%s5 + $0x10] sm:$0xf]
        %v652 = vld [vmem:[%s5 + $0x14] sm:$0xf]
        %v653 = vld [vmem:[%s5 + $0x18] sm:$0xf]
        %v654 = vld [vmem:[%s5 + $0x1c] sm:$0xf]
        %v655 = vld [vmem:[%s5 + $0x20] sm:$0xf]
        %v656 = vld [vmem:[%s5 + $0x24] sm:$0xf]
        %v657 = vld [vmem:[%s5 + $0x28] sm:$0xf]
        %v658 = vld [vmem:[%s5 + $0x2c] sm:$0xf]
        %v659 = vld [vmem:[%s5 + $0x30] sm:$0xf]
        %v660 = vld [vmem:[%s5 + $0x34] sm:$0xf]
        %v661 = vld [vmem:[%s5 + $0x38] sm:$0xf]
        %v662 = vld [vmem:[%s5 + $0x3c] sm:$0xf]
        %v663 = vld [vmem:[%s6] sm:$0x1]
        %v665 = vperm.slane %v663, 0
        %v669 = vunpack.c.l.b16 %v645
        %v670 = vunpack.c.l.b16 %v646
        %v671 = vpack.c.b16 %v670, %v669
        %v689 = vunpack.c.l.b16 %v647
        %v690 = vunpack.c.l.b16 %v648
        %v691 = vunpack.c.l.b16 %v649
        %v692 = vunpack.c.l.b16 %v650
        %v693 = vunpack.c.l.b16 %v651
        %v694 = vunpack.c.l.b16 %v652
        %v695 = vunpack.c.l.b16 %v653
        %v696 = vunpack.c.l.b16 %v654
        %v697 = vunpack.c.l.b16 %v655
        %v698 = vunpack.c.l.b16 %v656
        %v699 = vunpack.c.l.b16 %v657
        %v700 = vunpack.c.l.b16 %v658
        %v701 = vunpack.c.l.b16 %v659
        %v702 = vunpack.c.l.b16 %v660
        %v703 = vunpack.c.l.b16 %v661
        %v704 = vunpack.c.l.b16 %v662
        %v705 = vpack.c.b16 %v690, %v689
        %v706 = vpack.c.b16 %v692, %v691
        %v707 = vpack.c.b16 %v694, %v693
        %v708 = vpack.c.b16 %v696, %v695
        %v709 = vpack.c.b16 %v698, %v697
        %v710 = vpack.c.b16 %v700, %v699
        %v711 = vpack.c.b16 %v702, %v701
        %v712 = vpack.c.b16 %v704, %v703
        %721 = vmatpush.bf16.msra.mxu0 %v712
        %722 = vmatpush.bf16.msra.mxu0 %v711
        %723 = vmatpush.bf16.msra.mxu0 %v710
        %724 = vmatpush.bf16.msra.mxu0 %v709
        %725 = vmatpush.bf16.msra.mxu0 %v708
        %726 = vmatpush.bf16.msra.mxu0 %v707
        %727 = vmatpush.bf16.msra.mxu0 %v706
        %728 = vmatpush.bf16.msra.mxu0 %v705
        %729 = vmatmul.bf16.gmra.mxu0 %v671
        %v730 = vpop.f32.mrf.mxu0
        %v731 = vadd.f32 %v665, %v730
        %v732 = vpop.f32.mrf.mxu0
        %v733 = vadd.f32 %v665, %v732
        %734 = vdwg.mxu0
        %v735 = vmul.f32 %v731, 0.5
        %v736 = vmul.f32 %v733, 0.5
        %v737 = vmul.f32 %v731, 0.70710677
        %v738 = vmul.f32 %v733, 0.70710677
        %vm739 = vcmp.ge.f32.partialorder %v737, 0.0
        %vm740 = vcmp.ge.f32.partialorder %v738, 0.0
        %v741 = vsel %vm739, 1.0, -1.0
        %v742 = vsel %vm740, 1.0, -1.0
        %v743 = vand.u32 2147483647, %v737
        %v744 = vand.u32 2147483647, %v738
        %v745 = vmul.f32 %v743, 0.3275911
        %v746 = vmul.f32 %v744, 0.3275911
        %v747 = vadd.f32 %v745, 1.0
        %v748 = vadd.f32 %v746, 1.0
        %v749 = vrcp.pop %v747
        %v750 = vrcp.pop %v748
        %v751 = vmul.f32 %v749, 1.0614054
        %v752 = vmul.f32 %v750, 1.0614054
        %v753 = vadd.f32 %v751, -1.4531521
        %v754 = vadd.f32 %v752, -1.4531521
        %v755 = vmul.f32 %v753, %v749
        %v756 = vmul.f32 %v754, %v750
        %v757 = vadd.f32 %v755, 1.4214138
        %v758 = vadd.f32 %v756, 1.4214138
        %v759 = vmul.f32 %v757, %v749
        %v760 = vmul.f32 %v758, %v750
        %v761 = vadd.f32 %v759, -0.28449672
        %v762 = vadd.f32 %v760, -0.28449672
        %v763 = vmul.f32 %v761, %v749
        %v764 = vmul.f32 %v762, %v750
        %v765 = vadd.f32 %v763, 0.2548296
        %v766 = vadd.f32 %v764, 0.2548296
        %v767 = vmul.f32 %v765, %v749
        %v768 = vmul.f32 %v766, %v750
        %v769 = vsub.f32 0.0, %v743
        %v770 = vsub.f32 0.0, %v744
        %v771 = vmul.f32 %v769, %v743
        %v772 = vmul.f32 %v770, %v744
        %v773 = vmul.f32 %v771, 1.442695
        %v774 = vpow.pop %v773
        %v775 = vmul.f32 %v772, 1.442695
        %v776 = vpow.pop %v775
        %v777 = vmul.f32 %v767, %v774
        %v778 = vmul.f32 %v768, %v776
        %v779 = vsub.f32 1.0, %v777
        %v780 = vsub.f32 1.0, %v778
        %v781 = vmul.f32 %v741, %v779
        %v782 = vmul.f32 %v742, %v780
        %v783 = vadd.f32 %v781, 1.0
        %v784 = vadd.f32 %v782, 1.0
        %v785 = vmul.f32 %v735, %v783
        %v786 = vmul.f32 %v736, %v784
        %v787 = vld [vmem:[%s7] sm:$0x1]
        %v789 = vperm.slane %v787, 0
        %v791 = vmul.f32 %v785, %v789
        %v792 = vmul.f32 %v786, %v789
        %v793 = vld [vmem:[%s8] sm:$0x1]
        %v795 = vperm.slane %v793, 0
        %v797 = vadd.f32 %v791, %v795
        %v798 = vadd.f32 %v792, %v795
        %799 = vst [vmem:[%s356] sm:$0xff] %v797
        %800 = vst [vmem:[%s356 + $0x8] sm:$0xff] %v798
        %v801 = vadd.f32 %v797, %v798
        %v802 = vrot.slane %v801, 4
        %v803 = vadd.f32 %v801, %v802
        %v804 = vrot.slane %v803, 2
        %v805 = vadd.f32 %v803, %v804
        %v806 = vrot.slane %v805, 1
        %v807 = vadd.f32 %v805, %v806
        %v808 = vrcp.pop 16.0
        %v809 = vmul.f32 16.0, %v808
        %v810 = vsub.f32 1.0, %v809
        %v811 = vmul.f32 %v808, %v810
        %v812 = vadd.f32 %v808, %v811
        %vm813 = vweird.f32 %v808
        %v814 = vsel %vm813, %v808, %v812
        %v815 = vmul.f32 %v807, %v814
        %816 = vst [vmem:[%s362] sm:$0x1] %v815
        %s817 = sand.u32 %s230, 1
        %s818 = scalar_lea.sflag [#allocation5], %s817
        %s819 = sand.u32 %s230, 1
        %s820 = smul.addr %s819, 16
        %s821 = scalar_lea.vmem [#allocation4], %s820
        %s822 = sand.u32 %s256, 1
        %s823 = scalar_lea.sflag [#allocation7], %s822
        %s824 = sand.u32 %s256, 1
        %s825 = scalar_lea.vmem [#allocation6], %s824
        // Predicated region
        $region57: #{convmixer_forward.5} parent=55 // pred_check
          %p826 = pneg %p240
        $region58: #{convmixer_forward.5} parent=55 // pred_check_branch
          %828 = sbr.rel (%p826) target = $region60
        $region59: #{convmixer_forward.5} parent=55 // pred_region
          %830 = vsyncadd %s818, 0
          %s831 = smul.addr %s28, 2
          %s832 = smul.addr %s831, 8
          %s833 = scalar_lea.hbm %s9, %s832
          %s834 = sshll.u32 %s821, 4
          %s835 = int_to_ptr.vmem [resolvable:$true] %s834
          %s836 = sshll.u32 %s833, 4
          %s837 = int_to_ptr.hbm [resolvable:$true] %s836
          %842 = dma.vmem_to_hbm [thread:$0]  %s835, 256, %s837, %s818, 128, 128, 8
        $region60: #{convmixer_forward.5} parent=55 // pred_fallthru
          _
        // Predicated region
        $region61: #{convmixer_forward.5} parent=55 // pred_check
          %p843 = pneg %p266
        $region62: #{convmixer_forward.5} parent=55 // pred_check_branch
          %845 = sbr.rel (%p843) target = $region64
        $region63: #{convmixer_forward.5} parent=55 // pred_region
          %847 = vsyncadd %s823, 0
          %s848 = scalar_lea.hbm %s10, %s28
          %s850 = sshll.u32 %s825, 4
          %s851 = int_to_ptr.vmem [resolvable:$true] %s850
          %s852 = sshll.u32 %s848, 4
          %s853 = int_to_ptr.hbm [resolvable:$true] %s852
          %855 = dma.vmem_to_hbm [thread:$0]  %s851, 16, %s853, %s823
        $region64: #{convmixer_forward.5} parent=55 // pred_fallthru
          _
      $region56: #{convmixer_forward.5} parent=5 // pred_fallthru
        _
      %p856 = scmp.le.s32.totalorder 2, %s23
      // Predicated region
      $region65: #{convmixer_forward.5} parent=5 // pred_check
        %p857 = pneg %p856
      $region66: #{convmixer_forward.5} parent=5 // pred_check_branch
        %859 = sbr.rel (%p857) target = $region68
      $region67: #{convmixer_forward.5} parent=5 // pred_region
        %s860 = ssub.s32 %s23, 2
        // Predicated region
        $region69: #{convmixer_forward.5} parent=67 // pred_check
          %p861 = pneg %p246
        $region70: #{convmixer_forward.5} parent=67 // pred_check_branch
          %863 = sbr.rel (%p861) target = $region72
        $region71: #{convmixer_forward.5} parent=67 // pred_region
          %s864 = sand.u32 %s231, 1
          %s865 = scalar_lea.sflag [#allocation5], %s864
          %s866 = sand.u32 %s231, 1
          %s867 = smul.addr %s866, 16
          %s868 = scalar_lea.vmem [#allocation4], %s867
          %870 = dma.done %s865, 256
        $region72: #{convmixer_forward.5} parent=67 // pred_fallthru
          _
        // Predicated region
        $region73: #{convmixer_forward.5} parent=67 // pred_check
          %p871 = pneg %p272
        $region74: #{convmixer_forward.5} parent=67 // pred_check_branch
          %873 = sbr.rel (%p871) target = $region76
        $region75: #{convmixer_forward.5} parent=67 // pred_region
          %s874 = sand.u32 %s257, 1
          %s875 = scalar_lea.sflag [#allocation7], %s874
          %s876 = sand.u32 %s257, 1
          %s877 = scalar_lea.vmem [#allocation6], %s876
          %879 = dma.done %s875, 16
        $region76: #{convmixer_forward.5} parent=67 // pred_fallthru
          _
      $region68: #{convmixer_forward.5} parent=5 // pred_fallthru
        _
    $region6: #{convmixer_forward.5} parent=1 // loop_footer
      %s27 = sadd.s32 1, %s23
    $region7: #{convmixer_forward.5} parent=1 // loop_footer_branch
      %22 = sbr.rel target = $region3
    $region8: #{convmixer_forward.5} parent=1 // loop_exit
      _
    %880 = vsyncpa [#allocation5], 1
    %s881 = scalar_lea.sflag [#allocation5], 1
    %882 = vsyncpa %s881, 1
    %883 = vsyncpa [#allocation7], 1
    %s884 = scalar_lea.sflag [#allocation7], 1
    %885 = vsyncpa %s884, 1

// kernel: convmixer_forward.4
$region0: #{convmixer_forward.4}
  #allocation0 [shape = 'u32[]', space=smem, size = 0x4, offset = 0x4, fixed_abs, tag = 'smem constant byte address 0x4 - core index']
  #allocation1 [shape = 'u32[72,128]{1,0:T(1,128)}', space=vmem, size = 0x9000, scoped, tag = 'internal scratch']
  #allocation2 [shape = 'f32[6,6,128]{2,1,0:T(8,128)}', space=vmem, size = 0x6000, scoped, tag = 'scratch operand']
  #allocation3 [shape = 'bf16[16,128]{1,0:T(8,128)(2,1)}', space=vmem, size = 0x1000, scoped, tag = 'scratch operand']
  %s0 = inlined_call_operand.vmem [shape: f32[2,4,4,128], index: 0, kind: input, shape index: {}]
  %s1 = inlined_call_operand.vmem [shape: f32[9,128], index: 1, kind: input, shape index: {}]
  %s2 = inlined_call_operand.vmem [shape: f32[1,128], index: 2, kind: input, shape index: {}]
  %s3 = inlined_call_operand.vmem [shape: f32[1,128], index: 3, kind: input, shape index: {}]
  %s4 = inlined_call_operand.vmem [shape: f32[1,128], index: 4, kind: input, shape index: {}]
  %s5 = inlined_call_operand.vmem [shape: bf16[128,128], index: 5, kind: input, shape index: {}]
  %s6 = inlined_call_operand.vmem [shape: f32[1,128], index: 6, kind: input, shape index: {}]
  %s7 = inlined_call_operand.vmem [shape: f32[1,128], index: 7, kind: input, shape index: {}]
  %s8 = inlined_call_operand.vmem [shape: f32[1,128], index: 8, kind: input, shape index: {}]
  %s9 = inlined_call_operand.vmem [shape: f32[2,16,128], index: 9, kind: output, shape index: {0}]
  %s10 = inlined_call_operand.hbm [shape: f32[2,1,128], index: 10, kind: output, shape index: {1}]
  %11 = xla_tuple %s9, %s10
  %s12 = sld [smem:[#allocation0]]
  $region77: #{convmixer_forward.4} parent=0
    _
  %s14 = ssub.s32 1, %s12
  %s15 = scalar_select 0, %s14, %s12
  $region1: #{convmixer_forward.4} parent=0
    #allocation4 [shape = 'u8[1024]{0}', space=vmem, size = 0x400, scoped, tag = 'output window, operand 1']
    #allocation5 [shape = 's32[2]{0}', space=sflag, size = 0x8, scoped, tag = 'scoped memory for convmixer_forward.4']
    %16 = vsyncpa [#allocation5], 0
    %s17 = scalar_lea.sflag [#allocation5], 1
    %18 = vsyncpa %s17, 0
    loop: start=0, step=1, limit=4
    $region2: #{convmixer_forward.4} parent=1 // loop_pre_header
      _
    $region3: #{convmixer_forward.4} parent=1 // loop_header
      %s20 = sphi 0, %s24
      %p21 = scmp.ge.s32.totalorder %s20, 4
      %s30 = sphi 0, %s32
      %s33 = sphi 0, %s30
      %s34 = sphi 0, %s33
      %s50 = sphi 0, %s34
      %s54 = sphi 0, %s54
      %s56 = sphi 0, %s54
      %s57 = sphi 0, %s56
      %s71 = sphi 0, %s57
      %s75 = sphi 0, %s75
      %s77 = sphi 0, %s75
      %s78 = sphi 0, %s77
      %s92 = sphi 0, %s78
      %s96 = sphi 0, %s96
      %s98 = sphi 0, %s96
      %s99 = sphi 0, %s98
      %s113 = sphi 0, %s99
      %s117 = sphi 0, %s117
      %s119 = sphi 0, %s117
      %s120 = sphi 0, %s119
      %s134 = sphi 0, %s120
      %s138 = sphi 0, %s138
      %s140 = sphi 0, %s138
      %s141 = sphi 0, %s140
      %s155 = sphi 0, %s141
      %s159 = sphi 0, %s159
      %s161 = sphi 0, %s159
      %s162 = sphi 0, %s161
      %s176 = sphi 0, %s162
      %s180 = sphi 0, %s180
      %s182 = sphi 0, %s180
      %s183 = sphi 0, %s182
      %s197 = sphi 0, %s183
      %s201 = sphi 0, %s201
      %s203 = sphi 0, %s201
      %s204 = sphi 0, %s203
      %s218 = sphi 0, %s204
      %s224 = sphi 0, %s226
      %s227 = sphi 0, %s224
      %s228 = sphi 0, %s227
      %s244 = sphi 0, %s228
      %s250 = sphi 0, %s252
      %s253 = sphi 0, %s250
      %s254 = sphi 0, %s253
      %s270 = sphi 0, %s254
    $region4: #{convmixer_forward.4} parent=1 // loop_header_branch
      %23 = sbr.rel (%p21) target = $region8
    $region5: #{convmixer_forward.4} parent=1 // loop_body
      %s25 = ssub.s32 %s20, 1
      %s26 = ssub.s32 %s20, 2
      %s27 = sadd.s32 %s20, 1
      %s28 = ssub.s32 %s20, %s27
      %p29 = scmp.eq.s32.totalorder %s28, 0
      %s31 = sadd.s32 %s30, 1
      %s32 = scalar_select %p29, %s30, %s31
      %p35 = pneg %p29
      %p36 = scmp.eq.s32.totalorder %s20, 1
      %p37 = por %p35, %p36
      %p38 = scmp.ne.s32.totalorder %s30, %s33
      %p39 = scmp.eq.s32.totalorder %s20, 0
      %p40 = por %p38, %p39
      %p41 = scmp.ne.s32.totalorder %s30, %s33
      %p42 = scmp.eq.s32.totalorder %s25, 1
      %p43 = por %p41, %p42
      %p44 = scmp.ne.s32.totalorder %s33, %s34
      %p45 = scmp.eq.s32.totalorder %s25, 0
      %p46 = por %p44, %p45
      %p47 = scmp.ne.s32.totalorder %s33, %s34
      %p48 = scmp.eq.s32.totalorder %s26, 1
      %p49 = por %p47, %p48
      %p51 = scmp.ne.s32.totalorder %s34, %s50
      %p52 = scmp.eq.s32.totalorder %s26, 0
      %p53 = por %p51, %p52
      %s55 = sadd.s32 %s54, 1
      %p58 = scmp.eq.s32.totalorder %s20, 1
      %p59 = scmp.ne.s32.totalorder %s54, %s56
      %p60 = scmp.eq.s32.totalorder %s20, 0
      %p61 = por %p59, %p60
      %p62 = scmp.ne.s32.totalorder %s54, %s56
      %p63 = scmp.eq.s32.totalorder %s25, 1
      %p64 = por %p62, %p63
      %p65 = scmp.ne.s32.totalorder %s56, %s57
      %p66 = scmp.eq.s32.totalorder %s25, 0
      %p67 = por %p65, %p66
      %p68 = scmp.ne.s32.totalorder %s56, %s57
      %p69 = scmp.eq.s32.totalorder %s26, 1
      %p70 = por %p68, %p69
      %p72 = scmp.ne.s32.totalorder %s57, %s71
      %p73 = scmp.eq.s32.totalorder %s26, 0
      %p74 = por %p72, %p73
      %s76 = sadd.s32 %s75, 1
      %p79 = scmp.eq.s32.totalorder %s20, 1
      %p80 = scmp.ne.s32.totalorder %s75, %s77
      %p81 = scmp.eq.s32.totalorder %s20, 0
      %p82 = por %p80, %p81
      %p83 = scmp.ne.s32.totalorder %s75, %s77
      %p84 = scmp.eq.s32.totalorder %s25, 1
      %p85 = por %p83, %p84
      %p86 = scmp.ne.s32.totalorder %s77, %s78
      %p87 = scmp.eq.s32.totalorder %s25, 0
      %p88 = por %p86, %p87
      %p89 = scmp.ne.s32.totalorder %s77, %s78
      %p90 = scmp.eq.s32.totalorder %s26, 1
      %p91 = por %p89, %p90
      %p93 = scmp.ne.s32.totalorder %s78, %s92
      %p94 = scmp.eq.s32.totalorder %s26, 0
      %p95 = por %p93, %p94
      %s97 = sadd.s32 %s96, 1
      %p100 = scmp.eq.s32.totalorder %s20, 1
      %p101 = scmp.ne.s32.totalorder %s96, %s98
      %p102 = scmp.eq.s32.totalorder %s20, 0
      %p103 = por %p101, %p102
      %p104 = scmp.ne.s32.totalorder %s96, %s98
      %p105 = scmp.eq.s32.totalorder %s25, 1
      %p106 = por %p104, %p105
      %p107 = scmp.ne.s32.totalorder %s98, %s99
      %p108 = scmp.eq.s32.totalorder %s25, 0
      %p109 = por %p107, %p108
      %p110 = scmp.ne.s32.totalorder %s98, %s99
      %p111 = scmp.eq.s32.totalorder %s26, 1
      %p112 = por %p110, %p111
      %p114 = scmp.ne.s32.totalorder %s99, %s113
      %p115 = scmp.eq.s32.totalorder %s26, 0
      %p116 = por %p114, %p115
      %s118 = sadd.s32 %s117, 1
      %p121 = scmp.eq.s32.totalorder %s20, 1
      %p122 = scmp.ne.s32.totalorder %s117, %s119
      %p123 = scmp.eq.s32.totalorder %s20, 0
      %p124 = por %p122, %p123
      %p125 = scmp.ne.s32.totalorder %s117, %s119
      %p126 = scmp.eq.s32.totalorder %s25, 1
      %p127 = por %p125, %p126
      %p128 = scmp.ne.s32.totalorder %s119, %s120
      %p129 = scmp.eq.s32.totalorder %s25, 0
      %p130 = por %p128, %p129
      %p131 = scmp.ne.s32.totalorder %s119, %s120
      %p132 = scmp.eq.s32.totalorder %s26, 1
      %p133 = por %p131, %p132
      %p135 = scmp.ne.s32.totalorder %s120, %s134
      %p136 = scmp.eq.s32.totalorder %s26, 0
      %p137 = por %p135, %p136
      %s139 = sadd.s32 %s138, 1
      %p142 = scmp.eq.s32.totalorder %s20, 1
      %p143 = scmp.ne.s32.totalorder %s138, %s140
      %p144 = scmp.eq.s32.totalorder %s20, 0
      %p145 = por %p143, %p144
      %p146 = scmp.ne.s32.totalorder %s138, %s140
      %p147 = scmp.eq.s32.totalorder %s25, 1
      %p148 = por %p146, %p147
      %p149 = scmp.ne.s32.totalorder %s140, %s141
      %p150 = scmp.eq.s32.totalorder %s25, 0
      %p151 = por %p149, %p150
      %p152 = scmp.ne.s32.totalorder %s140, %s141
      %p153 = scmp.eq.s32.totalorder %s26, 1
      %p154 = por %p152, %p153
      %p156 = scmp.ne.s32.totalorder %s141, %s155
      %p157 = scmp.eq.s32.totalorder %s26, 0
      %p158 = por %p156, %p157
      %s160 = sadd.s32 %s159, 1
      %p163 = scmp.eq.s32.totalorder %s20, 1
      %p164 = scmp.ne.s32.totalorder %s159, %s161
      %p165 = scmp.eq.s32.totalorder %s20, 0
      %p166 = por %p164, %p165
      %p167 = scmp.ne.s32.totalorder %s159, %s161
      %p168 = scmp.eq.s32.totalorder %s25, 1
      %p169 = por %p167, %p168
      %p170 = scmp.ne.s32.totalorder %s161, %s162
      %p171 = scmp.eq.s32.totalorder %s25, 0
      %p172 = por %p170, %p171
      %p173 = scmp.ne.s32.totalorder %s161, %s162
      %p174 = scmp.eq.s32.totalorder %s26, 1
      %p175 = por %p173, %p174
      %p177 = scmp.ne.s32.totalorder %s162, %s176
      %p178 = scmp.eq.s32.totalorder %s26, 0
      %p179 = por %p177, %p178
      %s181 = sadd.s32 %s180, 1
      %p184 = scmp.eq.s32.totalorder %s20, 1
      %p185 = scmp.ne.s32.totalorder %s180, %s182
      %p186 = scmp.eq.s32.totalorder %s20, 0
      %p187 = por %p185, %p186
      %p188 = scmp.ne.s32.totalorder %s180, %s182
      %p189 = scmp.eq.s32.totalorder %s25, 1
      %p190 = por %p188, %p189
      %p191 = scmp.ne.s32.totalorder %s182, %s183
      %p192 = scmp.eq.s32.totalorder %s25, 0
      %p193 = por %p191, %p192
      %p194 = scmp.ne.s32.totalorder %s182, %s183
      %p195 = scmp.eq.s32.totalorder %s26, 1
      %p196 = por %p194, %p195
      %p198 = scmp.ne.s32.totalorder %s183, %s197
      %p199 = scmp.eq.s32.totalorder %s26, 0
      %p200 = por %p198, %p199
      %s202 = sadd.s32 %s201, 1
      %p205 = scmp.eq.s32.totalorder %s20, 1
      %p206 = scmp.ne.s32.totalorder %s201, %s203
      %p207 = scmp.eq.s32.totalorder %s20, 0
      %p208 = por %p206, %p207
      %p209 = scmp.ne.s32.totalorder %s201, %s203
      %p210 = scmp.eq.s32.totalorder %s25, 1
      %p211 = por %p209, %p210
      %p212 = scmp.ne.s32.totalorder %s203, %s204
      %p213 = scmp.eq.s32.totalorder %s25, 0
      %p214 = por %p212, %p213
      %p215 = scmp.ne.s32.totalorder %s203, %s204
      %p216 = scmp.eq.s32.totalorder %s26, 1
      %p217 = por %p215, %p216
      %p219 = scmp.ne.s32.totalorder %s204, %s218
      %p220 = scmp.eq.s32.totalorder %s26, 0
      %p221 = por %p219, %p220
      %s222 = ssub.s32 %s20, %s27
      %p223 = scmp.eq.s32.totalorder %s222, 0
      %s225 = sadd.s32 %s224, 1
      %s226 = scalar_select %p223, %s224, %s225
      %p229 = pneg %p223
      %p230 = scmp.eq.s32.totalorder %s20, 1
      %p231 = por %p229, %p230
      %p232 = scmp.ne.s32.totalorder %s224, %s227
      %p233 = scmp.eq.s32.totalorder %s20, 0
      %p234 = por %p232, %p233
      %p235 = scmp.ne.s32.totalorder %s224, %s227
      %p236 = scmp.eq.s32.totalorder %s25, 1
      %p237 = por %p235, %p236
      %p238 = scmp.ne.s32.totalorder %s227, %s228
      %p239 = scmp.eq.s32.totalorder %s25, 0
      %p240 = por %p238, %p239
      %p241 = scmp.ne.s32.totalorder %s227, %s228
      %p242 = scmp.eq.s32.totalorder %s26, 1
      %p243 = por %p241, %p242
      %p245 = scmp.ne.s32.totalorder %s228, %s244
      %p246 = scmp.eq.s32.totalorder %s26, 0
      %p247 = por %p245, %p246
      %s248 = ssub.s32 %s20, %s27
      %p249 = scmp.eq.s32.totalorder %s248, 0
      %s251 = sadd.s32 %s250, 1
      %s252 = scalar_select %p249, %s250, %s251
      %p255 = pneg %p249
      %p256 = scmp.eq.s32.totalorder %s20, 1
      %p257 = por %p255, %p256
      %p258 = scmp.ne.s32.totalorder %s250, %s253
      %p259 = scmp.eq.s32.totalorder %s20, 0
      %p260 = por %p258, %p259
      %p261 = scmp.ne.s32.totalorder %s250, %s253
      %p262 = scmp.eq.s32.totalorder %s25, 1
      %p263 = por %p261, %p262
      %p264 = scmp.ne.s32.totalorder %s253, %s254
      %p265 = scmp.eq.s32.totalorder %s25, 0
      %p266 = por %p264, %p265
      %p267 = scmp.ne.s32.totalorder %s253, %s254
      %p268 = scmp.eq.s32.totalorder %s26, 1
      %p269 = por %p267, %p268
      %p271 = scmp.ne.s32.totalorder %s254, %s270
      %p272 = scmp.eq.s32.totalorder %s26, 0
      %p273 = por %p271, %p272
      %p274 = scmp.le.s32.totalorder 1, %s20
      %p275 = scmp.lt.s32.totalorder %s20, 3
      %p276 = pnand %p274, %p275
      %p277 = pneg %p276
      // Predicated region
      $region9: #{convmixer_forward.4} parent=5 // pred_check
        _
      $region10: #{convmixer_forward.4} parent=5 // pred_check_branch
        %279 = sbr.rel (%p276) target = $region12
      $region11: #{convmixer_forward.4} parent=5 // pred_region
        %s280 = ssub.s32 %s20, 1
        // Predicated region
        $region13: #{convmixer_forward.4} parent=11 // pred_check
          %p281 = pneg %p67
        $region14: #{convmixer_forward.4} parent=11 // pred_check_branch
          %283 = sbr.rel (%p281) target = $region16
        $region15: #{convmixer_forward.4} parent=11 // pred_region
          _
        $region16: #{convmixer_forward.4} parent=11 // pred_fallthru
          _
        // Predicated region
        $region17: #{convmixer_forward.4} parent=11 // pred_check
          %p284 = pneg %p88
        $region18: #{convmixer_forward.4} parent=11 // pred_check_branch
          %286 = sbr.rel (%p284) target = $region20
        $region19: #{convmixer_forward.4} parent=11 // pred_region
          _
        $region20: #{convmixer_forward.4} parent=11 // pred_fallthru
          _
        // Predicated region
        $region21: #{convmixer_forward.4} parent=11 // pred_check
          %p287 = pneg %p109
        $region22: #{convmixer_forward.4} parent=11 // pred_check_branch
          %289 = sbr.rel (%p287) target = $region24
        $region23: #{convmixer_forward.4} parent=11 // pred_region
          _
        $region24: #{convmixer_forward.4} parent=11 // pred_fallthru
          _
        // Predicated region
        $region25: #{convmixer_forward.4} parent=11 // pred_check
          %p290 = pneg %p130
        $region26: #{convmixer_forward.4} parent=11 // pred_check_branch
          %292 = sbr.rel (%p290) target = $region28
        $region27: #{convmixer_forward.4} parent=11 // pred_region
          _
        $region28: #{convmixer_forward.4} parent=11 // pred_fallthru
          _
        // Predicated region
        $region29: #{convmixer_forward.4} parent=11 // pred_check
          %p293 = pneg %p151
        $region30: #{convmixer_forward.4} parent=11 // pred_check_branch
          %295 = sbr.rel (%p293) target = $region32
        $region31: #{convmixer_forward.4} parent=11 // pred_region
          _
        $region32: #{convmixer_forward.4} parent=11 // pred_fallthru
          _
        // Predicated region
        $region33: #{convmixer_forward.4} parent=11 // pred_check
          %p296 = pneg %p172
        $region34: #{convmixer_forward.4} parent=11 // pred_check_branch
          %298 = sbr.rel (%p296) target = $region36
        $region35: #{convmixer_forward.4} parent=11 // pred_region
          _
        $region36: #{convmixer_forward.4} parent=11 // pred_fallthru
          _
        // Predicated region
        $region37: #{convmixer_forward.4} parent=11 // pred_check
          %p299 = pneg %p193
        $region38: #{convmixer_forward.4} parent=11 // pred_check_branch
          %301 = sbr.rel (%p299) target = $region40
        $region39: #{convmixer_forward.4} parent=11 // pred_region
          _
        $region40: #{convmixer_forward.4} parent=11 // pred_fallthru
          _
        // Predicated region
        $region41: #{convmixer_forward.4} parent=11 // pred_check
          %p302 = pneg %p214
        $region42: #{convmixer_forward.4} parent=11 // pred_check_branch
          %304 = sbr.rel (%p302) target = $region44
        $region43: #{convmixer_forward.4} parent=11 // pred_region
          _
        $region44: #{convmixer_forward.4} parent=11 // pred_fallthru
          _
      $region12: #{convmixer_forward.4} parent=5 // pred_fallthru
        _
      %p305 = scmp.lt.s32.totalorder %s20, 2
      // Predicated region
      $region45: #{convmixer_forward.4} parent=5 // pred_check
        %p306 = pneg %p305
      $region46: #{convmixer_forward.4} parent=5 // pred_check_branch
        %308 = sbr.rel (%p306) target = $region48
      $region47: #{convmixer_forward.4} parent=5 // pred_region
        // Predicated region
        $region49: #{convmixer_forward.4} parent=47 // pred_check
          %p309 = pneg %p40
        $region50: #{convmixer_forward.4} parent=47 // pred_check_branch
          %311 = sbr.rel (%p309) target = $region52
        $region51: #{convmixer_forward.4} parent=47 // pred_region
          %p312 = scmp.lt.s32.totalorder %s20, 1
          %s313 = scalar_select %p312, %s20, 1
          %s314 = smul.addr %s313, 4
          %s315 = smul.addr %s314, 4
          %s316 = scalar_lea.vmem %s0, %s315
        $region52: #{convmixer_forward.4} parent=47 // pred_fallthru
          _
      $region48: #{convmixer_forward.4} parent=5 // pred_fallthru
        _
      %p317 = scmp.le.s32.totalorder 1, %s20
      %p318 = scmp.lt.s32.totalorder %s20, 3
      %p319 = pnand %p317, %p318
      %p320 = pneg %p319
      // Predicated region
      $region53: #{convmixer_forward.4} parent=5 // pred_check
        _
      $region54: #{convmixer_forward.4} parent=5 // pred_check_branch
        %322 = sbr.rel (%p319) target = $region56
      $region55: #{convmixer_forward.4} parent=5 // pred_region
        %s323 = ssub.s32 %s20, 1
        %p324 = scmp.lt.s32.totalorder %s25, 1
        %s325 = scalar_select %p324, %s25, 1
        %s326 = smul.addr %s325, 4
        %s327 = smul.addr %s326, 4
        %s328 = scalar_lea.vmem %s0, %s327
        %p329 = pneg %p46
        %p330 = pneg %p43
        %p331 = pneg %p67
        %p332 = pneg %p64
        %p333 = pneg %p88
        %p334 = pneg %p85
        %p335 = pneg %p109
        %p336 = pneg %p106
        %p337 = pneg %p130
        %p338 = pneg %p127
        %p339 = pneg %p151
        %p340 = pneg %p148
        %p341 = pneg %p172
        %p342 = pneg %p169
        %p343 = pneg %p193
        %p344 = pneg %p190
        %p345 = pneg %p214
        %p346 = pneg %p211
        %p347 = pneg %p240
        %p348 = pneg %p237
        %p349 = scmp.lt.s32.totalorder %s25, 1
        %s350 = scalar_select %p349, %s25, 1
        %s351 = smul.addr %s350, 2
        %s352 = smul.addr %s351, 8
        %s353 = scalar_lea.vmem %s9, %s352
        %p354 = pneg %p266
        %p355 = pneg %p263
        %s356 = sand.u32 %s253, 1
        %s357 = scalar_lea.sflag [#allocation5], %s356
        %s358 = sand.u32 %s253, 1
        %s359 = scalar_lea.vmem [#allocation4], %s358
        %p360 = scmp.lt.s32.totalorder %s25, 1
        %s361 = scalar_select %p360, %s25, 1
        %s362 = smul.addr %s361, 4
        %s363 = smul.addr %s362, 4
        %s364 = scalar_lea.vmem %s0, %s363
        %p365 = scmp.lt.s32.totalorder %s25, 1
        %s366 = scalar_select %p365, %s25, 1
        %s367 = smul.addr %s366, 2
        %s368 = smul.addr %s367, 8
        %s369 = scalar_lea.vmem %s9, %s368
        %370 = vst [vmem:[#allocation2] sm:$0x3f] 0.0
        %371 = vst [vmem:[#allocation2 + $0x8] sm:$0x3f] 0.0
        %372 = vst [vmem:[#allocation2 + $0x10] sm:$0x3f] 0.0
        %373 = vst [vmem:[#allocation2 + $0x18] sm:$0x3f] 0.0
        %374 = vst [vmem:[#allocation2 + $0x20] sm:$0x3f] 0.0
        %375 = vst [vmem:[#allocation2 + $0x28] sm:$0x3f] 0.0
        %v376 = vld [vmem:[%s364] sm:$0xf]
        %v377 = vld [vmem:[%s364 + $0x4] sm:$0xf]
        %v378 = vld [vmem:[%s364 + $0x8] sm:$0xf]
        %v379 = vld [vmem:[%s364 + $0xc] sm:$0xf]
        %s380 = scalar_lea.vmem [#allocation2], 8
        %381 = vst [vmem:[%s380 + $0x1] sm:$0xf] %v376
        %382 = vst [vmem:[%s380 + $0x9] sm:$0xf] %v377
        %383 = vst [vmem:[%s380 + $0x11] sm:$0xf] %v378
        %384 = vst [vmem:[%s380 + $0x19] sm:$0xf] %v379
        %v385 = vld [vmem:[%s1] sm:$0xff]
        %v386 = vld [vmem:[%s1 + $0x8] sm:$0x1]
        %v387 = vld [vmem:[#allocation2] sm:$0xf]
        %v388 = vld [vmem:[#allocation2 + $0x8] sm:$0xf]
        %v389 = vld [vmem:[#allocation2 + $0x10] sm:$0xf]
        %v390 = vld [vmem:[#allocation2 + $0x18] sm:$0xf]
        %v391 = vperm.slane %v385, 0
        %v392 = vmul.f32 %v387, %v391
        %v393 = vmul.f32 %v388, %v391
        %v394 = vmul.f32 %v389, %v391
        %v395 = vmul.f32 %v390, %v391
        %v396 = vld [vmem:[#allocation2 + $0x1] sm:$0xf]
        %v397 = vld [vmem:[#allocation2 + $0x9] sm:$0xf]
        %v398 = vld [vmem:[#allocation2 + $0x11] sm:$0xf]
        %v399 = vld [vmem:[#allocation2 + $0x19] sm:$0xf]
        %v400 = vperm.slane %v385, 1
        %v401 = vmul.f32 %v396, %v400
        %v402 = vmul.f32 %v397, %v400
        %v403 = vmul.f32 %v398, %v400
        %v404 = vmul.f32 %v399, %v400
        %v405 = vadd.f32 %v392, %v401
        %v406 = vadd.f32 %v393, %v402
        %v407 = vadd.f32 %v394, %v403
        %v408 = vadd.f32 %v395, %v404
        %v409 = vld [vmem:[#allocation2 + $0x2] sm:$0xf]
        %v410 = vld [vmem:[#allocation2 + $0xa] sm:$0xf]
        %v411 = vld [vmem:[#allocation2 + $0x12] sm:$0xf]
        %v412 = vld [vmem:[#allocation2 + $0x1a] sm:$0xf]
        %v413 = vperm.slane %v385, 2
        %v414 = vmul.f32 %v409, %v413
        %v415 = vmul.f32 %v410, %v413
        %v416 = vmul.f32 %v411, %v413
        %v417 = vmul.f32 %v412, %v413
        %v418 = vadd.f32 %v405, %v414
        %v419 = vadd.f32 %v406, %v415
        %v420 = vadd.f32 %v407, %v416
        %v421 = vadd.f32 %v408, %v417
        %v422 = vld [vmem:[%s380] sm:$0xf]
        %v423 = vld [vmem:[%s380 + $0x8] sm:$0xf]
        %v424 = vld [vmem:[%s380 + $0x10] sm:$0xf]
        %v425 = vld [vmem:[%s380 + $0x18] sm:$0xf]
        %v426 = vperm.slane %v385, 3
        %v427 = vmul.f32 %v422, %v426
        %v428 = vmul.f32 %v423, %v426
        %v429 = vmul.f32 %v424, %v426
        %v430 = vmul.f32 %v425, %v426
        %v431 = vadd.f32 %v418, %v427
        %v432 = vadd.f32 %v419, %v428
        %v433 = vadd.f32 %v420, %v429
        %v434 = vadd.f32 %v421, %v430
        %v435 = vld [vmem:[%s380 + $0x1] sm:$0xf]
        %v436 = vld [vmem:[%s380 + $0x9] sm:$0xf]
        %v437 = vld [vmem:[%s380 + $0x11] sm:$0xf]
        %v438 = vld [vmem:[%s380 + $0x19] sm:$0xf]
        %v439 = vperm.slane %v385, 4
        %v440 = vmul.f32 %v435, %v439
        %v441 = vmul.f32 %v436, %v439
        %v442 = vmul.f32 %v437, %v439
        %v443 = vmul.f32 %v438, %v439
        %v444 = vadd.f32 %v431, %v440
        %v445 = vadd.f32 %v432, %v441
        %v446 = vadd.f32 %v433, %v442
        %v447 = vadd.f32 %v434, %v443
        %v448 = vld [vmem:[%s380 + $0x2] sm:$0xf]
        %v449 = vld [vmem:[%s380 + $0xa] sm:$0xf]
        %v450 = vld [vmem:[%s380 + $0x12] sm:$0xf]
        %v451 = vld [vmem:[%s380 + $0x1a] sm:$0xf]
        %v452 = vperm.slane %v385, 5
        %v453 = vmul.f32 %v448, %v452
        %v454 = vmul.f32 %v449, %v452
        %v455 = vmul.f32 %v450, %v452
        %v456 = vmul.f32 %v451, %v452
        %v457 = vadd.f32 %v444, %v453
        %v458 = vadd.f32 %v445, %v454
        %v459 = vadd.f32 %v446, %v455
        %v460 = vadd.f32 %v447, %v456
        %s461 = scalar_lea.vmem [#allocation2], 16
        %v462 = vld [vmem:[%s461] sm:$0xf]
        %v463 = vld [vmem:[%s461 + $0x8] sm:$0xf]
        %v464 = vld [vmem:[%s461 + $0x10] sm:$0xf]
        %v465 = vld [vmem:[%s461 + $0x18] sm:$0xf]
        %v466 = vperm.slane %v385, 6
        %v467 = vmul.f32 %v462, %v466
        %v468 = vmul.f32 %v463, %v466
        %v469 = vmul.f32 %v464, %v466
        %v470 = vmul.f32 %v465, %v466
        %v471 = vadd.f32 %v457, %v467
        %v472 = vadd.f32 %v458, %v468
        %v473 = vadd.f32 %v459, %v469
        %v474 = vadd.f32 %v460, %v470
        %v475 = vld [vmem:[%s461 + $0x1] sm:$0xf]
        %v476 = vld [vmem:[%s461 + $0x9] sm:$0xf]
        %v477 = vld [vmem:[%s461 + $0x11] sm:$0xf]
        %v478 = vld [vmem:[%s461 + $0x19] sm:$0xf]
        %v479 = vperm.slane %v385, 7
        %v480 = vmul.f32 %v475, %v479
        %v481 = vmul.f32 %v476, %v479
        %v482 = vmul.f32 %v477, %v479
        %v483 = vmul.f32 %v478, %v479
        %v484 = vadd.f32 %v471, %v480
        %v485 = vadd.f32 %v472, %v481
        %v486 = vadd.f32 %v473, %v482
        %v487 = vadd.f32 %v474, %v483
        %v488 = vld [vmem:[%s461 + $0x2] sm:$0xf]
        %v489 = vld [vmem:[%s461 + $0xa] sm:$0xf]
        %v490 = vld [vmem:[%s461 + $0x12] sm:$0xf]
        %v491 = vld [vmem:[%s461 + $0x1a] sm:$0xf]
        %v492 = vperm.slane %v386, 0
        %v493 = vmul.f32 %v488, %v492
        %v494 = vmul.f32 %v489, %v492
        %v495 = vmul.f32 %v490, %v492
        %v496 = vmul.f32 %v491, %v492
        %v497 = vadd.f32 %v484, %v493
        %v498 = vadd.f32 %v485, %v494
        %v499 = vadd.f32 %v486, %v495
        %v500 = vadd.f32 %v487, %v496
        %v501 = vld [vmem:[%s2] sm:$0x1]
        %v503 = vperm.slane %v501, 0
        %v505 = vadd.f32 %v497, %v503
        %v506 = vadd.f32 %v498, %v503
        %v507 = vadd.f32 %v499, %v503
        %v508 = vadd.f32 %v500, %v503
        %v509 = vmul.f32 %v505, 0.5
        %v510 = vmul.f32 %v506, 0.5
        %v511 = vmul.f32 %v507, 0.5
        %v512 = vmul.f32 %v508, 0.5
        %v513 = vmul.f32 %v505, 0.70710677
        %v514 = vmul.f32 %v506, 0.70710677
        %v515 = vmul.f32 %v507, 0.70710677
        %v516 = vmul.f32 %v508, 0.70710677
        %vm517 = vcmp.ge.f32.partialorder %v513, 0.0
        %vm518 = vcmp.ge.f32.partialorder %v514, 0.0
        %vm519 = vcmp.ge.f32.partialorder %v515, 0.0
        %vm520 = vcmp.ge.f32.partialorder %v516, 0.0
        %v521 = vsel %vm517, 1.0, -1.0
        %v522 = vsel %vm518, 1.0, -1.0
        %v523 = vsel %vm519, 1.0, -1.0
        %v524 = vsel %vm520, 1.0, -1.0
        %v525 = vand.u32 2147483647, %v513
        %v526 = vand.u32 2147483647, %v514
        %v527 = vand.u32 2147483647, %v515
        %v528 = vand.u32 2147483647, %v516
        %v529 = vmul.f32 %v525, 0.3275911
        %v530 = vmul.f32 %v526, 0.3275911
        %v531 = vmul.f32 %v527, 0.3275911
        %v532 = vmul.f32 %v528, 0.3275911
        %v533 = vadd.f32 %v529, 1.0
        %v534 = vadd.f32 %v530, 1.0
        %v535 = vadd.f32 %v531, 1.0
        %v536 = vadd.f32 %v532, 1.0
        %v537 = vrcp.pop %v533
        %v538 = vrcp.pop %v534
        %v539 = vrcp.pop %v535
        %v540 = vrcp.pop %v536
        %v541 = vmul.f32 %v537, 1.0614054
        %v542 = vmul.f32 %v538, 1.0614054
        %v543 = vmul.f32 %v539, 1.0614054
        %v544 = vmul.f32 %v540, 1.0614054
        %v545 = vadd.f32 %v541, -1.4531521
        %v546 = vadd.f32 %v542, -1.4531521
        %v547 = vadd.f32 %v543, -1.4531521
        %v548 = vadd.f32 %v544, -1.4531521
        %v549 = vmul.f32 %v545, %v537
        %v550 = vmul.f32 %v546, %v538
        %v551 = vmul.f32 %v547, %v539
        %v552 = vmul.f32 %v548, %v540
        %v553 = vadd.f32 %v549, 1.4214138
        %v554 = vadd.f32 %v550, 1.4214138
        %v555 = vadd.f32 %v551, 1.4214138
        %v556 = vadd.f32 %v552, 1.4214138
        %v557 = vmul.f32 %v553, %v537
        %v558 = vmul.f32 %v554, %v538
        %v559 = vmul.f32 %v555, %v539
        %v560 = vmul.f32 %v556, %v540
        %v561 = vadd.f32 %v557, -0.28449672
        %v562 = vadd.f32 %v558, -0.28449672
        %v563 = vadd.f32 %v559, -0.28449672
        %v564 = vadd.f32 %v560, -0.28449672
        %v565 = vmul.f32 %v561, %v537
        %v566 = vmul.f32 %v562, %v538
        %v567 = vmul.f32 %v563, %v539
        %v568 = vmul.f32 %v564, %v540
        %v569 = vadd.f32 %v565, 0.2548296
        %v570 = vadd.f32 %v566, 0.2548296
        %v571 = vadd.f32 %v567, 0.2548296
        %v572 = vadd.f32 %v568, 0.2548296
        %v573 = vmul.f32 %v569, %v537
        %v574 = vmul.f32 %v570, %v538
        %v575 = vmul.f32 %v571, %v539
        %v576 = vmul.f32 %v572, %v540
        %v577 = vsub.f32 0.0, %v525
        %v578 = vsub.f32 0.0, %v526
        %v579 = vsub.f32 0.0, %v527
        %v580 = vsub.f32 0.0, %v528
        %v581 = vmul.f32 %v577, %v525
        %v582 = vmul.f32 %v578, %v526
        %v583 = vmul.f32 %v579, %v527
        %v584 = vmul.f32 %v580, %v528
        %v585 = vmul.f32 %v581, 1.442695
        %v586 = vpow.pop %v585
        %v587 = vmul.f32 %v582, 1.442695
        %v588 = vpow.pop %v587
        %v589 = vmul.f32 %v583, 1.442695
        %v590 = vpow.pop %v589
        %v591 = vmul.f32 %v584, 1.442695
        %v592 = vpow.pop %v591
        %v593 = vmul.f32 %v573, %v586
        %v594 = vmul.f32 %v574, %v588
        %v595 = vmul.f32 %v575, %v590
        %v596 = vmul.f32 %v576, %v592
        %v597 = vsub.f32 1.0, %v593
        %v598 = vsub.f32 1.0, %v594
        %v599 = vsub.f32 1.0, %v595
        %v600 = vsub.f32 1.0, %v596
        %v601 = vmul.f32 %v521, %v597
        %v602 = vmul.f32 %v522, %v598
        %v603 = vmul.f32 %v523, %v599
        %v604 = vmul.f32 %v524, %v600
        %v605 = vadd.f32 %v601, 1.0
        %v606 = vadd.f32 %v602, 1.0
        %v607 = vadd.f32 %v603, 1.0
        %v608 = vadd.f32 %v604, 1.0
        %v609 = vmul.f32 %v509, %v605
        %v610 = vmul.f32 %v510, %v606
        %v611 = vmul.f32 %v511, %v607
        %v612 = vmul.f32 %v512, %v608
        %v613 = vld [vmem:[%s3] sm:$0x1]
        %v615 = vperm.slane %v613, 0
        %v617 = vmul.f32 %v609, %v615
        %v618 = vmul.f32 %v610, %v615
        %v619 = vmul.f32 %v611, %v615
        %v620 = vmul.f32 %v612, %v615
        %v621 = vld [vmem:[%s4] sm:$0x1]
        %v623 = vperm.slane %v621, 0
        %v625 = vadd.f32 %v617, %v623
        %v626 = vadd.f32 %v618, %v623
        %v627 = vadd.f32 %v619, %v623
        %v628 = vadd.f32 %v620, %v623
        %v629 = vadd.f32 %v625, %v376
        %v630 = vadd.f32 %v626, %v377
        %v631 = vadd.f32 %v627, %v378
        %v632 = vadd.f32 %v628, %v379
        %v633 = vpack.c.bf16 %v629, %v629
        %634 = vst [vmem:[#allocation3] sm:$0x3] %v633
        %v635 = vpack.c.bf16 %v630, %v630
        %v637 = vrot.slane %v635, 6
        %639 = vst [vmem:[#allocation3] sm:$0xc] %v637
        %v640 = vpack.c.bf16 %v631, %v631
        %641 = vst [vmem:[#allocation3 + $0x4] sm:$0x3] %v640
        %v642 = vpack.c.bf16 %v632, %v632
        %v644 = vrot.slane %v642, 6
        %646 = vst [vmem:[#allocation3 + $0x4] sm:$0xc] %v644
        %v647 = vld [vmem:[#allocation3] sm:$0xf]
        %v648 = vld [vmem:[#allocation3 + $0x4] sm:$0xf]
        %v649 = vld [vmem:[%s5] sm:$0xf]
        %v650 = vld [vmem:[%s5 + $0x4] sm:$0xf]
        %v651 = vld [vmem:[%s5 + $0x8] sm:$0xf]
        %v652 = vld [vmem:[%s5 + $0xc] sm:$0xf]
        %v653 = vld [vmem:[%s5 + $0x10] sm:$0xf]
        %v654 = vld [vmem:[%s5 + $0x14] sm:$0xf]
        %v655 = vld [vmem:[%s5 + $0x18] sm:$0xf]
        %v656 = vld [vmem:[%s5 + $0x1c] sm:$0xf]
        %v657 = vld [vmem:[%s5 + $0x20] sm:$0xf]
        %v658 = vld [vmem:[%s5 + $0x24] sm:$0xf]
        %v659 = vld [vmem:[%s5 + $0x28] sm:$0xf]
        %v660 = vld [vmem:[%s5 + $0x2c] sm:$0xf]
        %v661 = vld [vmem:[%s5 + $0x30] sm:$0xf]
        %v662 = vld [vmem:[%s5 + $0x34] sm:$0xf]
        %v663 = vld [vmem:[%s5 + $0x38] sm:$0xf]
        %v664 = vld [vmem:[%s5 + $0x3c] sm:$0xf]
        %v665 = vld [vmem:[%s6] sm:$0x1]
        %v667 = vperm.slane %v665, 0
        %v671 = vunpack.c.l.b16 %v647
        %v672 = vunpack.c.l.b16 %v648
        %v673 = vpack.c.b16 %v672, %v671
        %v691 = vunpack.c.l.b16 %v649
        %v692 = vunpack.c.l.b16 %v650
        %v693 = vunpack.c.l.b16 %v651
        %v694 = vunpack.c.l.b16 %v652
        %v695 = vunpack.c.l.b16 %v653
        %v696 = vunpack.c.l.b16 %v654
        %v697 = vunpack.c.l.b16 %v655
        %v698 = vunpack.c.l.b16 %v656
        %v699 = vunpack.c.l.b16 %v657
        %v700 = vunpack.c.l.b16 %v658
        %v701 = vunpack.c.l.b16 %v659
        %v702 = vunpack.c.l.b16 %v660
        %v703 = vunpack.c.l.b16 %v661
        %v704 = vunpack.c.l.b16 %v662
        %v705 = vunpack.c.l.b16 %v663
        %v706 = vunpack.c.l.b16 %v664
        %v707 = vpack.c.b16 %v692, %v691
        %v708 = vpack.c.b16 %v694, %v693
        %v709 = vpack.c.b16 %v696, %v695
        %v710 = vpack.c.b16 %v698, %v697
        %v711 = vpack.c.b16 %v700, %v699
        %v712 = vpack.c.b16 %v702, %v701
        %v713 = vpack.c.b16 %v704, %v703
        %v714 = vpack.c.b16 %v706, %v705
        %723 = vmatpush.bf16.msra.mxu0 %v714
        %724 = vmatpush.bf16.msra.mxu0 %v713
        %725 = vmatpush.bf16.msra.mxu0 %v712
        %726 = vmatpush.bf16.msra.mxu0 %v711
        %727 = vmatpush.bf16.msra.mxu0 %v710
        %728 = vmatpush.bf16.msra.mxu0 %v709
        %729 = vmatpush.bf16.msra.mxu0 %v708
        %730 = vmatpush.bf16.msra.mxu0 %v707
        %731 = vmatmul.bf16.gmra.mxu0 %v673
        %v732 = vpop.f32.mrf.mxu0
        %v733 = vadd.f32 %v667, %v732
        %v734 = vpop.f32.mrf.mxu0
        %v735 = vadd.f32 %v667, %v734
        %736 = vdwg.mxu0
        %v737 = vmul.f32 %v733, 0.5
        %v738 = vmul.f32 %v735, 0.5
        %v739 = vmul.f32 %v733, 0.70710677
        %v740 = vmul.f32 %v735, 0.70710677
        %vm741 = vcmp.ge.f32.partialorder %v739, 0.0
        %vm742 = vcmp.ge.f32.partialorder %v740, 0.0
        %v743 = vsel %vm741, 1.0, -1.0
        %v744 = vsel %vm742, 1.0, -1.0
        %v745 = vand.u32 2147483647, %v739
        %v746 = vand.u32 2147483647, %v740
        %v747 = vmul.f32 %v745, 0.3275911
        %v748 = vmul.f32 %v746, 0.3275911
        %v749 = vadd.f32 %v747, 1.0
        %v750 = vadd.f32 %v748, 1.0
        %v751 = vrcp.pop %v749
        %v752 = vrcp.pop %v750
        %v753 = vmul.f32 %v751, 1.0614054
        %v754 = vmul.f32 %v752, 1.0614054
        %v755 = vadd.f32 %v753, -1.4531521
        %v756 = vadd.f32 %v754, -1.4531521
        %v757 = vmul.f32 %v755, %v751
        %v758 = vmul.f32 %v756, %v752
        %v759 = vadd.f32 %v757, 1.4214138
        %v760 = vadd.f32 %v758, 1.4214138
        %v761 = vmul.f32 %v759, %v751
        %v762 = vmul.f32 %v760, %v752
        %v763 = vadd.f32 %v761, -0.28449672
        %v764 = vadd.f32 %v762, -0.28449672
        %v765 = vmul.f32 %v763, %v751
        %v766 = vmul.f32 %v764, %v752
        %v767 = vadd.f32 %v765, 0.2548296
        %v768 = vadd.f32 %v766, 0.2548296
        %v769 = vmul.f32 %v767, %v751
        %v770 = vmul.f32 %v768, %v752
        %v771 = vsub.f32 0.0, %v745
        %v772 = vsub.f32 0.0, %v746
        %v773 = vmul.f32 %v771, %v745
        %v774 = vmul.f32 %v772, %v746
        %v775 = vmul.f32 %v773, 1.442695
        %v776 = vpow.pop %v775
        %v777 = vmul.f32 %v774, 1.442695
        %v778 = vpow.pop %v777
        %v779 = vmul.f32 %v769, %v776
        %v780 = vmul.f32 %v770, %v778
        %v781 = vsub.f32 1.0, %v779
        %v782 = vsub.f32 1.0, %v780
        %v783 = vmul.f32 %v743, %v781
        %v784 = vmul.f32 %v744, %v782
        %v785 = vadd.f32 %v783, 1.0
        %v786 = vadd.f32 %v784, 1.0
        %v787 = vmul.f32 %v737, %v785
        %v788 = vmul.f32 %v738, %v786
        %v789 = vld [vmem:[%s7] sm:$0x1]
        %v791 = vperm.slane %v789, 0
        %v793 = vmul.f32 %v787, %v791
        %v794 = vmul.f32 %v788, %v791
        %v795 = vld [vmem:[%s8] sm:$0x1]
        %v797 = vperm.slane %v795, 0
        %v799 = vadd.f32 %v793, %v797
        %v800 = vadd.f32 %v794, %v797
        %801 = vst [vmem:[%s369] sm:$0xff] %v799
        %802 = vst [vmem:[%s369 + $0x8] sm:$0xff] %v800
        %v803 = vadd.f32 %v799, %v800
        %v804 = vrot.slane %v803, 4
        %v805 = vadd.f32 %v803, %v804
        %v806 = vrot.slane %v805, 2
        %v807 = vadd.f32 %v805, %v806
        %v808 = vrot.slane %v807, 1
        %v809 = vadd.f32 %v807, %v808
        %v810 = vrcp.pop 16.0
        %v811 = vmul.f32 16.0, %v810
        %v812 = vsub.f32 1.0, %v811
        %v813 = vmul.f32 %v810, %v812
        %v814 = vadd.f32 %v810, %v813
        %vm815 = vweird.f32 %v810
        %v816 = vsel %vm815, %v810, %v814
        %v817 = vmul.f32 %v809, %v816
        %818 = vst [vmem:[%s359] sm:$0x1] %v817
        %p819 = scmp.lt.s32.totalorder %s25, 1
        %s820 = scalar_select %p819, %s25, 1
        %s821 = smul.addr %s820, 2
        %s822 = smul.addr %s821, 8
        %s823 = scalar_lea.vmem %s9, %s822
        %s824 = sand.u32 %s253, 1
        %s825 = scalar_lea.sflag [#allocation5], %s824
        %s826 = sand.u32 %s253, 1
        %s827 = scalar_lea.vmem [#allocation4], %s826
        // Predicated region
        $region57: #{convmixer_forward.4} parent=55 // pred_check
          %p828 = pneg %p237
        $region58: #{convmixer_forward.4} parent=55 // pred_check_branch
          %830 = sbr.rel (%p828) target = $region60
        $region59: #{convmixer_forward.4} parent=55 // pred_region
          _
        $region60: #{convmixer_forward.4} parent=55 // pred_fallthru
          _
        // Predicated region
        $region61: #{convmixer_forward.4} parent=55 // pred_check
          %p831 = pneg %p263
        $region62: #{convmixer_forward.4} parent=55 // pred_check_branch
          %833 = sbr.rel (%p831) target = $region64
        $region63: #{convmixer_forward.4} parent=55 // pred_region
          %835 = vsyncadd %s825, 0
          %s836 = scalar_lea.hbm %s10, %s25
          %s838 = sshll.u32 %s827, 4
          %s839 = int_to_ptr.vmem [resolvable:$true] %s838
          %s840 = sshll.u32 %s836, 4
          %s841 = int_to_ptr.hbm [resolvable:$true] %s840
          %843 = dma.vmem_to_hbm [thread:$0]  %s839, 16, %s841, %s825
        $region64: #{convmixer_forward.4} parent=55 // pred_fallthru
          _
      $region56: #{convmixer_forward.4} parent=5 // pred_fallthru
        _
      %p844 = scmp.le.s32.totalorder 2, %s20
      // Predicated region
      $region65: #{convmixer_forward.4} parent=5 // pred_check
        %p845 = pneg %p844
      $region66: #{convmixer_forward.4} parent=5 // pred_check_branch
        %847 = sbr.rel (%p845) target = $region68
      $region67: #{convmixer_forward.4} parent=5 // pred_region
        %s848 = ssub.s32 %s20, 2
        // Predicated region
        $region69: #{convmixer_forward.4} parent=67 // pred_check
          %p849 = pneg %p243
        $region70: #{convmixer_forward.4} parent=67 // pred_check_branch
          %851 = sbr.rel (%p849) target = $region72
        $region71: #{convmixer_forward.4} parent=67 // pred_region
          %p852 = scmp.lt.s32.totalorder %s26, 1
          %s853 = scalar_select %p852, %s26, 1
          %s854 = smul.addr %s853, 2
          %s855 = smul.addr %s854, 8
          %s856 = scalar_lea.vmem %s9, %s855
        $region72: #{convmixer_forward.4} parent=67 // pred_fallthru
          _
        // Predicated region
        $region73: #{convmixer_forward.4} parent=67 // pred_check
          %p857 = pneg %p269
        $region74: #{convmixer_forward.4} parent=67 // pred_check_branch
          %859 = sbr.rel (%p857) target = $region76
        $region75: #{convmixer_forward.4} parent=67 // pred_region
          %s860 = sand.u32 %s254, 1
          %s861 = scalar_lea.sflag [#allocation5], %s860
          %s862 = sand.u32 %s254, 1
          %s863 = scalar_lea.vmem [#allocation4], %s862
          %865 = dma.done %s861, 16
        $region76: #{convmixer_forward.4} parent=67 // pred_fallthru
          _
      $region68: #{convmixer_forward.4} parent=5 // pred_fallthru
        _
    $region6: #{convmixer_forward.4} parent=1 // loop_footer
      %s24 = sadd.s32 1, %s20
    $region7: #{convmixer_forward.4} parent=1 // loop_footer_branch
      %19 = sbr.rel target = $region3
    $region8: #{convmixer_forward.4} parent=1 // loop_exit
      _
    %866 = vsyncpa [#allocation5], 1
    %s867 = scalar_lea.sflag [#allocation5], 1
    %868 = vsyncpa %s867, 1

</llo_original>
